<compile_context>
chip_gen: v7x
topology: tpu7x:2x2x1
jax: 0.10.0
libtpu: 0.0.40
codegen_flags: <defaults>
</compile_context>

<pallas_src>
import math
from functools import partial

import jax
import jax.numpy as jnp
import numpy as np
from jax import lax
from jax.experimental import pallas as pl
from jax.experimental.pallas import tpu as pltpu


# ---------------------------------------------------------------------------
# Faithful port of the all-to-all layout logic (glue, plain JAX)
# ---------------------------------------------------------------------------
def _generate_layout_params(scatter_idx, seq_world_size, shape):
    if scatter_idx < 2:
        bs, global_seq_len, num_local_head, head_dim = shape
        pre_shape = [bs, seq_world_size, global_seq_len // seq_world_size,
                     num_local_head, head_dim]
        pre_perm = (1, 0, 2, 3, 4)
        post_perm = (1, 2, 0, 3, 4)
        post_shape = [bs, global_seq_len // seq_world_size,
                      seq_world_size * num_local_head, head_dim]
    else:
        bs, local_seq_len, num_total_head, head_dim = shape
        assert num_total_head % seq_world_size == 0, (
            f'Number of heads ({num_total_head}) must be divisible by the '
            f'sequence parallel size ({seq_world_size})!')
        pre_shape = [bs, local_seq_len, seq_world_size,
                     num_total_head // seq_world_size, head_dim]
        pre_perm = (2, 0, 1, 3, 4)
        post_perm = (1, 0, 2, 3, 4)
        post_shape = [bs, seq_world_size * local_seq_len,
                      num_total_head // seq_world_size, head_dim]
    return pre_perm, pre_shape, post_perm, post_shape


def single_all_to_all_sim(stacked, scatter_idx, gather_idx, world_size):
    """Simulate dist.all_to_all_single across an explicit leading rank axis."""
    # TODO(synk): on a real multi-chip deployment this should be in-kernel
    # pltpu.make_async_remote_copy ring steps (collective_id + barrier sem)
    # overlapped with the kv loop of the attention kernel.
    per_rank_shape = stacked.shape[1:]
    pre_perm, pre_shape, post_perm, post_shape = _generate_layout_params(
        scatter_idx, world_size, per_rank_shape)
    t = stacked.reshape((world_size,) + tuple(pre_shape))
    if pre_perm is not None:
        t = jnp.transpose(t, (0,) + tuple(p + 1 for p in pre_perm))
    # all_to_all_single: rank r's chunk s is delivered into rank s's slot r
    t = jnp.swapaxes(t, 0, 1)
    if post_perm is not None:
        t = jnp.transpose(t, (0,) + tuple(p + 1 for p in post_perm))
    return t.reshape((world_size,) + tuple(post_shape))


# ---------------------------------------------------------------------------
# Pallas flash-attention kernel (the local_attn hot path)
# ---------------------------------------------------------------------------
def _flash_attn_kernel(*refs, scale, causal, has_mask, block_q, block_kv):
    if has_mask:
        q_ref, k_ref, v_ref, mask_ref, o_ref, m_scr, l_scr, acc_scr = refs
    else:
        q_ref, k_ref, v_ref, o_ref, m_scr, l_scr, acc_scr = refs
        mask_ref = None

    qi = pl.program_id(3)
    ki = pl.program_id(4)
    nkv = pl.num_programs(4)

    @pl.when(ki == 0)
    def _init():
        m_scr[...] = jnp.full(m_scr.shape, -jnp.inf, dtype=m_scr.dtype)
        l_scr[...] = jnp.zeros(l_scr.shape, dtype=l_scr.dtype)
        acc_scr[...] = jnp.zeros(acc_scr.shape, dtype=acc_scr.dtype)

    def _compute():
        # Fold the softmax scale into q (tq*D elems, stays in input dtype)
        # instead of scaling the (tq, tkv) f32 scores every kv step.
        q = q_ref[...] * scale
        k = k_ref[...]
        # QK^T: contract last dims of both operands (no materialized K^T).
        s = lax.dot_general(q, k, (((1,), (1,)), ((), ())),
                            preferred_element_type=jnp.float32)   # (tq, tkv) f32
        if has_mask:
            s = s + mask_ref[...].astype(jnp.float32)
        if causal:
            tq, tkv = s.shape
            row = qi * block_q + lax.broadcasted_iota(jnp.int32, (tq, tkv), 0)
            col = ki * block_kv + lax.broadcasted_iota(jnp.int32, (tq, tkv), 1)
            s = jnp.where(col <= row, s, -1e9)

        m_prev = m_scr[...]
        m_new = jnp.maximum(m_prev, jnp.max(s, axis=-1, keepdims=True))
        alpha = jnp.exp(m_prev - m_new)
        # TODO(synk): on v6e/v7x a packed-bf16 exp path could relieve the EUP;
        # kept f32 here so the same kernel is correct on v5e.
        p = jnp.exp(s - m_new)
        l_scr[...] = alpha * l_scr[...] + jnp.sum(p, axis=-1, keepdims=True)
        acc_scr[...] = alpha * acc_scr[...] + lax.dot_general(
            p.astype(v_ref.dtype), v_ref[...], (((1,), (0,)), ((), ())),
            preferred_element_type=jnp.float32)
        m_scr[...] = m_new

    if causal:
        # Skip kv tiles that lie entirely above the causal diagonal.
        # TODO(synk): the K/V DMAs for skipped tiles are still issued; a
        # data-dependent kv trip count (scalar prefetch) would skip those too.
        pl.when(ki * block_kv <= qi * block_q + (block_q - 1))(_compute)
    else:
        _compute()

    @pl.when(ki == nkv - 1)
    def _finalize():
        l = l_scr[...]
        l = jnp.where(l == 0.0, 1.0, l)   # guard fully-masked rows
        o_ref[...] = (acc_scr[...] * pl.reciprocal(l, approx=True)
                      ).astype(o_ref.dtype)


def _pick_tile(size, pref):
    t = min(pref, size)
    while t > 8 and size % t != 0:
        t //= 2
    if size % t != 0:
        # TODO(synk): pad S to a block multiple instead of falling back to a
        # full-extent tile for awkward sequence lengths.
        t = size
    return t


def pallas_local_attention(q, k, v, attention_mask=None, position_ids=None,
                           *args, causal=False, block_q=256, block_kv=512,
                           **kwargs):
    """Flash SDPA.  q/k/v: [W, bs, S, Hl, D] -> same shape.

    attention_mask: optional additive mask, shape [bs, S, S] or [1, S, S].
    causal=True generates the causal mask in-kernel (no HBM mask stream) and
    skips kv tiles that are entirely masked.
    """
    # position_ids are gathered (like the PyTorch module) but this generic
    # local attention does not apply RoPE, so they are unused here.
    del position_ids, args, kwargs
    W, bs, S, Hl, D = q.shape
    scale = 1.0 / math.sqrt(D)
    if causal and attention_mask is not None:
        raise ValueError("pass attention_mask=None when causal=True")

    # Pad head_dim to a multiple of 128: lane-dense loads/stores, no wrapper
    # transposes.  Zero-padded columns drop out of QK^T; the zero output
    # columns are sliced off below.
    Dp = ((D + 127) // 128) * 128
    if Dp != D:
        pad = [(0, 0)] * 4 + [(0, Dp - D)]
        q, k, v = jnp.pad(q, pad), jnp.pad(k, pad), jnp.pad(v, pad)

    tq = _pick_tile(S, block_q)
    tkv = _pick_tile(S, block_kv)
    nq, nkv = S // tq, S // tkv
    grid = (W, bs, Hl, nq, nkv)   # kv innermost -> online-softmax reduction axis

    kernel = partial(_flash_attn_kernel, scale=scale, causal=causal,
                     has_mask=attention_mask is not None,
                     block_q=tq, block_kv=tkv)

    # Lane-dense layout: merge (Hl, Dp) -> Hl*Dp (free reshape of trailing
    # contiguous dims); the per-head Dp-wide slab is addressed from the grid.
    qf = q.reshape(W, bs, S, Hl * Dp)
    kf = k.reshape(W, bs, S, Hl * Dp)
    vf = v.reshape(W, bs, S, Hl * Dp)

    q_spec = pl.BlockSpec((None, None, tq, Dp),
                          lambda w, b, h, qi, ki: (w, b, qi, h))
    # TODO(synk): if the K/V DMA is still exposed after the tile enlargement,
    # add pipeline_mode=pl.Buffered(3) on kv_spec.
    kv_spec = pl.BlockSpec((None, None, tkv, Dp),
                           lambda w, b, h, qi, ki: (w, b, ki, h))
    out_spec = pl.BlockSpec((None, None, tq, Dp),
                            lambda w, b, h, qi, ki: (w, b, qi, h))

    in_specs = [q_spec, kv_spec, kv_spec]
    operands = [qf, kf, vf]
    if attention_mask is not None:
        mb = attention_mask.shape[0]
        assert attention_mask.shape in ((1, S, S), (bs, S, S))
        if mb == 1:   # batch-broadcast mask: never materialize bs copies
            mask_spec = pl.BlockSpec((None, tq, tkv),
                                     lambda w, b, h, qi, ki: (0, qi, ki))
        else:
            mask_spec = pl.BlockSpec((None, tq, tkv),
                                     lambda w, b, h, qi, ki: (b, qi, ki))
        in_specs.append(mask_spec)
        operands.append(attention_mask)

    scratch = [pltpu.VMEM((tq, 1), jnp.float32),    # running max
               pltpu.VMEM((tq, 1), jnp.float32),    # running denominator
               pltpu.VMEM((tq, Dp), jnp.float32)]   # running accumulator

    cparams = pltpu.CompilerParams(
        dimension_semantics=("parallel", "parallel", "parallel", "parallel",
                             "arbitrary"),
        vmem_limit_bytes=48 * 1024 * 1024)   # explicit budget (v7x: 64 MiB physical)

    out = pl.pallas_call(
        kernel,
        out_shape=jax.ShapeDtypeStruct((W, bs, S, Hl * Dp), q.dtype),
        grid_spec=pltpu.PrefetchScalarGridSpec(
            num_scalar_prefetch=0, grid=grid,
            in_specs=in_specs, out_specs=out_spec, scratch_shapes=scratch),
        compiler_params=cparams,
    )(*operands)

    out = out.reshape(W, bs, S, Hl, Dp)
    if Dp != D:
        out = out[..., :D]
    return out


# ---------------------------------------------------------------------------
# DistributedAttention forward (simulated sequence-parallel group)
# ---------------------------------------------------------------------------
class DistributedAttention:
    def __init__(self, local_attention, world_size, scatter_idx=2, gather_idx=1):
        self.local_attn = local_attention
        self.world_size = world_size
        self.scatter_idx = scatter_idx
        self.gather_idx = gather_idx

    def __call__(self, query, key, value, attention_mask, *args,
                 position_ids=None, **kwargs):
        W = self.world_size
        # _SeqAllToAll: scatter heads, gather sequence
        query_layer = single_all_to_all_sim(query, self.scatter_idx, self.gather_idx, W)
        key_layer = single_all_to_all_sim(key, self.scatter_idx, self.gather_idx, W)
        value_layer = single_all_to_all_sim(value, self.scatter_idx, self.gather_idx, W)

        if position_ids is not None:
            # all_gather_into_tensor (concat along dim 0) then split/cat along dim 1
            shape0 = position_ids.shape[1]
            gathered = jnp.concatenate([position_ids[r] for r in range(W)], axis=0)
            position_ids = jnp.concatenate(
                jnp.split(gathered, W, axis=0), axis=1)   # [shape0, W*local_seq]
            assert position_ids.shape[0] == shape0

        context_layer = self.local_attn(query_layer, key_layer, value_layer,
                                        attention_mask, *args,
                                        position_ids=position_ids, **kwargs)
        # _SeqAllToAll back: scatter sequence, gather heads
        output = single_all_to_all_sim(context_layer, self.gather_idx,
                                       self.scatter_idx, W)
        return output


# ---------------------------------------------------------------------------
# Reference (plain JAX, f32) for a correctness check
# ---------------------------------------------------------------------------
def reference_forward(q, k, v, mask):
    W, bs, ls, H, D = q.shape
    S = W * ls

    def to_global(x):   # [W, bs, ls, H, D] -> [bs, S, H, D]
        return jnp.transpose(x.astype(jnp.float32),
                             (1, 0, 2, 3, 4)).reshape(bs, S, H, D)

    qg, kg, vg = to_global(q), to_global(k), to_global(v)
    scale = 1.0 / math.sqrt(D)
    s = jnp.einsum('bqhd,bkhd->bhqk', qg, kg) * scale + mask[:, None, :, :]
    p = jax.nn.softmax(s, axis=-1)
    og = jnp.einsum('bhqk,bkhd->bqhd', p, vg)          # [bs, S, H, D]
    # redistribute output back to per-rank local sequence chunks
    return jnp.transpose(og.reshape(bs, W, ls, H, D), (1, 0, 2, 3, 4))


# ---------------------------------------------------------------------------
if __name__ == "__main__":
    W, bs, local_seq, H, D = 2, 2, 128, 4, 128
    S = W * local_seq
    key = jax.random.PRNGKey(0)
    kq, kk, kv_ = jax.random.split(key, 3)
    # bf16 Q/K/V: the kernel feeds the MXU in the input dtype (f32 accumulate).
    q = jax.random.normal(kq, (W, bs, local_seq, H, D), jnp.float32).astype(jnp.bfloat16)
    k = jax.random.normal(kk, (W, bs, local_seq, H, D), jnp.float32).astype(jnp.bfloat16)
    v = jax.random.normal(kv_, (W, bs, local_seq, H, D), jnp.float32).astype(jnp.bfloat16)

    # additive causal attention mask over the global sequence, batch-broadcast [1,S,S]
    causal_bool = jnp.tril(jnp.ones((S, S), dtype=bool))
    additive_mask = jnp.where(causal_bool, 0.0, -1e9).astype(jnp.float32)[None]

    position_ids = jnp.broadcast_to(
        jnp.arange(local_seq, dtype=jnp.int32)[None, :], (bs, local_seq))
    position_ids = jnp.stack(
        [position_ids + r * local_seq for r in range(W)], axis=0)   # [W, bs, ls]

    ref = reference_forward(q, k, v, jnp.broadcast_to(additive_mask, (bs, S, S)))

    # 1) causal path: mask generated in-kernel, fully-masked kv tiles skipped
    dist_attn_causal = DistributedAttention(
        partial(pallas_local_attention, causal=True),
        world_size=W, scatter_idx=2, gather_idx=1)
    out_causal = jax.block_until_ready(
        dist_attn_causal(q, k, v, None, position_ids=position_ids))
    np.testing.assert_allclose(np.asarray(out_causal, dtype=np.float32),
                               np.asarray(ref), rtol=2e-2, atol=2e-2)

    # 2) explicit additive-mask path (batch-broadcast [1,S,S] mask streamed in tiles)
    dist_attn_mask = DistributedAttention(
        pallas_local_attention, world_size=W, scatter_idx=2, gather_idx=1)
    out_mask = jax.block_until_ready(
        dist_attn_mask(q, k, v, additive_mask, position_ids=position_ids))
    np.testing.assert_allclose(np.asarray(out_mask, dtype=np.float32),
                               np.asarray(ref), rtol=2e-2, atol=2e-2)

    print("KERNEL_OK")
</pallas_src>

<mosaic_0001>
module attributes {stable_mosaic.version = 11 : i64} {
  func.func @_flash_attn_kernel(%arg0: i32, %arg1: i32, %arg2: i32, %arg3: i32, %arg4: i32, %arg5: memref<1x1x256x128xbf16, #tpu.memory_space<vmem>>, %arg6: memref<1x1x256x128xbf16, #tpu.memory_space<vmem>>, %arg7: memref<1x1x256x128xbf16, #tpu.memory_space<vmem>>, %arg8: memref<1x1x256x128xbf16, #tpu.memory_space<vmem>>, %arg9: memref<256x1xf32, #tpu.memory_space<vmem>>, %arg10: memref<256x1xf32, #tpu.memory_space<vmem>>, %arg11: memref<256x128xf32, #tpu.memory_space<vmem>>) attributes {dimension_semantics = [#tpu.dimension_semantics<parallel>, #tpu.dimension_semantics<parallel>, #tpu.dimension_semantics<parallel>, #tpu.dimension_semantics<parallel>, #tpu.dimension_semantics<arbitrary>], iteration_bounds = array<i64: 2, 2, 2, 1, 1>, scalar_prefetch = 0 : i64, scratch_operands = 3 : i64, tpu.core_type = #tpu.core_type<tc>, window_params = [{transform_indices = @transform_0, window_bounds = array<i64: 1, 1, 256, 128>}, {transform_indices = @transform_1, window_bounds = array<i64: 1, 1, 256, 128>}, {transform_indices = @transform_2, window_bounds = array<i64: 1, 1, 256, 128>}, {transform_indices = @transform_3, window_bounds = array<i64: 1, 1, 256, 128>}]} {
    %c0_i32 = arith.constant 0 : i32
    %0 = arith.cmpi eq, %arg4, %c0_i32 : i32
    %1 = arith.extui %0 : i1 to i32
    %c0_i32_0 = arith.constant 0 : i32
    %2 = arith.cmpi ne, %1, %c0_i32_0 : i32
    scf.if %2 {
      %cst = arith.constant 0xFF800000 : f32
      %12 = vector.broadcast %cst : f32 to vector<256x1xf32>
      %c0 = arith.constant 0 : index
      %c0_5 = arith.constant 0 : index
      %13 = vector.load %arg9[%c0, %c0_5] : memref<256x1xf32, #tpu.memory_space<vmem>>, vector<256x1xf32>
      tpu.vector_store %arg9[%c0, %c0_5], %12 {strides = array<i32>} : memref<256x1xf32, #tpu.memory_space<vmem>>, vector<256x1xf32>,
      %cst_6 = arith.constant 0.000000e+00 : f32
      %14 = vector.broadcast %cst_6 : f32 to vector<256x1xf32>
      %c0_7 = arith.constant 0 : index
      %c0_8 = arith.constant 0 : index
      %15 = vector.load %arg10[%c0_7, %c0_8] : memref<256x1xf32, #tpu.memory_space<vmem>>, vector<256x1xf32>
      tpu.vector_store %arg10[%c0_7, %c0_8], %14 {strides = array<i32>} : memref<256x1xf32, #tpu.memory_space<vmem>>, vector<256x1xf32>,
      %cst_9 = arith.constant 0.000000e+00 : f32
      %16 = vector.broadcast %cst_9 : f32 to vector<256x128xf32>
      %c0_10 = arith.constant 0 : index
      %c0_11 = arith.constant 0 : index
      %17 = vector.load %arg11[%c0_10, %c0_11] : memref<256x128xf32, #tpu.memory_space<vmem>>, vector<256x128xf32>
      tpu.vector_store %arg11[%c0_10, %c0_11], %16 {strides = array<i32>} : memref<256x128xf32, #tpu.memory_space<vmem>>, vector<256x128xf32>,
    } else {
    }
    %c256_i32 = arith.constant 256 : i32
    %3 = arith.muli %arg4, %c256_i32 : i32
    %c256_i32_1 = arith.constant 256 : i32
    %4 = arith.muli %arg3, %c256_i32_1 : i32
    %c255_i32 = arith.constant 255 : i32
    %5 = arith.addi %4, %c255_i32 : i32
    %6 = arith.cmpi sle, %3, %5 : i32
    %7 = arith.extui %6 : i1 to i32
    %c0_i32_2 = arith.constant 0 : i32
    %8 = arith.cmpi ne, %7, %c0_i32_2 : i32
    scf.if %8 {
      %c0 = arith.constant 0 : index
      %c0_5 = arith.constant 0 : index
      %c0_6 = arith.constant 0 : index
      %c0_7 = arith.constant 0 : index
      %12 = vector.load %arg5[%c0, %c0_5, %c0_6, %c0_7] : memref<1x1x256x128xbf16, #tpu.memory_space<vmem>>, vector<1x1x256x128xbf16>
      %13 = vector.shape_cast %12 : vector<1x1x256x128xbf16> to vector<256x128xbf16>
      %cst = arith.constant 8.837890e-02 : bf16
      %14 = vector.broadcast %cst : bf16 to vector<256x128xbf16>
      %15 = arith.mulf %13, %14 : vector<256x128xbf16>
      %c0_8 = arith.constant 0 : index
      %c0_9 = arith.constant 0 : index
      %c0_10 = arith.constant 0 : index
      %c0_11 = arith.constant 0 : index
      %16 = vector.load %arg6[%c0_8, %c0_9, %c0_10, %c0_11] : memref<1x1x256x128xbf16, #tpu.memory_space<vmem>>, vector<1x1x256x128xbf16>
      %17 = vector.shape_cast %16 : vector<1x1x256x128xbf16> to vector<256x128xbf16>
      %cst_12 = arith.constant dense<0.000000e+00> : vector<256x256xf32>
      %18 = tpu.matmul %15, %17, %cst_12 {dimension_numbers = #tpu.dot_dimension_numbers<[1], [1], [0], [0], [0, 0, 1, 0], [], []>} : vector<256x128xbf16>, vector<256x128xbf16>, vector<256x256xf32> -> vector<256x256xf32>
      %c256_i32_13 = arith.constant 256 : i32
      %19 = arith.muli %arg3, %c256_i32_13 : i32
      %20 = tpu.iota {dimensions = array<i32: 0>} : vector<256x256xi32>
      %21 = vector.broadcast %19 : i32 to vector<256x256xi32>
      %22 = arith.addi %21, %20 : vector<256x256xi32>
      %c256_i32_14 = arith.constant 256 : i32
      %23 = arith.muli %arg4, %c256_i32_14 : i32
      %24 = tpu.iota {dimensions = array<i32: 1>} : vector<256x256xi32>
      %25 = vector.broadcast %23 : i32 to vector<256x256xi32>
      %26 = arith.addi %25, %24 : vector<256x256xi32>
      %27 = arith.cmpi sle, %26, %22 : vector<256x256xi32>
      %cst_15 = arith.constant -1.000000e+09 : f32
      %28 = vector.broadcast %cst_15 : f32 to vector<256x256xf32>
      %29 = arith.select %27, %18, %28 : vector<256x256xi1>, vector<256x256xf32>
      %c0_16 = arith.constant 0 : index
      %c0_17 = arith.constant 0 : index
      %30 = vector.load %arg9[%c0_16, %c0_17] : memref<256x1xf32, #tpu.memory_space<vmem>>, vector<256x1xf32>
      %cst_18 = arith.constant dense<0xFF800000> : vector<256xf32>
      %31 = vector.multi_reduction <maximumf>, %29, %cst_18 [1] : vector<256x256xf32> to vector<256xf32>
      %32 = vector.shape_cast %31 : vector<256xf32> to vector<256x1xf32>
      %33 = arith.maximumf %30, %32 : vector<256x1xf32>
      %34 = arith.subf %30, %33 : vector<256x1xf32>
      %35 = math.exp %34 : vector<256x1xf32>
      %36 = vector.broadcast %33 : vector<256x1xf32> to vector<256x256xf32>
      %37 = arith.subf %29, %36 : vector<256x256xf32>
      %38 = math.exp %37 : vector<256x256xf32>
      %c0_19 = arith.constant 0 : index
      %c0_20 = arith.constant 0 : index
      %39 = vector.load %arg10[%c0_19, %c0_20] : memref<256x1xf32, #tpu.memory_space<vmem>>, vector<256x1xf32>
      %40 = arith.mulf %35, %39 : vector<256x1xf32>
      %cst_21 = arith.constant dense<0.000000e+00> : vector<256xf32>
      %41 = vector.multi_reduction <add>, %38, %cst_21 [1] : vector<256x256xf32> to vector<256xf32>
      %42 = vector.shape_cast %41 : vector<256xf32> to vector<256x1xf32>
      %43 = arith.addf %40, %42 : vector<256x1xf32>
      %c0_22 = arith.constant 0 : index
      %c0_23 = arith.constant 0 : index
      %44 = vector.load %arg10[%c0_22, %c0_23] : memref<256x1xf32, #tpu.memory_space<vmem>>, vector<256x1xf32>
      tpu.vector_store %arg10[%c0_22, %c0_23], %43 {strides = array<i32>} : memref<256x1xf32, #tpu.memory_space<vmem>>, vector<256x1xf32>,
      %c0_24 = arith.constant 0 : index
      %c0_25 = arith.constant 0 : index
      %45 = vector.load %arg11[%c0_24, %c0_25] : memref<256x128xf32, #tpu.memory_space<vmem>>, vector<256x128xf32>
      %46 = vector.broadcast %35 : vector<256x1xf32> to vector<256x128xf32>
      %47 = arith.mulf %46, %45 : vector<256x128xf32>
      %48 = arith.truncf %38 : vector<256x256xf32> to vector<256x256xbf16>
      %c0_26 = arith.constant 0 : index
      %c0_27 = arith.constant 0 : index
      %c0_28 = arith.constant 0 : index
      %c0_29 = arith.constant 0 : index
      %49 = vector.load %arg7[%c0_26, %c0_27, %c0_28, %c0_29] : memref<1x1x256x128xbf16, #tpu.memory_space<vmem>>, vector<1x1x256x128xbf16>
      %50 = vector.shape_cast %49 : vector<1x1x256x128xbf16> to vector<256x128xbf16>
      %cst_30 = arith.constant dense<0.000000e+00> : vector<256x128xf32>
      %51 = tpu.matmul %48, %50, %cst_30 {dimension_numbers = #tpu.dot_dimension_numbers<[1], [0], [0], [1], [0, 0, 1, 1], [], []>} : vector<256x256xbf16>, vector<256x128xbf16>, vector<256x128xf32> -> vector<256x128xf32>
      %52 = arith.addf %47, %51 : vector<256x128xf32>
      %c0_31 = arith.constant 0 : index
      %c0_32 = arith.constant 0 : index
      %53 = vector.load %arg11[%c0_31, %c0_32] : memref<256x128xf32, #tpu.memory_space<vmem>>, vector<256x128xf32>
      tpu.vector_store %arg11[%c0_31, %c0_32], %52 {strides = array<i32>} : memref<256x128xf32, #tpu.memory_space<vmem>>, vector<256x128xf32>,
      %c0_33 = arith.constant 0 : index
      %c0_34 = arith.constant 0 : index
      %54 = vector.load %arg9[%c0_33, %c0_34] : memref<256x1xf32, #tpu.memory_space<vmem>>, vector<256x1xf32>
      tpu.vector_store %arg9[%c0_33, %c0_34], %33 {strides = array<i32>} : memref<256x1xf32, #tpu.memory_space<vmem>>, vector<256x1xf32>,
    } else {
    }
    %c0_i32_3 = arith.constant 0 : i32
    %9 = arith.cmpi eq, %arg4, %c0_i32_3 : i32
    %10 = arith.extui %9 : i1 to i32
    %c0_i32_4 = arith.constant 0 : i32
    %11 = arith.cmpi ne, %10, %c0_i32_4 : i32
    scf.if %11 {
      %c0 = arith.constant 0 : index
      %c0_5 = arith.constant 0 : index
      %12 = vector.load %arg10[%c0, %c0_5] : memref<256x1xf32, #tpu.memory_space<vmem>>, vector<256x1xf32>
      %cst = arith.constant 0.000000e+00 : f32
      %13 = vector.broadcast %cst : f32 to vector<256x1xf32>
      %14 = arith.cmpf oeq, %12, %13 : vector<256x1xf32>
      %cst_6 = arith.constant 1.000000e+00 : f32
      %15 = vector.broadcast %cst_6 : f32 to vector<256x1xf32>
      %16 = arith.select %14, %15, %12 : vector<256x1xi1>, vector<256x1xf32>
      %c0_7 = arith.constant 0 : index
      %c0_8 = arith.constant 0 : index
      %17 = vector.load %arg11[%c0_7, %c0_8] : memref<256x128xf32, #tpu.memory_space<vmem>>, vector<256x128xf32>
      %18 = tpu.reciprocal %16 {approx = true} : vector<256x1xf32> -> vector<256x1xf32>
      %19 = vector.broadcast %18 : vector<256x1xf32> to vector<256x128xf32>
      %20 = arith.mulf %17, %19 : vector<256x128xf32>
      %21 = arith.truncf %20 : vector<256x128xf32> to vector<256x128xbf16>
      %c0_9 = arith.constant 0 : index
      %c0_10 = arith.constant 0 : index
      %c0_11 = arith.constant 0 : index
      %c0_12 = arith.constant 0 : index
      %22 = vector.load %arg8[%c0_9, %c0_10, %c0_11, %c0_12] : memref<1x1x256x128xbf16, #tpu.memory_space<vmem>>, vector<1x1x256x128xbf16>
      %23 = vector.shape_cast %22 : vector<1x1x256x128xbf16> to vector<256x128xbf16>
      %24 = vector.shape_cast %21 : vector<256x128xbf16> to vector<1x1x256x128xbf16>
      tpu.vector_store %arg8[%c0_9, %c0_10, %c0_11, %c0_12], %24 {strides = array<i32>} : memref<1x1x256x128xbf16, #tpu.memory_space<vmem>>, vector<1x1x256x128xbf16>,
    } else {
    }
    return
  }
  func.func @transform_0(%arg0: i32, %arg1: i32, %arg2: i32, %arg3: i32, %arg4: i32) -> (i32, i32, i32, i32) {
    %c0_i32 = arith.constant 0 : i32
    return %arg0, %arg1, %arg3, %arg2 : i32, i32, i32, i32
  }
  func.func @transform_1(%arg0: i32, %arg1: i32, %arg2: i32, %arg3: i32, %arg4: i32) -> (i32, i32, i32, i32) {
    %c0_i32 = arith.constant 0 : i32
    return %arg0, %arg1, %arg4, %arg2 : i32, i32, i32, i32
  }
  func.func @transform_2(%arg0: i32, %arg1: i32, %arg2: i32, %arg3: i32, %arg4: i32) -> (i32, i32, i32, i32) {
    %c0_i32 = arith.constant 0 : i32
    return %arg0, %arg1, %arg4, %arg2 : i32, i32, i32, i32
  }
  func.func @transform_3(%arg0: i32, %arg1: i32, %arg2: i32, %arg3: i32, %arg4: i32) -> (i32, i32, i32, i32) {
    %c0_i32 = arith.constant 0 : i32
    return %arg0, %arg1, %arg3, %arg2 : i32, i32, i32, i32
  }
}

</mosaic_0001>

<llo_original>
// kernel: tpu_custom_call.1
$region0: #{tpu_custom_call.1}
  #allocation0 [shape = 'u32[]', space=smem, size = 0x4, offset = 0x4, fixed_abs, tag = 'smem constant byte address 0x4 - core index']
  #allocation1 [shape = 'u32[144,128]{1,0:T(1,128)}', space=vmem, size = 0x12000, scoped, tag = 'internal scratch']
  #allocation2 [shape = 'f32[256,1]{1,0:T(8,128)}', space=vmem, size = 0x20000, scoped, tag = 'scratch operand']
  #allocation3 [shape = 'f32[256,1]{1,0:T(8,128)}', space=vmem, size = 0x20000, scoped, tag = 'scratch operand']
  #allocation4 [shape = 'f32[256,128]{1,0:T(8,128)}', space=vmem, size = 0x20000, scoped, tag = 'scratch operand']
  %s0 = inlined_call_operand.hbm [shape: bf16[2,2,256,256], index: 0, kind: input, shape index: {}]
  %s1 = inlined_call_operand.hbm [shape: bf16[2,2,256,256], index: 1, kind: input, shape index: {}]
  %s2 = inlined_call_operand.hbm [shape: bf16[2,2,256,256], index: 2, kind: input, shape index: {}]
  %s3 = inlined_call_operand.hbm [shape: bf16[2,2,256,256], index: 3, kind: output, shape index: {}]
  %s4 = sld [smem:[#allocation0]]
  $region69: #{tpu_custom_call.1} parent=0
    _
  %s6 = ssub.s32 1, %s4
  %s7 = scalar_select 0, %s6, %s4
  $region1: #{tpu_custom_call.1} parent=0
    #allocation5 [shape = 'u8[131072]{0}', space=vmem, size = 0x20000, scoped, tag = 'input window, operand 0']
    #allocation6 [shape = 's32[2]{0}', space=sflag, size = 0x8, scoped, tag = 'scoped memory for tpu_custom_call.1']
    #allocation7 [shape = 's32[2]{0}', space=sflag, size = 0x8, scoped, tag = 'scoped memory for tpu_custom_call.1']
    #allocation8 [shape = 'u8[131072]{0}', space=vmem, size = 0x20000, scoped, tag = 'input window, operand 1']
    #allocation9 [shape = 's32[2]{0}', space=sflag, size = 0x8, scoped, tag = 'scoped memory for tpu_custom_call.1']
    #allocation10 [shape = 'u8[131072]{0}', space=vmem, size = 0x20000, scoped, tag = 'input window, operand 2']
    #allocation11 [shape = 'u8[131072]{0}', space=vmem, size = 0x20000, scoped, tag = 'output window, operand 0']
    %8 = vsyncpa [#allocation6], 0
    %s9 = scalar_lea.sflag [#allocation6], 1
    %10 = vsyncpa %s9, 0
    %11 = vsyncpa [#allocation9], 0
    %s12 = scalar_lea.sflag [#allocation9], 1
    %13 = vsyncpa %s12, 0
    %14 = vsyncpa [#allocation7], 0
    %s15 = scalar_lea.sflag [#allocation7], 1
    %16 = vsyncpa %s15, 0
    loop: start=0, step=1, limit=10
    $region2: #{tpu_custom_call.1} parent=1 // loop_pre_header
      _
    $region3: #{tpu_custom_call.1} parent=1 // loop_header
      %s18 = sphi 0, %s22
      %p19 = scmp.ge.s32.totalorder %s18, 10
      %s25 = sphi 0, %s58
      %s26 = sphi 0, %s54
      %s27 = sphi 0, %s50
      %s28 = sphi 0, %s46
      %s29 = sphi 0, %s42
      %s30 = sphi 0, %s25
      %s31 = sphi 0, %s26
      %s32 = sphi 0, %s27
      %s33 = sphi 0, %s28
      %s34 = sphi 0, %s29
      %s35 = sphi 0, %s30
      %s36 = sphi 0, %s31
      %s37 = sphi 0, %s32
      %s38 = sphi 0, %s33
      %s39 = sphi 0, %s34
      %s67 = sphi 0, %s69
      %s70 = sphi 0, %s67
      %s71 = sphi 0, %s70
      %s87 = sphi 0, %s71
      %s99 = sphi 0, %s101
      %s102 = sphi 0, %s99
      %s103 = sphi 0, %s102
      %s119 = sphi 0, %s103
      %s131 = sphi 0, %s133
      %s134 = sphi 0, %s131
      %s135 = sphi 0, %s134
      %s151 = sphi 0, %s135
      %s163 = sphi 0, %s165
      %s166 = sphi 0, %s163
      %s167 = sphi 0, %s166
      %s183 = sphi 0, %s167
    $region4: #{tpu_custom_call.1} parent=1 // loop_header_branch
      %21 = sbr.rel (%p19) target = $region8
    $region5: #{tpu_custom_call.1} parent=1 // loop_body
      %s23 = ssub.s32 %s18, 1
      %s24 = ssub.s32 %s18, 2
      %s40 = sadd.s32 1, %s29
      %p41 = scmp.ge.s32.totalorder %s40, 1
      %s42 = scalar_select %p41, 0, %s40
      %s43 = sadd.s32 1, %s28
      %s44 = scalar_select %p41, %s43, %s28
      %p45 = scmp.ge.s32.totalorder %s44, 1
      %s46 = scalar_select %p45, 0, %s44
      %s47 = sadd.s32 1, %s27
      %s48 = scalar_select %p45, %s47, %s27
      %p49 = scmp.ge.s32.totalorder %s48, 2
      %s50 = scalar_select %p49, 0, %s48
      %s51 = sadd.s32 1, %s26
      %s52 = scalar_select %p49, %s51, %s26
      %p53 = scmp.ge.s32.totalorder %s52, 2
      %s54 = scalar_select %p53, 0, %s52
      %s55 = sadd.s32 1, %s25
      %s56 = scalar_select %p53, %s55, %s25
      %p57 = scmp.ge.s32.totalorder %s56, 2
      %s58 = scalar_select %p57, 0, %s56
      %s59 = ssub.s32 %s25, %s58
      %s60 = ssub.s32 %s26, %s54
      %s61 = sor.u32 %s59, %s60
      %s62 = ssub.s32 %s28, %s46
      %s63 = sor.u32 %s61, %s62
      %s64 = ssub.s32 %s27, %s50
      %s65 = sor.u32 %s63, %s64
      %p66 = scmp.eq.s32.totalorder %s65, 0
      %s68 = sadd.s32 %s67, 1
      %s69 = scalar_select %p66, %s67, %s68
      %p72 = pneg %p66
      %p73 = scmp.eq.s32.totalorder %s18, 7
      %p74 = por %p72, %p73
      %p75 = scmp.ne.s32.totalorder %s67, %s70
      %p76 = scmp.eq.s32.totalorder %s18, 0
      %p77 = por %p75, %p76
      %p78 = scmp.ne.s32.totalorder %s67, %s70
      %p79 = scmp.eq.s32.totalorder %s23, 7
      %p80 = por %p78, %p79
      %p81 = scmp.ne.s32.totalorder %s70, %s71
      %p82 = scmp.eq.s32.totalorder %s23, 0
      %p83 = por %p81, %p82
      %p84 = scmp.ne.s32.totalorder %s70, %s71
      %p85 = scmp.eq.s32.totalorder %s24, 7
      %p86 = por %p84, %p85
      %p88 = scmp.ne.s32.totalorder %s71, %s87
      %p89 = scmp.eq.s32.totalorder %s24, 0
      %p90 = por %p88, %p89
      %s91 = ssub.s32 %s25, %s58
      %s92 = ssub.s32 %s26, %s54
      %s93 = sor.u32 %s91, %s92
      %s94 = ssub.s32 %s29, %s42
      %s95 = sor.u32 %s93, %s94
      %s96 = ssub.s32 %s27, %s50
      %s97 = sor.u32 %s95, %s96
      %p98 = scmp.eq.s32.totalorder %s97, 0
      %s100 = sadd.s32 %s99, 1
      %s101 = scalar_select %p98, %s99, %s100
      %p104 = pneg %p98
      %p105 = scmp.eq.s32.totalorder %s18, 7
      %p106 = por %p104, %p105
      %p107 = scmp.ne.s32.totalorder %s99, %s102
      %p108 = scmp.eq.s32.totalorder %s18, 0
      %p109 = por %p107, %p108
      %p110 = scmp.ne.s32.totalorder %s99, %s102
      %p111 = scmp.eq.s32.totalorder %s23, 7
      %p112 = por %p110, %p111
      %p113 = scmp.ne.s32.totalorder %s102, %s103
      %p114 = scmp.eq.s32.totalorder %s23, 0
      %p115 = por %p113, %p114
      %p116 = scmp.ne.s32.totalorder %s102, %s103
      %p117 = scmp.eq.s32.totalorder %s24, 7
      %p118 = por %p116, %p117
      %p120 = scmp.ne.s32.totalorder %s103, %s119
      %p121 = scmp.eq.s32.totalorder %s24, 0
      %p122 = por %p120, %p121
      %s123 = ssub.s32 %s25, %s58
      %s124 = ssub.s32 %s26, %s54
      %s125 = sor.u32 %s123, %s124
      %s126 = ssub.s32 %s29, %s42
      %s127 = sor.u32 %s125, %s126
      %s128 = ssub.s32 %s27, %s50
      %s129 = sor.u32 %s127, %s128
      %p130 = scmp.eq.s32.totalorder %s129, 0
      %s132 = sadd.s32 %s131, 1
      %s133 = scalar_select %p130, %s131, %s132
      %p136 = pneg %p130
      %p137 = scmp.eq.s32.totalorder %s18, 7
      %p138 = por %p136, %p137
      %p139 = scmp.ne.s32.totalorder %s131, %s134
      %p140 = scmp.eq.s32.totalorder %s18, 0
      %p141 = por %p139, %p140
      %p142 = scmp.ne.s32.totalorder %s131, %s134
      %p143 = scmp.eq.s32.totalorder %s23, 7
      %p144 = por %p142, %p143
      %p145 = scmp.ne.s32.totalorder %s134, %s135
      %p146 = scmp.eq.s32.totalorder %s23, 0
      %p147 = por %p145, %p146
      %p148 = scmp.ne.s32.totalorder %s134, %s135
      %p149 = scmp.eq.s32.totalorder %s24, 7
      %p150 = por %p148, %p149
      %p152 = scmp.ne.s32.totalorder %s135, %s151
      %p153 = scmp.eq.s32.totalorder %s24, 0
      %p154 = por %p152, %p153
      %s155 = ssub.s32 %s25, %s58
      %s156 = ssub.s32 %s26, %s54
      %s157 = sor.u32 %s155, %s156
      %s158 = ssub.s32 %s28, %s46
      %s159 = sor.u32 %s157, %s158
      %s160 = ssub.s32 %s27, %s50
      %s161 = sor.u32 %s159, %s160
      %p162 = scmp.eq.s32.totalorder %s161, 0
      %s164 = sadd.s32 %s163, 1
      %s165 = scalar_select %p162, %s163, %s164
      %p168 = pneg %p162
      %p169 = scmp.eq.s32.totalorder %s18, 7
      %p170 = por %p168, %p169
      %p171 = scmp.ne.s32.totalorder %s163, %s166
      %p172 = scmp.eq.s32.totalorder %s18, 0
      %p173 = por %p171, %p172
      %p174 = scmp.ne.s32.totalorder %s163, %s166
      %p175 = scmp.eq.s32.totalorder %s23, 7
      %p176 = por %p174, %p175
      %p177 = scmp.ne.s32.totalorder %s166, %s167
      %p178 = scmp.eq.s32.totalorder %s23, 0
      %p179 = por %p177, %p178
      %p180 = scmp.ne.s32.totalorder %s166, %s167
      %p181 = scmp.eq.s32.totalorder %s24, 7
      %p182 = por %p180, %p181
      %p184 = scmp.ne.s32.totalorder %s167, %s183
      %p185 = scmp.eq.s32.totalorder %s24, 0
      %p186 = por %p184, %p185
      %p187 = scmp.le.s32.totalorder 1, %s18
      %p188 = scmp.lt.s32.totalorder %s18, 9
      %p189 = pnand %p187, %p188
      %p190 = pneg %p189
      // Predicated region
      $region9: #{tpu_custom_call.1} parent=5 // pred_check
        _
      $region10: #{tpu_custom_call.1} parent=5 // pred_check_branch
        %192 = sbr.rel (%p189) target = $region12
      $region11: #{tpu_custom_call.1} parent=5 // pred_region
        %s193 = ssub.s32 %s18, 1
      $region12: #{tpu_custom_call.1} parent=5 // pred_fallthru
        _
      %p194 = scmp.lt.s32.totalorder %s18, 8
      // Predicated region
      $region13: #{tpu_custom_call.1} parent=5 // pred_check
        %p195 = pneg %p194
      $region14: #{tpu_custom_call.1} parent=5 // pred_check_branch
        %197 = sbr.rel (%p195) target = $region16
      $region15: #{tpu_custom_call.1} parent=5 // pred_region
        // Predicated region
        $region17: #{tpu_custom_call.1} parent=15 // pred_check
          %p198 = pneg %p77
        $region18: #{tpu_custom_call.1} parent=15 // pred_check_branch
          %200 = sbr.rel (%p198) target = $region20
        $region19: #{tpu_custom_call.1} parent=15 // pred_region
          %s201 = sand.u32 %s67, 1
          %s202 = scalar_lea.sflag [#allocation6], %s201
          %s203 = sand.u32 %s67, 1
          %s204 = smul.addr %s203, 128
          %s205 = scalar_lea.vmem [#allocation5], %s204
          %s206 = smul.u32 32, %s28
          %s208 = ssub.s32 2048, 2048
          %209 = vsyncadd %s202, %s208
          %s210 = smul.addr %s206, 2
          %s211 = sadd.s32 %s27, %s210
          %s212 = smul.addr %s26, 64
          %s213 = sadd.s32 %s211, %s212
          %s214 = smul.addr %s25, 128
          %s215 = sadd.s32 %s213, %s214
          %s216 = smul.addr %s215, 64
          %s217 = scalar_lea.hbm %s0, %s216
          %s218 = sshll.u32 %s205, 4
          %s219 = int_to_ptr.vmem [resolvable:$true] %s218
          %224 = dma.hbm_to_vmem [thread:$0]  %s217, 2048, %s219, %s202, 128, 64, 4
        $region20: #{tpu_custom_call.1} parent=15 // pred_fallthru
          _
        // Predicated region
        $region21: #{tpu_custom_call.1} parent=15 // pred_check
          %p225 = pneg %p109
        $region22: #{tpu_custom_call.1} parent=15 // pred_check_branch
          %227 = sbr.rel (%p225) target = $region24
        $region23: #{tpu_custom_call.1} parent=15 // pred_region
          %s228 = sand.u32 %s18, 1
          %s229 = scalar_lea.sflag [#allocation9], %s228
          %s230 = sand.u32 %s99, 1
          %s231 = smul.addr %s230, 128
          %s232 = scalar_lea.vmem [#allocation8], %s231
          %s233 = smul.u32 32, %s29
          %s235 = ssub.s32 2048, 2048
          %236 = vsyncadd %s229, %s235
          %s237 = smul.addr %s233, 2
          %s238 = sadd.s32 %s27, %s237
          %s239 = smul.addr %s26, 64
          %s240 = sadd.s32 %s238, %s239
          %s241 = smul.addr %s25, 128
          %s242 = sadd.s32 %s240, %s241
          %s243 = smul.addr %s242, 64
          %s244 = scalar_lea.hbm %s1, %s243
          %s245 = sshll.u32 %s232, 4
          %s246 = int_to_ptr.vmem [resolvable:$true] %s245
          %251 = dma.hbm_to_vmem [thread:$0]  %s244, 2048, %s246, %s229, 128, 64, 4
        $region24: #{tpu_custom_call.1} parent=15 // pred_fallthru
          _
        // Predicated region
        $region25: #{tpu_custom_call.1} parent=15 // pred_check
          %p252 = pneg %p141
        $region26: #{tpu_custom_call.1} parent=15 // pred_check_branch
          %254 = sbr.rel (%p252) target = $region28
        $region27: #{tpu_custom_call.1} parent=15 // pred_region
          %s255 = sand.u32 %s18, 1
          %s256 = scalar_lea.sflag [#allocation9], %s255
          %s257 = sand.u32 %s131, 1
          %s258 = smul.addr %s257, 128
          %s259 = scalar_lea.vmem [#allocation10], %s258
          %s260 = smul.u32 32, %s29
          %s262 = ssub.s32 2048, 2048
          %263 = vsyncadd %s256, %s262
          %s264 = smul.addr %s260, 2
          %s265 = sadd.s32 %s27, %s264
          %s266 = smul.addr %s26, 64
          %s267 = sadd.s32 %s265, %s266
          %s268 = smul.addr %s25, 128
          %s269 = sadd.s32 %s267, %s268
          %s270 = smul.addr %s269, 64
          %s271 = scalar_lea.hbm %s2, %s270
          %s272 = sshll.u32 %s259, 4
          %s273 = int_to_ptr.vmem [resolvable:$true] %s272
          %278 = dma.hbm_to_vmem [thread:$0]  %s271, 2048, %s273, %s256, 128, 64, 4
        $region28: #{tpu_custom_call.1} parent=15 // pred_fallthru
          _
      $region16: #{tpu_custom_call.1} parent=5 // pred_fallthru
        _
      %p279 = scmp.le.s32.totalorder 1, %s18
      %p280 = scmp.lt.s32.totalorder %s18, 9
      %p281 = pnand %p279, %p280
      %p282 = pneg %p281
      // Predicated region
      $region29: #{tpu_custom_call.1} parent=5 // pred_check
        _
      $region30: #{tpu_custom_call.1} parent=5 // pred_check_branch
        %284 = sbr.rel (%p281) target = $region32
      $region31: #{tpu_custom_call.1} parent=5 // pred_region
        %s285 = ssub.s32 %s18, 1
        %s286 = sand.u32 %s70, 1
        %s287 = scalar_lea.sflag [#allocation6], %s286
        %s288 = sand.u32 %s70, 1
        %s289 = smul.addr %s288, 128
        %s290 = scalar_lea.vmem [#allocation5], %s289
        // Predicated region
        $region33: #{tpu_custom_call.1} parent=31 // pred_check
          %p291 = pneg %p83
        $region34: #{tpu_custom_call.1} parent=31 // pred_check_branch
          %293 = sbr.rel (%p291) target = $region36
        $region35: #{tpu_custom_call.1} parent=31 // pred_region
          %294 = dma.done %s287, 2048
        $region36: #{tpu_custom_call.1} parent=31 // pred_fallthru
          _
        %s295 = sand.u32 %s23, 1
        %s296 = scalar_lea.sflag [#allocation9], %s295
        %s297 = sand.u32 %s102, 1
        %s298 = smul.addr %s297, 128
        %s299 = scalar_lea.vmem [#allocation8], %s298
        // Predicated region
        $region37: #{tpu_custom_call.1} parent=31 // pred_check
          %p300 = pneg %p115
        $region38: #{tpu_custom_call.1} parent=31 // pred_check_branch
          %302 = sbr.rel (%p300) target = $region40
        $region39: #{tpu_custom_call.1} parent=31 // pred_region
          %303 = dma.done %s296, 2048
        $region40: #{tpu_custom_call.1} parent=31 // pred_fallthru
          _
        %s304 = sand.u32 %s23, 1
        %s305 = scalar_lea.sflag [#allocation9], %s304
        %s306 = sand.u32 %s134, 1
        %s307 = smul.addr %s306, 128
        %s308 = scalar_lea.vmem [#allocation10], %s307
        // Predicated region
        $region41: #{tpu_custom_call.1} parent=31 // pred_check
          %p309 = pneg %p147
        $region42: #{tpu_custom_call.1} parent=31 // pred_check_branch
          %311 = sbr.rel (%p309) target = $region44
        $region43: #{tpu_custom_call.1} parent=31 // pred_region
          %312 = dma.done %s305, 2048
        $region44: #{tpu_custom_call.1} parent=31 // pred_fallthru
          _
        %s313 = sand.u32 %s70, 1
        %s314 = scalar_lea.sflag [#allocation6], %s313
        %s315 = sand.u32 %s70, 1
        %s316 = smul.addr %s315, 128
        %s317 = scalar_lea.vmem [#allocation5], %s316
        %p318 = pneg %p83
        %p319 = pneg %p80
        %s320 = sand.u32 %s23, 1
        %s321 = scalar_lea.sflag [#allocation9], %s320
        %s322 = sand.u32 %s102, 1
        %s323 = smul.addr %s322, 128
        %s324 = scalar_lea.vmem [#allocation8], %s323
        %p325 = pneg %p115
        %p326 = pneg %p112
        %s327 = sand.u32 %s23, 1
        %s328 = scalar_lea.sflag [#allocation9], %s327
        %s329 = sand.u32 %s134, 1
        %s330 = smul.addr %s329, 128
        %s331 = scalar_lea.vmem [#allocation10], %s330
        %p332 = pneg %p147
        %p333 = pneg %p144
        %p334 = pneg %p179
        %p335 = pneg %p176
        %s336 = sand.u32 %s166, 1
        %s337 = scalar_lea.sflag [#allocation7], %s336
        %s338 = sand.u32 %s166, 1
        %s339 = smul.addr %s338, 128
        %s340 = scalar_lea.vmem [#allocation11], %s339
        %s341 = smul.u32 32, %s33
        %s342 = smul.u32 32, %s34
        %s343 = smul.u32 32, %s34
        %s344 = smul.u32 32, %s33
        %p347 = scmp.eq.s32.totalorder %s34, 0
        // Predicated region
        $region45: #{tpu_custom_call.1} parent=31 // pred_check
          %p348 = pneg %p347
        $region46: #{tpu_custom_call.1} parent=31 // pred_check_branch
          %350 = sbr.rel (%p348) target = $region48
        $region47: #{tpu_custom_call.1} parent=31 // pred_region
          %vm351 = vcmask 7168
          %352 = vst.msk [vmem:[#allocation2] sm:$0xff] %vm351, -inf
          %353 = vst.msk [vmem:[#allocation2 + $0x8] sm:$0xff] %vm351, -inf
          %354 = vst.msk [vmem:[#allocation2 + $0x10] sm:$0xff] %vm351, -inf
          %355 = vst.msk [vmem:[#allocation2 + $0x18] sm:$0xff] %vm351, -inf
          %356 = vst.msk [vmem:[#allocation2 + $0x20] sm:$0xff] %vm351, -inf
          %357 = vst.msk [vmem:[#allocation2 + $0x28] sm:$0xff] %vm351, -inf
          %358 = vst.msk [vmem:[#allocation2 + $0x30] sm:$0xff] %vm351, -inf
          %359 = vst.msk [vmem:[#allocation2 + $0x38] sm:$0xff] %vm351, -inf
          %360 = vst.msk [vmem:[#allocation2 + $0x40] sm:$0xff] %vm351, -inf
          %361 = vst.msk [vmem:[#allocation2 + $0x48] sm:$0xff] %vm351, -inf
          %362 = vst.msk [vmem:[#allocation2 + $0x50] sm:$0xff] %vm351, -inf
          %363 = vst.msk [vmem:[#allocation2 + $0x58] sm:$0xff] %vm351, -inf
          %364 = vst.msk [vmem:[#allocation2 + $0x60] sm:$0xff] %vm351, -inf
          %365 = vst.msk [vmem:[#allocation2 + $0x68] sm:$0xff] %vm351, -inf
          %366 = vst.msk [vmem:[#allocation2 + $0x70] sm:$0xff] %vm351, -inf
          %367 = vst.msk [vmem:[#allocation2 + $0x78] sm:$0xff] %vm351, -inf
          %368 = vst.msk [vmem:[#allocation2 + $0x80] sm:$0xff] %vm351, -inf
          %369 = vst.msk [vmem:[#allocation2 + $0x88] sm:$0xff] %vm351, -inf
          %370 = vst.msk [vmem:[#allocation2 + $0x90] sm:$0xff] %vm351, -inf
          %371 = vst.msk [vmem:[#allocation2 + $0x98] sm:$0xff] %vm351, -inf
          %372 = vst.msk [vmem:[#allocation2 + $0xa0] sm:$0xff] %vm351, -inf
          %373 = vst.msk [vmem:[#allocation2 + $0xa8] sm:$0xff] %vm351, -inf
          %374 = vst.msk [vmem:[#allocation2 + $0xb0] sm:$0xff] %vm351, -inf
          %375 = vst.msk [vmem:[#allocation2 + $0xb8] sm:$0xff] %vm351, -inf
          %376 = vst.msk [vmem:[#allocation2 + $0xc0] sm:$0xff] %vm351, -inf
          %377 = vst.msk [vmem:[#allocation2 + $0xc8] sm:$0xff] %vm351, -inf
          %378 = vst.msk [vmem:[#allocation2 + $0xd0] sm:$0xff] %vm351, -inf
          %379 = vst.msk [vmem:[#allocation2 + $0xd8] sm:$0xff] %vm351, -inf
          %380 = vst.msk [vmem:[#allocation2 + $0xe0] sm:$0xff] %vm351, -inf
          %381 = vst.msk [vmem:[#allocation2 + $0xe8] sm:$0xff] %vm351, -inf
          %382 = vst.msk [vmem:[#allocation2 + $0xf0] sm:$0xff] %vm351, -inf
          %383 = vst.msk [vmem:[#allocation2 + $0xf8] sm:$0xff] %vm351, -inf
          %384 = vst.msk [vmem:[#allocation3] sm:$0xff] %vm351, 0.0
          %385 = vst.msk [vmem:[#allocation3 + $0x8] sm:$0xff] %vm351, 0.0
          %386 = vst.msk [vmem:[#allocation3 + $0x10] sm:$0xff] %vm351, 0.0
          %387 = vst.msk [vmem:[#allocation3 + $0x18] sm:$0xff] %vm351, 0.0
          %388 = vst.msk [vmem:[#allocation3 + $0x20] sm:$0xff] %vm351, 0.0
          %389 = vst.msk [vmem:[#allocation3 + $0x28] sm:$0xff] %vm351, 0.0
          %390 = vst.msk [vmem:[#allocation3 + $0x30] sm:$0xff] %vm351, 0.0
          %391 = vst.msk [vmem:[#allocation3 + $0x38] sm:$0xff] %vm351, 0.0
          %392 = vst.msk [vmem:[#allocation3 + $0x40] sm:$0xff] %vm351, 0.0
          %393 = vst.msk [vmem:[#allocation3 + $0x48] sm:$0xff] %vm351, 0.0
          %394 = vst.msk [vmem:[#allocation3 + $0x50] sm:$0xff] %vm351, 0.0
          %395 = vst.msk [vmem:[#allocation3 + $0x58] sm:$0xff] %vm351, 0.0
          %396 = vst.msk [vmem:[#allocation3 + $0x60] sm:$0xff] %vm351, 0.0
          %397 = vst.msk [vmem:[#allocation3 + $0x68] sm:$0xff] %vm351, 0.0
          %398 = vst.msk [vmem:[#allocation3 + $0x70] sm:$0xff] %vm351, 0.0
          %399 = vst.msk [vmem:[#allocation3 + $0x78] sm:$0xff] %vm351, 0.0
          %400 = vst.msk [vmem:[#allocation3 + $0x80] sm:$0xff] %vm351, 0.0
          %401 = vst.msk [vmem:[#allocation3 + $0x88] sm:$0xff] %vm351, 0.0
          %402 = vst.msk [vmem:[#allocation3 + $0x90] sm:$0xff] %vm351, 0.0
          %403 = vst.msk [vmem:[#allocation3 + $0x98] sm:$0xff] %vm351, 0.0
          %404 = vst.msk [vmem:[#allocation3 + $0xa0] sm:$0xff] %vm351, 0.0
          %405 = vst.msk [vmem:[#allocation3 + $0xa8] sm:$0xff] %vm351, 0.0
          %406 = vst.msk [vmem:[#allocation3 + $0xb0] sm:$0xff] %vm351, 0.0
          %407 = vst.msk [vmem:[#allocation3 + $0xb8] sm:$0xff] %vm351, 0.0
          %408 = vst.msk [vmem:[#allocation3 + $0xc0] sm:$0xff] %vm351, 0.0
          %409 = vst.msk [vmem:[#allocation3 + $0xc8] sm:$0xff] %vm351, 0.0
          %410 = vst.msk [vmem:[#allocation3 + $0xd0] sm:$0xff] %vm351, 0.0
          %411 = vst.msk [vmem:[#allocation3 + $0xd8] sm:$0xff] %vm351, 0.0
          %412 = vst.msk [vmem:[#allocation3 + $0xe0] sm:$0xff] %vm351, 0.0
          %413 = vst.msk [vmem:[#allocation3 + $0xe8] sm:$0xff] %vm351, 0.0
          %414 = vst.msk [vmem:[#allocation3 + $0xf0] sm:$0xff] %vm351, 0.0
          %415 = vst.msk [vmem:[#allocation3 + $0xf8] sm:$0xff] %vm351, 0.0
          %416 = vst [vmem:[#allocation4] sm:$0xff] 0.0
          %417 = vst [vmem:[#allocation4 + $0x8] sm:$0xff] 0.0
          %418 = vst [vmem:[#allocation4 + $0x10] sm:$0xff] 0.0
          %419 = vst [vmem:[#allocation4 + $0x18] sm:$0xff] 0.0
          %420 = vst [vmem:[#allocation4 + $0x20] sm:$0xff] 0.0
          %421 = vst [vmem:[#allocation4 + $0x28] sm:$0xff] 0.0
          %422 = vst [vmem:[#allocation4 + $0x30] sm:$0xff] 0.0
          %423 = vst [vmem:[#allocation4 + $0x38] sm:$0xff] 0.0
          %424 = vst [vmem:[#allocation4 + $0x40] sm:$0xff] 0.0
          %425 = vst [vmem:[#allocation4 + $0x48] sm:$0xff] 0.0
          %426 = vst [vmem:[#allocation4 + $0x50] sm:$0xff] 0.0
          %427 = vst [vmem:[#allocation4 + $0x58] sm:$0xff] 0.0
          %428 = vst [vmem:[#allocation4 + $0x60] sm:$0xff] 0.0
          %429 = vst [vmem:[#allocation4 + $0x68] sm:$0xff] 0.0
          %430 = vst [vmem:[#allocation4 + $0x70] sm:$0xff] 0.0
          %431 = vst [vmem:[#allocation4 + $0x78] sm:$0xff] 0.0
          %432 = vst [vmem:[#allocation4 + $0x80] sm:$0xff] 0.0
          %433 = vst [vmem:[#allocation4 + $0x88] sm:$0xff] 0.0
          %434 = vst [vmem:[#allocation4 + $0x90] sm:$0xff] 0.0
          %435 = vst [vmem:[#allocation4 + $0x98] sm:$0xff] 0.0
          %436 = vst [vmem:[#allocation4 + $0xa0] sm:$0xff] 0.0
          %437 = vst [vmem:[#allocation4 + $0xa8] sm:$0xff] 0.0
          %438 = vst [vmem:[#allocation4 + $0xb0] sm:$0xff] 0.0
          %439 = vst [vmem:[#allocation4 + $0xb8] sm:$0xff] 0.0
          %440 = vst [vmem:[#allocation4 + $0xc0] sm:$0xff] 0.0
          %441 = vst [vmem:[#allocation4 + $0xc8] sm:$0xff] 0.0
          %442 = vst [vmem:[#allocation4 + $0xd0] sm:$0xff] 0.0
          %443 = vst [vmem:[#allocation4 + $0xd8] sm:$0xff] 0.0
          %444 = vst [vmem:[#allocation4 + $0xe0] sm:$0xff] 0.0
          %445 = vst [vmem:[#allocation4 + $0xe8] sm:$0xff] 0.0
          %446 = vst [vmem:[#allocation4 + $0xf0] sm:$0xff] 0.0
          %447 = vst [vmem:[#allocation4 + $0xf8] sm:$0xff] 0.0
        $region48: #{tpu_custom_call.1} parent=31 // pred_fallthru
          _
        %s448 = smul.u32 %s34, 256
        %s449 = smul.u32 %s33, 256
        %s450 = sadd.s32 %s449, 255
        %p451 = scmp.le.s32.totalorder %s448, %s450
        // Predicated region
        $region49: #{tpu_custom_call.1} parent=31 // pred_check
          %p452 = pneg %p451
        $region50: #{tpu_custom_call.1} parent=31 // pred_check_branch
          %454 = sbr.rel (%p452) target = $region52
        $region51: #{tpu_custom_call.1} parent=31 // pred_region
          %v455 = vld [vmem:[%s290] sm:$0xf]
          %v456 = vld [vmem:[%s290 + $0x4] sm:$0xf]
          %v457 = vld [vmem:[%s290 + $0x8] sm:$0xf]
          %v458 = vld [vmem:[%s290 + $0xc] sm:$0xf]
          %v459 = vld [vmem:[%s290 + $0x10] sm:$0xf]
          %v460 = vld [vmem:[%s290 + $0x14] sm:$0xf]
          %v461 = vld [vmem:[%s290 + $0x18] sm:$0xf]
          %v462 = vld [vmem:[%s290 + $0x1c] sm:$0xf]
          %v463 = vld [vmem:[%s290 + $0x20] sm:$0xf]
          %v464 = vld [vmem:[%s290 + $0x24] sm:$0xf]
          %v465 = vld [vmem:[%s290 + $0x28] sm:$0xf]
          %v466 = vld [vmem:[%s290 + $0x2c] sm:$0xf]
          %v467 = vld [vmem:[%s290 + $0x30] sm:$0xf]
          %v468 = vld [vmem:[%s290 + $0x34] sm:$0xf]
          %v469 = vld [vmem:[%s290 + $0x38] sm:$0xf]
          %v470 = vld [vmem:[%s290 + $0x3c] sm:$0xf]
          %v471 = vld [vmem:[%s290 + $0x40] sm:$0xf]
          %v472 = vld [vmem:[%s290 + $0x44] sm:$0xf]
          %v473 = vld [vmem:[%s290 + $0x48] sm:$0xf]
          %v474 = vld [vmem:[%s290 + $0x4c] sm:$0xf]
          %v475 = vld [vmem:[%s290 + $0x50] sm:$0xf]
          %v476 = vld [vmem:[%s290 + $0x54] sm:$0xf]
          %v477 = vld [vmem:[%s290 + $0x58] sm:$0xf]
          %v478 = vld [vmem:[%s290 + $0x5c] sm:$0xf]
          %v479 = vld [vmem:[%s290 + $0x60] sm:$0xf]
          %v480 = vld [vmem:[%s290 + $0x64] sm:$0xf]
          %v481 = vld [vmem:[%s290 + $0x68] sm:$0xf]
          %v482 = vld [vmem:[%s290 + $0x6c] sm:$0xf]
          %v483 = vld [vmem:[%s290 + $0x70] sm:$0xf]
          %v484 = vld [vmem:[%s290 + $0x74] sm:$0xf]
          %v485 = vld [vmem:[%s290 + $0x78] sm:$0xf]
          %v486 = vld [vmem:[%s290 + $0x7c] sm:$0xf]
          %v487 = vmul.bf16 %v455, 1035287989
          %v488 = vmul.bf16 %v456, 1035287989
          %v489 = vmul.bf16 %v457, 1035287989
          %v490 = vmul.bf16 %v458, 1035287989
          %v491 = vmul.bf16 %v459, 1035287989
          %v492 = vmul.bf16 %v460, 1035287989
          %v493 = vmul.bf16 %v461, 1035287989
          %v494 = vmul.bf16 %v462, 1035287989
          %v495 = vmul.bf16 %v463, 1035287989
          %v496 = vmul.bf16 %v464, 1035287989
          %v497 = vmul.bf16 %v465, 1035287989
          %v498 = vmul.bf16 %v466, 1035287989
          %v499 = vmul.bf16 %v467, 1035287989
          %v500 = vmul.bf16 %v468, 1035287989
          %v501 = vmul.bf16 %v469, 1035287989
          %v502 = vmul.bf16 %v470, 1035287989
          %v503 = vmul.bf16 %v471, 1035287989
          %v504 = vmul.bf16 %v472, 1035287989
          %v505 = vmul.bf16 %v473, 1035287989
          %v506 = vmul.bf16 %v474, 1035287989
          %v507 = vmul.bf16 %v475, 1035287989
          %v508 = vmul.bf16 %v476, 1035287989
          %v509 = vmul.bf16 %v477, 1035287989
          %v510 = vmul.bf16 %v478, 1035287989
          %v511 = vmul.bf16 %v479, 1035287989
          %v512 = vmul.bf16 %v480, 1035287989
          %v513 = vmul.bf16 %v481, 1035287989
          %v514 = vmul.bf16 %v482, 1035287989
          %v515 = vmul.bf16 %v483, 1035287989
          %v516 = vmul.bf16 %v484, 1035287989
          %v517 = vmul.bf16 %v485, 1035287989
          %v518 = vmul.bf16 %v486, 1035287989
          %v519 = vld [vmem:[%s299] sm:$0xf]
          %v520 = vld [vmem:[%s299 + $0x4] sm:$0xf]
          %v521 = vld [vmem:[%s299 + $0x8] sm:$0xf]
          %v522 = vld [vmem:[%s299 + $0xc] sm:$0xf]
          %v523 = vld [vmem:[%s299 + $0x10] sm:$0xf]
          %v524 = vld [vmem:[%s299 + $0x14] sm:$0xf]
          %v525 = vld [vmem:[%s299 + $0x18] sm:$0xf]
          %v526 = vld [vmem:[%s299 + $0x1c] sm:$0xf]
          %v527 = vld [vmem:[%s299 + $0x20] sm:$0xf]
          %v528 = vld [vmem:[%s299 + $0x24] sm:$0xf]
          %v529 = vld [vmem:[%s299 + $0x28] sm:$0xf]
          %v530 = vld [vmem:[%s299 + $0x2c] sm:$0xf]
          %v531 = vld [vmem:[%s299 + $0x30] sm:$0xf]
          %v532 = vld [vmem:[%s299 + $0x34] sm:$0xf]
          %v533 = vld [vmem:[%s299 + $0x38] sm:$0xf]
          %v534 = vld [vmem:[%s299 + $0x3c] sm:$0xf]
          %v535 = vld [vmem:[%s299 + $0x40] sm:$0xf]
          %v536 = vld [vmem:[%s299 + $0x44] sm:$0xf]
          %v537 = vld [vmem:[%s299 + $0x48] sm:$0xf]
          %v538 = vld [vmem:[%s299 + $0x4c] sm:$0xf]
          %v539 = vld [vmem:[%s299 + $0x50] sm:$0xf]
          %v540 = vld [vmem:[%s299 + $0x54] sm:$0xf]
          %v541 = vld [vmem:[%s299 + $0x58] sm:$0xf]
          %v542 = vld [vmem:[%s299 + $0x5c] sm:$0xf]
          %v543 = vld [vmem:[%s299 + $0x60] sm:$0xf]
          %v544 = vld [vmem:[%s299 + $0x64] sm:$0xf]
          %v545 = vld [vmem:[%s299 + $0x68] sm:$0xf]
          %v546 = vld [vmem:[%s299 + $0x6c] sm:$0xf]
          %v547 = vld [vmem:[%s299 + $0x70] sm:$0xf]
          %v548 = vld [vmem:[%s299 + $0x74] sm:$0xf]
          %v549 = vld [vmem:[%s299 + $0x78] sm:$0xf]
          %v550 = vld [vmem:[%s299 + $0x7c] sm:$0xf]
          %v583 = vunpack.c.l.b16 %v487
          %v584 = vunpack.c.l.b16 %v488
          %v585 = vunpack.c.l.b16 %v489
          %v586 = vunpack.c.l.b16 %v490
          %v587 = vunpack.c.l.b16 %v491
          %v588 = vunpack.c.l.b16 %v492
          %v589 = vunpack.c.l.b16 %v493
          %v590 = vunpack.c.l.b16 %v494
          %v591 = vunpack.c.l.b16 %v495
          %v592 = vunpack.c.l.b16 %v496
          %v593 = vunpack.c.l.b16 %v497
          %v594 = vunpack.c.l.b16 %v498
          %v595 = vunpack.c.l.b16 %v499
          %v596 = vunpack.c.l.b16 %v500
          %v597 = vunpack.c.l.b16 %v501
          %v598 = vunpack.c.l.b16 %v502
          %v599 = vunpack.c.l.b16 %v503
          %v600 = vunpack.c.l.b16 %v504
          %v601 = vunpack.c.l.b16 %v505
          %v602 = vunpack.c.l.b16 %v506
          %v603 = vunpack.c.l.b16 %v507
          %v604 = vunpack.c.l.b16 %v508
          %v605 = vunpack.c.l.b16 %v509
          %v606 = vunpack.c.l.b16 %v510
          %v607 = vunpack.c.l.b16 %v511
          %v608 = vunpack.c.l.b16 %v512
          %v609 = vunpack.c.l.b16 %v513
          %v610 = vunpack.c.l.b16 %v514
          %v611 = vunpack.c.l.b16 %v515
          %v612 = vunpack.c.l.b16 %v516
          %v613 = vunpack.c.l.b16 %v517
          %v614 = vunpack.c.l.b16 %v518
          %v615 = vpack.c.b16 %v584, %v583
          %v616 = vpack.c.b16 %v586, %v585
          %v617 = vpack.c.b16 %v588, %v587
          %v618 = vpack.c.b16 %v590, %v589
          %v619 = vpack.c.b16 %v592, %v591
          %v620 = vpack.c.b16 %v594, %v593
          %v621 = vpack.c.b16 %v596, %v595
          %v622 = vpack.c.b16 %v598, %v597
          %v623 = vpack.c.b16 %v600, %v599
          %v624 = vpack.c.b16 %v602, %v601
          %v625 = vpack.c.b16 %v604, %v603
          %v626 = vpack.c.b16 %v606, %v605
          %v627 = vpack.c.b16 %v608, %v607
          %v628 = vpack.c.b16 %v610, %v609
          %v629 = vpack.c.b16 %v612, %v611
          %v630 = vpack.c.b16 %v614, %v613
          %v679 = vunpack.c.l.b16 %v519
          %v680 = vunpack.c.l.b16 %v520
          %v681 = vunpack.c.l.b16 %v521
          %v682 = vunpack.c.l.b16 %v522
          %v683 = vunpack.c.l.b16 %v523
          %v684 = vunpack.c.l.b16 %v524
          %v685 = vunpack.c.l.b16 %v525
          %v686 = vunpack.c.l.b16 %v526
          %v687 = vunpack.c.l.b16 %v527
          %v688 = vunpack.c.l.b16 %v528
          %v689 = vunpack.c.l.b16 %v529
          %v690 = vunpack.c.l.b16 %v530
          %v691 = vunpack.c.l.b16 %v531
          %v692 = vunpack.c.l.b16 %v532
          %v693 = vunpack.c.l.b16 %v533
          %v694 = vunpack.c.l.b16 %v534
          %v695 = vunpack.c.l.b16 %v535
          %v696 = vunpack.c.l.b16 %v536
          %v697 = vunpack.c.l.b16 %v537
          %v698 = vunpack.c.l.b16 %v538
          %v699 = vunpack.c.l.b16 %v539
          %v700 = vunpack.c.l.b16 %v540
          %v701 = vunpack.c.l.b16 %v541
          %v702 = vunpack.c.l.b16 %v542
          %v703 = vunpack.c.l.b16 %v543
          %v704 = vunpack.c.l.b16 %v544
          %v705 = vunpack.c.l.b16 %v545
          %v706 = vunpack.c.l.b16 %v546
          %v707 = vunpack.c.l.b16 %v547
          %v708 = vunpack.c.l.b16 %v548
          %v709 = vunpack.c.l.b16 %v549
          %v710 = vunpack.c.l.b16 %v550
          %v711 = vpack.c.b16 %v680, %v679
          %v712 = vpack.c.b16 %v682, %v681
          %v713 = vpack.c.b16 %v684, %v683
          %v714 = vpack.c.b16 %v686, %v685
          %v715 = vpack.c.b16 %v688, %v687
          %v716 = vpack.c.b16 %v690, %v689
          %v717 = vpack.c.b16 %v692, %v691
          %v718 = vpack.c.b16 %v694, %v693
          %v719 = vpack.c.b16 %v696, %v695
          %v720 = vpack.c.b16 %v698, %v697
          %v721 = vpack.c.b16 %v700, %v699
          %v722 = vpack.c.b16 %v702, %v701
          %v723 = vpack.c.b16 %v704, %v703
          %v724 = vpack.c.b16 %v706, %v705
          %v725 = vpack.c.b16 %v708, %v707
          %v726 = vpack.c.b16 %v710, %v709
          %743 = vmatprep.subr.bf16.mxu0 0
          %744 = vmatpush1.bf16.xpose.msra.mxu0 %v711
          %745 = vmatprep.subr.bf16.mxu0 0
          %746 = vmatpush1.bf16.xpose.msra.mxu0 %v712
          %747 = vmatprep.subr.bf16.mxu0 0
          %748 = vmatpush1.bf16.xpose.msra.mxu0 %v713
          %749 = vmatprep.subr.bf16.mxu0 0
          %750 = vmatpush1.bf16.xpose.msra.mxu0 %v714
          %751 = vmatprep.subr.bf16.mxu0 0
          %752 = vmatpush1.bf16.xpose.msra.mxu0 %v715
          %753 = vmatprep.subr.bf16.mxu0 0
          %754 = vmatpush1.bf16.xpose.msra.mxu0 %v716
          %755 = vmatprep.subr.bf16.mxu0 0
          %756 = vmatpush1.bf16.xpose.msra.mxu0 %v717
          %757 = vmatprep.subr.bf16.mxu0 0
          %758 = vmatpush1.bf16.xpose.msra.mxu0 %v718
          %759 = vmatprep.subr.bf16.mxu0 0
          %760 = vmatpush1.bf16.xpose.msra.mxu0 %v719
          %761 = vmatprep.subr.bf16.mxu0 0
          %762 = vmatpush1.bf16.xpose.msra.mxu0 %v720
          %763 = vmatprep.subr.bf16.mxu0 0
          %764 = vmatpush1.bf16.xpose.msra.mxu0 %v721
          %765 = vmatprep.subr.bf16.mxu0 0
          %766 = vmatpush1.bf16.xpose.msra.mxu0 %v722
          %767 = vmatprep.subr.bf16.mxu0 0
          %768 = vmatpush1.bf16.xpose.msra.mxu0 %v723
          %769 = vmatprep.subr.bf16.mxu0 0
          %770 = vmatpush1.bf16.xpose.msra.mxu0 %v724
          %771 = vmatprep.subr.bf16.mxu0 0
          %772 = vmatpush1.bf16.xpose.msra.mxu0 %v725
          %773 = vmatprep.subr.bf16.mxu0 0
          %774 = vmatpush1.bf16.xpose.msra.mxu0 %v726
          %775 = vmatprep.mubr.bf16.mxu0 0
          %776 = vmatmul.mubr.bf16.gmra.mrb[0].mxu0 %v615
          %v777 = vpop.f32.mrb[0].mxu0
          %v778 = vadd.f32 0.0, %v777
          %v779 = vpop.f32.mrb[0].mxu0
          %v780 = vadd.f32 0.0, %v779
          %v781 = vpop.f32.mrb[0].mxu0
          %v782 = vadd.f32 0.0, %v781
          %v783 = vpop.f32.mrb[0].mxu0
          %v784 = vadd.f32 0.0, %v783
          %785 = vmatprep.mubr.bf16.mxu0 0
          %786 = vmatmul.mubr.bf16.gmra.mrb[0].mxu0 %v616
          %v787 = vpop.f32.mrb[0].mxu0
          %v788 = vadd.f32 0.0, %v787
          %v789 = vpop.f32.mrb[0].mxu0
          %v790 = vadd.f32 0.0, %v789
          %v791 = vpop.f32.mrb[0].mxu0
          %v792 = vadd.f32 0.0, %v791
          %v793 = vpop.f32.mrb[0].mxu0
          %v794 = vadd.f32 0.0, %v793
          %795 = vmatprep.mubr.bf16.mxu0 0
          %796 = vmatmul.mubr.bf16.gmra.mrb[0].mxu0 %v617
          %v797 = vpop.f32.mrb[0].mxu0
          %v798 = vadd.f32 0.0, %v797
          %v799 = vpop.f32.mrb[0].mxu0
          %v800 = vadd.f32 0.0, %v799
          %v801 = vpop.f32.mrb[0].mxu0
          %v802 = vadd.f32 0.0, %v801
          %v803 = vpop.f32.mrb[0].mxu0
          %v804 = vadd.f32 0.0, %v803
          %805 = vmatprep.mubr.bf16.mxu0 0
          %806 = vmatmul.mubr.bf16.gmra.mrb[0].mxu0 %v618
          %v807 = vpop.f32.mrb[0].mxu0
          %v808 = vadd.f32 0.0, %v807
          %v809 = vpop.f32.mrb[0].mxu0
          %v810 = vadd.f32 0.0, %v809
          %v811 = vpop.f32.mrb[0].mxu0
          %v812 = vadd.f32 0.0, %v811
          %v813 = vpop.f32.mrb[0].mxu0
          %v814 = vadd.f32 0.0, %v813
          %815 = vmatprep.mubr.bf16.mxu0 0
          %816 = vmatmul.mubr.bf16.gmra.mrb[0].mxu0 %v619
          %v817 = vpop.f32.mrb[0].mxu0
          %v818 = vadd.f32 0.0, %v817
          %v819 = vpop.f32.mrb[0].mxu0
          %v820 = vadd.f32 0.0, %v819
          %v821 = vpop.f32.mrb[0].mxu0
          %v822 = vadd.f32 0.0, %v821
          %v823 = vpop.f32.mrb[0].mxu0
          %v824 = vadd.f32 0.0, %v823
          %825 = vmatprep.mubr.bf16.mxu0 0
          %826 = vmatmul.mubr.bf16.gmra.mrb[0].mxu0 %v620
          %v827 = vpop.f32.mrb[0].mxu0
          %v828 = vadd.f32 0.0, %v827
          %v829 = vpop.f32.mrb[0].mxu0
          %v830 = vadd.f32 0.0, %v829
          %v831 = vpop.f32.mrb[0].mxu0
          %v832 = vadd.f32 0.0, %v831
          %v833 = vpop.f32.mrb[0].mxu0
          %v834 = vadd.f32 0.0, %v833
          %835 = vmatprep.mubr.bf16.mxu0 0
          %836 = vmatmul.mubr.bf16.gmra.mrb[0].mxu0 %v621
          %v837 = vpop.f32.mrb[0].mxu0
          %v838 = vadd.f32 0.0, %v837
          %v839 = vpop.f32.mrb[0].mxu0
          %v840 = vadd.f32 0.0, %v839
          %v841 = vpop.f32.mrb[0].mxu0
          %v842 = vadd.f32 0.0, %v841
          %v843 = vpop.f32.mrb[0].mxu0
          %v844 = vadd.f32 0.0, %v843
          %845 = vmatprep.mubr.bf16.mxu0 0
          %846 = vmatmul.mubr.bf16.gmra.mrb[0].mxu0 %v622
          %v847 = vpop.f32.mrb[0].mxu0
          %v848 = vadd.f32 0.0, %v847
          %v849 = vpop.f32.mrb[0].mxu0
          %v850 = vadd.f32 0.0, %v849
          %v851 = vpop.f32.mrb[0].mxu0
          %v852 = vadd.f32 0.0, %v851
          %v853 = vpop.f32.mrb[0].mxu0
          %v854 = vadd.f32 0.0, %v853
          %855 = vmatprep.mubr.bf16.mxu0 0
          %856 = vmatmul.mubr.bf16.gmra.mrb[0].mxu0 %v623
          %v857 = vpop.f32.mrb[0].mxu0
          %v858 = vadd.f32 0.0, %v857
          %v859 = vpop.f32.mrb[0].mxu0
          %v860 = vadd.f32 0.0, %v859
          %v861 = vpop.f32.mrb[0].mxu0
          %v862 = vadd.f32 0.0, %v861
          %v863 = vpop.f32.mrb[0].mxu0
          %v864 = vadd.f32 0.0, %v863
          %865 = vmatprep.mubr.bf16.mxu0 0
          %866 = vmatmul.mubr.bf16.gmra.mrb[0].mxu0 %v624
          %v867 = vpop.f32.mrb[0].mxu0
          %v868 = vadd.f32 0.0, %v867
          %v869 = vpop.f32.mrb[0].mxu0
          %v870 = vadd.f32 0.0, %v869
          %v871 = vpop.f32.mrb[0].mxu0
          %v872 = vadd.f32 0.0, %v871
          %v873 = vpop.f32.mrb[0].mxu0
          %v874 = vadd.f32 0.0, %v873
          %875 = vmatprep.mubr.bf16.mxu0 0
          %876 = vmatmul.mubr.bf16.gmra.mrb[0].mxu0 %v625
          %v877 = vpop.f32.mrb[0].mxu0
          %v878 = vadd.f32 0.0, %v877
          %v879 = vpop.f32.mrb[0].mxu0
          %v880 = vadd.f32 0.0, %v879
          %v881 = vpop.f32.mrb[0].mxu0
          %v882 = vadd.f32 0.0, %v881
          %v883 = vpop.f32.mrb[0].mxu0
          %v884 = vadd.f32 0.0, %v883
          %885 = vmatprep.mubr.bf16.mxu0 0
          %886 = vmatmul.mubr.bf16.gmra.mrb[0].mxu0 %v626
          %v887 = vpop.f32.mrb[0].mxu0
          %v888 = vadd.f32 0.0, %v887
          %v889 = vpop.f32.mrb[0].mxu0
          %v890 = vadd.f32 0.0, %v889
          %v891 = vpop.f32.mrb[0].mxu0
          %v892 = vadd.f32 0.0, %v891
          %v893 = vpop.f32.mrb[0].mxu0
          %v894 = vadd.f32 0.0, %v893
          %895 = vmatprep.mubr.bf16.mxu0 0
          %896 = vmatmul.mubr.bf16.gmra.mrb[0].mxu0 %v627
          %v897 = vpop.f32.mrb[0].mxu0
          %v898 = vadd.f32 0.0, %v897
          %v899 = vpop.f32.mrb[0].mxu0
          %v900 = vadd.f32 0.0, %v899
          %v901 = vpop.f32.mrb[0].mxu0
          %v902 = vadd.f32 0.0, %v901
          %v903 = vpop.f32.mrb[0].mxu0
          %v904 = vadd.f32 0.0, %v903
          %905 = vmatprep.mubr.bf16.mxu0 0
          %906 = vmatmul.mubr.bf16.gmra.mrb[0].mxu0 %v628
          %v907 = vpop.f32.mrb[0].mxu0
          %v908 = vadd.f32 0.0, %v907
          %v909 = vpop.f32.mrb[0].mxu0
          %v910 = vadd.f32 0.0, %v909
          %v911 = vpop.f32.mrb[0].mxu0
          %v912 = vadd.f32 0.0, %v911
          %v913 = vpop.f32.mrb[0].mxu0
          %v914 = vadd.f32 0.0, %v913
          %915 = vmatprep.mubr.bf16.mxu0 0
          %916 = vmatmul.mubr.bf16.gmra.mrb[0].mxu0 %v629
          %v917 = vpop.f32.mrb[0].mxu0
          %v918 = vadd.f32 0.0, %v917
          %v919 = vpop.f32.mrb[0].mxu0
          %v920 = vadd.f32 0.0, %v919
          %v921 = vpop.f32.mrb[0].mxu0
          %v922 = vadd.f32 0.0, %v921
          %v923 = vpop.f32.mrb[0].mxu0
          %v924 = vadd.f32 0.0, %v923
          %925 = vmatprep.mubr.bf16.mxu0 0
          %926 = vmatmul.mubr.bf16.gmra.mrb[0].mxu0 %v630
          %v927 = vpop.f32.mrb[0].mxu0
          %v928 = vadd.f32 0.0, %v927
          %v929 = vpop.f32.mrb[0].mxu0
          %v930 = vadd.f32 0.0, %v929
          %v931 = vpop.f32.mrb[0].mxu0
          %v932 = vadd.f32 0.0, %v931
          %v933 = vpop.f32.mrb[0].mxu0
          %v934 = vadd.f32 0.0, %v933
          %935 = vdwg.mxu0
          %v936 = vlaneseq
          %v937 = vshrl.u32 %v936, 7
          %v938 = vadd.s32 %v937, 8
          %v939 = vadd.s32 %v937, 16
          %v940 = vadd.s32 %v937, 24
          %v941 = vadd.s32 %v937, 32
          %v942 = vadd.s32 %v937, 40
          %v943 = vadd.s32 %v937, 48
          %v944 = vadd.s32 %v937, 56
          %v945 = vadd.s32 %v937, 64
          %v946 = vadd.s32 %v937, 72
          %v947 = vadd.s32 %v937, 80
          %v948 = vadd.s32 %v937, 88
          %v949 = vadd.s32 %v937, 96
          %v950 = vadd.s32 %v937, 104
          %v951 = vadd.s32 %v937, 112
          %v952 = vadd.s32 %v937, 120
          %v953 = vadd.s32 %v937, 128
          %v954 = vadd.s32 %v937, 136
          %v955 = vadd.s32 %v937, 144
          %v956 = vadd.s32 %v937, 152
          %v957 = vadd.s32 %v937, 160
          %v958 = vadd.s32 %v937, 168
          %v959 = vadd.s32 %v937, 176
          %v960 = vadd.s32 %v937, 184
          %v961 = vadd.s32 %v937, 192
          %v962 = vadd.s32 %v937, 200
          %v963 = vadd.s32 %v937, 208
          %v964 = vadd.s32 %v937, 216
          %v965 = vadd.s32 %v937, 224
          %v966 = vadd.s32 %v937, 232
          %v967 = vadd.s32 %v937, 240
          %v968 = vadd.s32 %v937, 248
          %v969 = vstv %s449
          %v970 = vadd.s32 %v969, %v937
          %v971 = vadd.s32 %v969, %v938
          %v972 = vadd.s32 %v969, %v939
          %v973 = vadd.s32 %v969, %v940
          %v974 = vadd.s32 %v969, %v941
          %v975 = vadd.s32 %v969, %v942
          %v976 = vadd.s32 %v969, %v943
          %v977 = vadd.s32 %v969, %v944
          %v978 = vadd.s32 %v969, %v945
          %v979 = vadd.s32 %v969, %v946
          %v980 = vadd.s32 %v969, %v947
          %v981 = vadd.s32 %v969, %v948
          %v982 = vadd.s32 %v969, %v949
          %v983 = vadd.s32 %v969, %v950
          %v984 = vadd.s32 %v969, %v951
          %v985 = vadd.s32 %v969, %v952
          %v986 = vadd.s32 %v969, %v953
          %v987 = vadd.s32 %v969, %v954
          %v988 = vadd.s32 %v969, %v955
          %v989 = vadd.s32 %v969, %v956
          %v990 = vadd.s32 %v969, %v957
          %v991 = vadd.s32 %v969, %v958
          %v992 = vadd.s32 %v969, %v959
          %v993 = vadd.s32 %v969, %v960
          %v994 = vadd.s32 %v969, %v961
          %v995 = vadd.s32 %v969, %v962
          %v996 = vadd.s32 %v969, %v963
          %v997 = vadd.s32 %v969, %v964
          %v998 = vadd.s32 %v969, %v965
          %v999 = vadd.s32 %v969, %v966
          %v1000 = vadd.s32 %v969, %v967
          %v1001 = vadd.s32 %v969, %v968
          %v1002 = vlaneseq
          %v1003 = vand.u32 %v1002, 127
          %v1004 = vadd.s32 %v1003, 128
          %v1005 = vstv %s448
          %v1006 = vadd.s32 %v1005, %v1003
          %v1007 = vadd.s32 %v1005, %v1004
          %vm1008 = vcmp.le.s32.totalorder %v1006, %v970
          %vm1009 = vcmp.le.s32.totalorder %v1007, %v970
          %vm1010 = vcmp.le.s32.totalorder %v1006, %v971
          %vm1011 = vcmp.le.s32.totalorder %v1007, %v971
          %vm1012 = vcmp.le.s32.totalorder %v1006, %v972
          %vm1013 = vcmp.le.s32.totalorder %v1007, %v972
          %vm1014 = vcmp.le.s32.totalorder %v1006, %v973
          %vm1015 = vcmp.le.s32.totalorder %v1007, %v973
          %vm1016 = vcmp.le.s32.totalorder %v1006, %v974
          %vm1017 = vcmp.le.s32.totalorder %v1007, %v974
          %vm1018 = vcmp.le.s32.totalorder %v1006, %v975
          %vm1019 = vcmp.le.s32.totalorder %v1007, %v975
          %vm1020 = vcmp.le.s32.totalorder %v1006, %v976
          %vm1021 = vcmp.le.s32.totalorder %v1007, %v976
          %vm1022 = vcmp.le.s32.totalorder %v1006, %v977
          %vm1023 = vcmp.le.s32.totalorder %v1007, %v977
          %vm1024 = vcmp.le.s32.totalorder %v1006, %v978
          %vm1025 = vcmp.le.s32.totalorder %v1007, %v978
          %vm1026 = vcmp.le.s32.totalorder %v1006, %v979
          %vm1027 = vcmp.le.s32.totalorder %v1007, %v979
          %vm1028 = vcmp.le.s32.totalorder %v1006, %v980
          %vm1029 = vcmp.le.s32.totalorder %v1007, %v980
          %vm1030 = vcmp.le.s32.totalorder %v1006, %v981
          %vm1031 = vcmp.le.s32.totalorder %v1007, %v981
          %vm1032 = vcmp.le.s32.totalorder %v1006, %v982
          %vm1033 = vcmp.le.s32.totalorder %v1007, %v982
          %vm1034 = vcmp.le.s32.totalorder %v1006, %v983
          %vm1035 = vcmp.le.s32.totalorder %v1007, %v983
          %vm1036 = vcmp.le.s32.totalorder %v1006, %v984
          %vm1037 = vcmp.le.s32.totalorder %v1007, %v984
          %vm1038 = vcmp.le.s32.totalorder %v1006, %v985
          %vm1039 = vcmp.le.s32.totalorder %v1007, %v985
          %vm1040 = vcmp.le.s32.totalorder %v1006, %v986
          %vm1041 = vcmp.le.s32.totalorder %v1007, %v986
          %vm1042 = vcmp.le.s32.totalorder %v1006, %v987
          %vm1043 = vcmp.le.s32.totalorder %v1007, %v987
          %vm1044 = vcmp.le.s32.totalorder %v1006, %v988
          %vm1045 = vcmp.le.s32.totalorder %v1007, %v988
          %vm1046 = vcmp.le.s32.totalorder %v1006, %v989
          %vm1047 = vcmp.le.s32.totalorder %v1007, %v989
          %vm1048 = vcmp.le.s32.totalorder %v1006, %v990
          %vm1049 = vcmp.le.s32.totalorder %v1007, %v990
          %vm1050 = vcmp.le.s32.totalorder %v1006, %v991
          %vm1051 = vcmp.le.s32.totalorder %v1007, %v991
          %vm1052 = vcmp.le.s32.totalorder %v1006, %v992
          %vm1053 = vcmp.le.s32.totalorder %v1007, %v992
          %vm1054 = vcmp.le.s32.totalorder %v1006, %v993
          %vm1055 = vcmp.le.s32.totalorder %v1007, %v993
          %vm1056 = vcmp.le.s32.totalorder %v1006, %v994
          %vm1057 = vcmp.le.s32.totalorder %v1007, %v994
          %vm1058 = vcmp.le.s32.totalorder %v1006, %v995
          %vm1059 = vcmp.le.s32.totalorder %v1007, %v995
          %vm1060 = vcmp.le.s32.totalorder %v1006, %v996
          %vm1061 = vcmp.le.s32.totalorder %v1007, %v996
          %vm1062 = vcmp.le.s32.totalorder %v1006, %v997
          %vm1063 = vcmp.le.s32.totalorder %v1007, %v997
          %vm1064 = vcmp.le.s32.totalorder %v1006, %v998
          %vm1065 = vcmp.le.s32.totalorder %v1007, %v998
          %vm1066 = vcmp.le.s32.totalorder %v1006, %v999
          %vm1067 = vcmp.le.s32.totalorder %v1007, %v999
          %vm1068 = vcmp.le.s32.totalorder %v1006, %v1000
          %vm1069 = vcmp.le.s32.totalorder %v1007, %v1000
          %vm1070 = vcmp.le.s32.totalorder %v1006, %v1001
          %vm1071 = vcmp.le.s32.totalorder %v1007, %v1001
          %v1072 = vsel %vm1008, %v778, -1e+09
          %v1073 = vsel %vm1009, %v780, -1e+09
          %v1074 = vsel %vm1010, %v782, -1e+09
          %v1075 = vsel %vm1011, %v784, -1e+09
          %v1076 = vsel %vm1012, %v788, -1e+09
          %v1077 = vsel %vm1013, %v790, -1e+09
          %v1078 = vsel %vm1014, %v792, -1e+09
          %v1079 = vsel %vm1015, %v794, -1e+09
          %v1080 = vsel %vm1016, %v798, -1e+09
          %v1081 = vsel %vm1017, %v800, -1e+09
          %v1082 = vsel %vm1018, %v802, -1e+09
          %v1083 = vsel %vm1019, %v804, -1e+09
          %v1084 = vsel %vm1020, %v808, -1e+09
          %v1085 = vsel %vm1021, %v810, -1e+09
          %v1086 = vsel %vm1022, %v812, -1e+09
          %v1087 = vsel %vm1023, %v814, -1e+09
          %v1088 = vsel %vm1024, %v818, -1e+09
          %v1089 = vsel %vm1025, %v820, -1e+09
          %v1090 = vsel %vm1026, %v822, -1e+09
          %v1091 = vsel %vm1027, %v824, -1e+09
          %v1092 = vsel %vm1028, %v828, -1e+09
          %v1093 = vsel %vm1029, %v830, -1e+09
          %v1094 = vsel %vm1030, %v832, -1e+09
          %v1095 = vsel %vm1031, %v834, -1e+09
          %v1096 = vsel %vm1032, %v838, -1e+09
          %v1097 = vsel %vm1033, %v840, -1e+09
          %v1098 = vsel %vm1034, %v842, -1e+09
          %v1099 = vsel %vm1035, %v844, -1e+09
          %v1100 = vsel %vm1036, %v848, -1e+09
          %v1101 = vsel %vm1037, %v850, -1e+09
          %v1102 = vsel %vm1038, %v852, -1e+09
          %v1103 = vsel %vm1039, %v854, -1e+09
          %v1104 = vsel %vm1040, %v858, -1e+09
          %v1105 = vsel %vm1041, %v860, -1e+09
          %v1106 = vsel %vm1042, %v862, -1e+09
          %v1107 = vsel %vm1043, %v864, -1e+09
          %v1108 = vsel %vm1044, %v868, -1e+09
          %v1109 = vsel %vm1045, %v870, -1e+09
          %v1110 = vsel %vm1046, %v872, -1e+09
          %v1111 = vsel %vm1047, %v874, -1e+09
          %v1112 = vsel %vm1048, %v878, -1e+09
          %v1113 = vsel %vm1049, %v880, -1e+09
          %v1114 = vsel %vm1050, %v882, -1e+09
          %v1115 = vsel %vm1051, %v884, -1e+09
          %v1116 = vsel %vm1052, %v888, -1e+09
          %v1117 = vsel %vm1053, %v890, -1e+09
          %v1118 = vsel %vm1054, %v892, -1e+09
          %v1119 = vsel %vm1055, %v894, -1e+09
          %v1120 = vsel %vm1056, %v898, -1e+09
          %v1121 = vsel %vm1057, %v900, -1e+09
          %v1122 = vsel %vm1058, %v902, -1e+09
          %v1123 = vsel %vm1059, %v904, -1e+09
          %v1124 = vsel %vm1060, %v908, -1e+09
          %v1125 = vsel %vm1061, %v910, -1e+09
          %v1126 = vsel %vm1062, %v912, -1e+09
          %v1127 = vsel %vm1063, %v914, -1e+09
          %v1128 = vsel %vm1064, %v918, -1e+09
          %v1129 = vsel %vm1065, %v920, -1e+09
          %v1130 = vsel %vm1066, %v922, -1e+09
          %v1131 = vsel %vm1067, %v924, -1e+09
          %v1132 = vsel %vm1068, %v928, -1e+09
          %v1133 = vsel %vm1069, %v930, -1e+09
          %v1134 = vsel %vm1070, %v932, -1e+09
          %v1135 = vsel %vm1071, %v934, -1e+09
          %v1136 = vld [vmem:[#allocation2] sm:$0xff]
          %v1137 = vld [vmem:[#allocation2 + $0x8] sm:$0xff]
          %v1138 = vld [vmem:[#allocation2 + $0x10] sm:$0xff]
          %v1139 = vld [vmem:[#allocation2 + $0x18] sm:$0xff]
          %v1140 = vld [vmem:[#allocation2 + $0x20] sm:$0xff]
          %v1141 = vld [vmem:[#allocation2 + $0x28] sm:$0xff]
          %v1142 = vld [vmem:[#allocation2 + $0x30] sm:$0xff]
          %v1143 = vld [vmem:[#allocation2 + $0x38] sm:$0xff]
          %v1144 = vld [vmem:[#allocation2 + $0x40] sm:$0xff]
          %v1145 = vld [vmem:[#allocation2 + $0x48] sm:$0xff]
          %v1146 = vld [vmem:[#allocation2 + $0x50] sm:$0xff]
          %v1147 = vld [vmem:[#allocation2 + $0x58] sm:$0xff]
          %v1148 = vld [vmem:[#allocation2 + $0x60] sm:$0xff]
          %v1149 = vld [vmem:[#allocation2 + $0x68] sm:$0xff]
          %v1150 = vld [vmem:[#allocation2 + $0x70] sm:$0xff]
          %v1151 = vld [vmem:[#allocation2 + $0x78] sm:$0xff]
          %v1152 = vld [vmem:[#allocation2 + $0x80] sm:$0xff]
          %v1153 = vld [vmem:[#allocation2 + $0x88] sm:$0xff]
          %v1154 = vld [vmem:[#allocation2 + $0x90] sm:$0xff]
          %v1155 = vld [vmem:[#allocation2 + $0x98] sm:$0xff]
          %v1156 = vld [vmem:[#allocation2 + $0xa0] sm:$0xff]
          %v1157 = vld [vmem:[#allocation2 + $0xa8] sm:$0xff]
          %v1158 = vld [vmem:[#allocation2 + $0xb0] sm:$0xff]
          %v1159 = vld [vmem:[#allocation2 + $0xb8] sm:$0xff]
          %v1160 = vld [vmem:[#allocation2 + $0xc0] sm:$0xff]
          %v1161 = vld [vmem:[#allocation2 + $0xc8] sm:$0xff]
          %v1162 = vld [vmem:[#allocation2 + $0xd0] sm:$0xff]
          %v1163 = vld [vmem:[#allocation2 + $0xd8] sm:$0xff]
          %v1164 = vld [vmem:[#allocation2 + $0xe0] sm:$0xff]
          %v1165 = vld [vmem:[#allocation2 + $0xe8] sm:$0xff]
          %v1166 = vld [vmem:[#allocation2 + $0xf0] sm:$0xff]
          %v1167 = vld [vmem:[#allocation2 + $0xf8] sm:$0xff]
          %v1168 = vmax.f32 %v1072, %v1073
          %1169 = vmax.xlane.f32.xlu0 %v1168
          %v1170 = vpop.xlane.xlu0 %1169
          %v1171 = vmax.f32 %v1074, %v1075
          %1172 = vmax.xlane.f32.xlu0 %v1171
          %v1173 = vpop.xlane.xlu0 %1172
          %v1174 = vmax.f32 %v1076, %v1077
          %1175 = vmax.xlane.f32.xlu0 %v1174
          %v1176 = vpop.xlane.xlu0 %1175
          %v1177 = vmax.f32 %v1078, %v1079
          %1178 = vmax.xlane.f32.xlu0 %v1177
          %v1179 = vpop.xlane.xlu0 %1178
          %v1180 = vmax.f32 %v1080, %v1081
          %1181 = vmax.xlane.f32.xlu0 %v1180
          %v1182 = vpop.xlane.xlu0 %1181
          %v1183 = vmax.f32 %v1082, %v1083
          %1184 = vmax.xlane.f32.xlu0 %v1183
          %v1185 = vpop.xlane.xlu0 %1184
          %v1186 = vmax.f32 %v1084, %v1085
          %1187 = vmax.xlane.f32.xlu0 %v1186
          %v1188 = vpop.xlane.xlu0 %1187
          %v1189 = vmax.f32 %v1086, %v1087
          %1190 = vmax.xlane.f32.xlu0 %v1189
          %v1191 = vpop.xlane.xlu0 %1190
          %v1192 = vmax.f32 %v1088, %v1089
          %1193 = vmax.xlane.f32.xlu0 %v1192
          %v1194 = vpop.xlane.xlu0 %1193
          %v1195 = vmax.f32 %v1090, %v1091
          %1196 = vmax.xlane.f32.xlu0 %v1195
          %v1197 = vpop.xlane.xlu0 %1196
          %v1198 = vmax.f32 %v1092, %v1093
          %1199 = vmax.xlane.f32.xlu0 %v1198
          %v1200 = vpop.xlane.xlu0 %1199
          %v1201 = vmax.f32 %v1094, %v1095
          %1202 = vmax.xlane.f32.xlu0 %v1201
          %v1203 = vpop.xlane.xlu0 %1202
          %v1204 = vmax.f32 %v1096, %v1097
          %1205 = vmax.xlane.f32.xlu0 %v1204
          %v1206 = vpop.xlane.xlu0 %1205
          %v1207 = vmax.f32 %v1098, %v1099
          %1208 = vmax.xlane.f32.xlu0 %v1207
          %v1209 = vpop.xlane.xlu0 %1208
          %v1210 = vmax.f32 %v1100, %v1101
          %1211 = vmax.xlane.f32.xlu0 %v1210
          %v1212 = vpop.xlane.xlu0 %1211
          %v1213 = vmax.f32 %v1102, %v1103
          %1214 = vmax.xlane.f32.xlu0 %v1213
          %v1215 = vpop.xlane.xlu0 %1214
          %v1216 = vmax.f32 %v1104, %v1105
          %1217 = vmax.xlane.f32.xlu0 %v1216
          %v1218 = vpop.xlane.xlu0 %1217
          %v1219 = vmax.f32 %v1106, %v1107
          %1220 = vmax.xlane.f32.xlu0 %v1219
          %v1221 = vpop.xlane.xlu0 %1220
          %v1222 = vmax.f32 %v1108, %v1109
          %1223 = vmax.xlane.f32.xlu0 %v1222
          %v1224 = vpop.xlane.xlu0 %1223
          %v1225 = vmax.f32 %v1110, %v1111
          %1226 = vmax.xlane.f32.xlu0 %v1225
          %v1227 = vpop.xlane.xlu0 %1226
          %v1228 = vmax.f32 %v1112, %v1113
          %1229 = vmax.xlane.f32.xlu0 %v1228
          %v1230 = vpop.xlane.xlu0 %1229
          %v1231 = vmax.f32 %v1114, %v1115
          %1232 = vmax.xlane.f32.xlu0 %v1231
          %v1233 = vpop.xlane.xlu0 %1232
          %v1234 = vmax.f32 %v1116, %v1117
          %1235 = vmax.xlane.f32.xlu0 %v1234
          %v1236 = vpop.xlane.xlu0 %1235
          %v1237 = vmax.f32 %v1118, %v1119
          %1238 = vmax.xlane.f32.xlu0 %v1237
          %v1239 = vpop.xlane.xlu0 %1238
          %v1240 = vmax.f32 %v1120, %v1121
          %1241 = vmax.xlane.f32.xlu0 %v1240
          %v1242 = vpop.xlane.xlu0 %1241
          %v1243 = vmax.f32 %v1122, %v1123
          %1244 = vmax.xlane.f32.xlu0 %v1243
          %v1245 = vpop.xlane.xlu0 %1244
          %v1246 = vmax.f32 %v1124, %v1125
          %1247 = vmax.xlane.f32.xlu0 %v1246
          %v1248 = vpop.xlane.xlu0 %1247
          %v1249 = vmax.f32 %v1126, %v1127
          %1250 = vmax.xlane.f32.xlu0 %v1249
          %v1251 = vpop.xlane.xlu0 %1250
          %v1252 = vmax.f32 %v1128, %v1129
          %1253 = vmax.xlane.f32.xlu0 %v1252
          %v1254 = vpop.xlane.xlu0 %1253
          %v1255 = vmax.f32 %v1130, %v1131
          %1256 = vmax.xlane.f32.xlu0 %v1255
          %v1257 = vpop.xlane.xlu0 %1256
          %v1258 = vmax.f32 %v1132, %v1133
          %1259 = vmax.xlane.f32.xlu0 %v1258
          %v1260 = vpop.xlane.xlu0 %1259
          %v1261 = vmax.f32 %v1134, %v1135
          %1262 = vmax.xlane.f32.xlu0 %v1261
          %v1263 = vpop.xlane.xlu0 %1262
          %v1264 = vmax.f32 %v1136, %v1170
          %v1265 = vmax.f32 %v1137, %v1173
          %v1266 = vmax.f32 %v1138, %v1176
          %v1267 = vmax.f32 %v1139, %v1179
          %v1268 = vmax.f32 %v1140, %v1182
          %v1269 = vmax.f32 %v1141, %v1185
          %v1270 = vmax.f32 %v1142, %v1188
          %v1271 = vmax.f32 %v1143, %v1191
          %v1272 = vmax.f32 %v1144, %v1194
          %v1273 = vmax.f32 %v1145, %v1197
          %v1274 = vmax.f32 %v1146, %v1200
          %v1275 = vmax.f32 %v1147, %v1203
          %v1276 = vmax.f32 %v1148, %v1206
          %v1277 = vmax.f32 %v1149, %v1209
          %v1278 = vmax.f32 %v1150, %v1212
          %v1279 = vmax.f32 %v1151, %v1215
          %v1280 = vmax.f32 %v1152, %v1218
          %v1281 = vmax.f32 %v1153, %v1221
          %v1282 = vmax.f32 %v1154, %v1224
          %v1283 = vmax.f32 %v1155, %v1227
          %v1284 = vmax.f32 %v1156, %v1230
          %v1285 = vmax.f32 %v1157, %v1233
          %v1286 = vmax.f32 %v1158, %v1236
          %v1287 = vmax.f32 %v1159, %v1239
          %v1288 = vmax.f32 %v1160, %v1242
          %v1289 = vmax.f32 %v1161, %v1245
          %v1290 = vmax.f32 %v1162, %v1248
          %v1291 = vmax.f32 %v1163, %v1251
          %v1292 = vmax.f32 %v1164, %v1254
          %v1293 = vmax.f32 %v1165, %v1257
          %v1294 = vmax.f32 %v1166, %v1260
          %v1295 = vmax.f32 %v1167, %v1263
          %v1296 = vsub.f32 %v1136, %v1264
          %v1297 = vsub.f32 %v1137, %v1265
          %v1298 = vsub.f32 %v1138, %v1266
          %v1299 = vsub.f32 %v1139, %v1267
          %v1300 = vsub.f32 %v1140, %v1268
          %v1301 = vsub.f32 %v1141, %v1269
          %v1302 = vsub.f32 %v1142, %v1270
          %v1303 = vsub.f32 %v1143, %v1271
          %v1304 = vsub.f32 %v1144, %v1272
          %v1305 = vsub.f32 %v1145, %v1273
          %v1306 = vsub.f32 %v1146, %v1274
          %v1307 = vsub.f32 %v1147, %v1275
          %v1308 = vsub.f32 %v1148, %v1276
          %v1309 = vsub.f32 %v1149, %v1277
          %v1310 = vsub.f32 %v1150, %v1278
          %v1311 = vsub.f32 %v1151, %v1279
          %v1312 = vsub.f32 %v1152, %v1280
          %v1313 = vsub.f32 %v1153, %v1281
          %v1314 = vsub.f32 %v1154, %v1282
          %v1315 = vsub.f32 %v1155, %v1283
          %v1316 = vsub.f32 %v1156, %v1284
          %v1317 = vsub.f32 %v1157, %v1285
          %v1318 = vsub.f32 %v1158, %v1286
          %v1319 = vsub.f32 %v1159, %v1287
          %v1320 = vsub.f32 %v1160, %v1288
          %v1321 = vsub.f32 %v1161, %v1289
          %v1322 = vsub.f32 %v1162, %v1290
          %v1323 = vsub.f32 %v1163, %v1291
          %v1324 = vsub.f32 %v1164, %v1292
          %v1325 = vsub.f32 %v1165, %v1293
          %v1326 = vsub.f32 %v1166, %v1294
          %v1327 = vsub.f32 %v1167, %v1295
          %v1328 = vmul.f32 %v1296, 1.442695
          %v1329 = vpow.pop %v1328
          %v1330 = vmul.f32 %v1297, 1.442695
          %v1331 = vpow.pop %v1330
          %v1332 = vmul.f32 %v1298, 1.442695
          %v1333 = vpow.pop %v1332
          %v1334 = vmul.f32 %v1299, 1.442695
          %v1335 = vpow.pop %v1334
          %v1336 = vmul.f32 %v1300, 1.442695
          %v1337 = vpow.pop %v1336
          %v1338 = vmul.f32 %v1301, 1.442695
          %v1339 = vpow.pop %v1338
          %v1340 = vmul.f32 %v1302, 1.442695
          %v1341 = vpow.pop %v1340
          %v1342 = vmul.f32 %v1303, 1.442695
          %v1343 = vpow.pop %v1342
          %v1344 = vmul.f32 %v1304, 1.442695
          %v1345 = vpow.pop %v1344
          %v1346 = vmul.f32 %v1305, 1.442695
          %v1347 = vpow.pop %v1346
          %v1348 = vmul.f32 %v1306, 1.442695
          %v1349 = vpow.pop %v1348
          %v1350 = vmul.f32 %v1307, 1.442695
          %v1351 = vpow.pop %v1350
          %v1352 = vmul.f32 %v1308, 1.442695
          %v1353 = vpow.pop %v1352
          %v1354 = vmul.f32 %v1309, 1.442695
          %v1355 = vpow.pop %v1354
          %v1356 = vmul.f32 %v1310, 1.442695
          %v1357 = vpow.pop %v1356
          %v1358 = vmul.f32 %v1311, 1.442695
          %v1359 = vpow.pop %v1358
          %v1360 = vmul.f32 %v1312, 1.442695
          %v1361 = vpow.pop %v1360
          %v1362 = vmul.f32 %v1313, 1.442695
          %v1363 = vpow.pop %v1362
          %v1364 = vmul.f32 %v1314, 1.442695
          %v1365 = vpow.pop %v1364
          %v1366 = vmul.f32 %v1315, 1.442695
          %v1367 = vpow.pop %v1366
          %v1368 = vmul.f32 %v1316, 1.442695
          %v1369 = vpow.pop %v1368
          %v1370 = vmul.f32 %v1317, 1.442695
          %v1371 = vpow.pop %v1370
          %v1372 = vmul.f32 %v1318, 1.442695
          %v1373 = vpow.pop %v1372
          %v1374 = vmul.f32 %v1319, 1.442695
          %v1375 = vpow.pop %v1374
          %v1376 = vmul.f32 %v1320, 1.442695
          %v1377 = vpow.pop %v1376
          %v1378 = vmul.f32 %v1321, 1.442695
          %v1379 = vpow.pop %v1378
          %v1380 = vmul.f32 %v1322, 1.442695
          %v1381 = vpow.pop %v1380
          %v1382 = vmul.f32 %v1323, 1.442695
          %v1383 = vpow.pop %v1382
          %v1384 = vmul.f32 %v1324, 1.442695
          %v1385 = vpow.pop %v1384
          %v1386 = vmul.f32 %v1325, 1.442695
          %v1387 = vpow.pop %v1386
          %v1388 = vmul.f32 %v1326, 1.442695
          %v1389 = vpow.pop %v1388
          %v1390 = vmul.f32 %v1327, 1.442695
          %v1391 = vpow.pop %v1390
          %1393 = vset.pattern.permute.xlu0 0
          %1394 = vperm.xlu0 %1393, %v1264
          %v1395 = vpop.permute.xlu0 %1394
          %1398 = vset.pattern.permute.xlu0 0
          %1399 = vperm.xlu0 %1398, %v1265
          %v1400 = vpop.permute.xlu0 %1399
          %1403 = vset.pattern.permute.xlu0 0
          %1404 = vperm.xlu0 %1403, %v1266
          %v1405 = vpop.permute.xlu0 %1404
          %1408 = vset.pattern.permute.xlu0 0
          %1409 = vperm.xlu0 %1408, %v1267
          %v1410 = vpop.permute.xlu0 %1409
          %1413 = vset.pattern.permute.xlu0 0
          %1414 = vperm.xlu0 %1413, %v1268
          %v1415 = vpop.permute.xlu0 %1414
          %1418 = vset.pattern.permute.xlu0 0
          %1419 = vperm.xlu0 %1418, %v1269
          %v1420 = vpop.permute.xlu0 %1419
          %1423 = vset.pattern.permute.xlu0 0
          %1424 = vperm.xlu0 %1423, %v1270
          %v1425 = vpop.permute.xlu0 %1424
          %1428 = vset.pattern.permute.xlu0 0
          %1429 = vperm.xlu0 %1428, %v1271
          %v1430 = vpop.permute.xlu0 %1429
          %1433 = vset.pattern.permute.xlu0 0
          %1434 = vperm.xlu0 %1433, %v1272
          %v1435 = vpop.permute.xlu0 %1434
          %1438 = vset.pattern.permute.xlu0 0
          %1439 = vperm.xlu0 %1438, %v1273
          %v1440 = vpop.permute.xlu0 %1439
          %1443 = vset.pattern.permute.xlu0 0
          %1444 = vperm.xlu0 %1443, %v1274
          %v1445 = vpop.permute.xlu0 %1444
          %1448 = vset.pattern.permute.xlu0 0
          %1449 = vperm.xlu0 %1448, %v1275
          %v1450 = vpop.permute.xlu0 %1449
          %1453 = vset.pattern.permute.xlu0 0
          %1454 = vperm.xlu0 %1453, %v1276
          %v1455 = vpop.permute.xlu0 %1454
          %1458 = vset.pattern.permute.xlu0 0
          %1459 = vperm.xlu0 %1458, %v1277
          %v1460 = vpop.permute.xlu0 %1459
          %1463 = vset.pattern.permute.xlu0 0
          %1464 = vperm.xlu0 %1463, %v1278
          %v1465 = vpop.permute.xlu0 %1464
          %1468 = vset.pattern.permute.xlu0 0
          %1469 = vperm.xlu0 %1468, %v1279
          %v1470 = vpop.permute.xlu0 %1469
          %1473 = vset.pattern.permute.xlu0 0
          %1474 = vperm.xlu0 %1473, %v1280
          %v1475 = vpop.permute.xlu0 %1474
          %1478 = vset.pattern.permute.xlu0 0
          %1479 = vperm.xlu0 %1478, %v1281
          %v1480 = vpop.permute.xlu0 %1479
          %1483 = vset.pattern.permute.xlu0 0
          %1484 = vperm.xlu0 %1483, %v1282
          %v1485 = vpop.permute.xlu0 %1484
          %1488 = vset.pattern.permute.xlu0 0
          %1489 = vperm.xlu0 %1488, %v1283
          %v1490 = vpop.permute.xlu0 %1489
          %1493 = vset.pattern.permute.xlu0 0
          %1494 = vperm.xlu0 %1493, %v1284
          %v1495 = vpop.permute.xlu0 %1494
          %1498 = vset.pattern.permute.xlu0 0
          %1499 = vperm.xlu0 %1498, %v1285
          %v1500 = vpop.permute.xlu0 %1499
          %1503 = vset.pattern.permute.xlu0 0
          %1504 = vperm.xlu0 %1503, %v1286
          %v1505 = vpop.permute.xlu0 %1504
          %1508 = vset.pattern.permute.xlu0 0
          %1509 = vperm.xlu0 %1508, %v1287
          %v1510 = vpop.permute.xlu0 %1509
          %1513 = vset.pattern.permute.xlu0 0
          %1514 = vperm.xlu0 %1513, %v1288
          %v1515 = vpop.permute.xlu0 %1514
          %1518 = vset.pattern.permute.xlu0 0
          %1519 = vperm.xlu0 %1518, %v1289
          %v1520 = vpop.permute.xlu0 %1519
          %1523 = vset.pattern.permute.xlu0 0
          %1524 = vperm.xlu0 %1523, %v1290
          %v1525 = vpop.permute.xlu0 %1524
          %1528 = vset.pattern.permute.xlu0 0
          %1529 = vperm.xlu0 %1528, %v1291
          %v1530 = vpop.permute.xlu0 %1529
          %1533 = vset.pattern.permute.xlu0 0
          %1534 = vperm.xlu0 %1533, %v1292
          %v1535 = vpop.permute.xlu0 %1534
          %1538 = vset.pattern.permute.xlu0 0
          %1539 = vperm.xlu0 %1538, %v1293
          %v1540 = vpop.permute.xlu0 %1539
          %1543 = vset.pattern.permute.xlu0 0
          %1544 = vperm.xlu0 %1543, %v1294
          %v1545 = vpop.permute.xlu0 %1544
          %1548 = vset.pattern.permute.xlu0 0
          %1549 = vperm.xlu0 %1548, %v1295
          %v1550 = vpop.permute.xlu0 %1549
          %v1552 = vsub.f32 %v1072, %v1395
          %v1553 = vsub.f32 %v1073, %v1395
          %v1554 = vsub.f32 %v1074, %v1400
          %v1555 = vsub.f32 %v1075, %v1400
          %v1556 = vsub.f32 %v1076, %v1405
          %v1557 = vsub.f32 %v1077, %v1405
          %v1558 = vsub.f32 %v1078, %v1410
          %v1559 = vsub.f32 %v1079, %v1410
          %v1560 = vsub.f32 %v1080, %v1415
          %v1561 = vsub.f32 %v1081, %v1415
          %v1562 = vsub.f32 %v1082, %v1420
          %v1563 = vsub.f32 %v1083, %v1420
          %v1564 = vsub.f32 %v1084, %v1425
          %v1565 = vsub.f32 %v1085, %v1425
          %v1566 = vsub.f32 %v1086, %v1430
          %v1567 = vsub.f32 %v1087, %v1430
          %v1568 = vsub.f32 %v1088, %v1435
          %v1569 = vsub.f32 %v1089, %v1435
          %v1570 = vsub.f32 %v1090, %v1440
          %v1571 = vsub.f32 %v1091, %v1440
          %v1572 = vsub.f32 %v1092, %v1445
          %v1573 = vsub.f32 %v1093, %v1445
          %v1574 = vsub.f32 %v1094, %v1450
          %v1575 = vsub.f32 %v1095, %v1450
          %v1576 = vsub.f32 %v1096, %v1455
          %v1577 = vsub.f32 %v1097, %v1455
          %v1578 = vsub.f32 %v1098, %v1460
          %v1579 = vsub.f32 %v1099, %v1460
          %v1580 = vsub.f32 %v1100, %v1465
          %v1581 = vsub.f32 %v1101, %v1465
          %v1582 = vsub.f32 %v1102, %v1470
          %v1583 = vsub.f32 %v1103, %v1470
          %v1584 = vsub.f32 %v1104, %v1475
          %v1585 = vsub.f32 %v1105, %v1475
          %v1586 = vsub.f32 %v1106, %v1480
          %v1587 = vsub.f32 %v1107, %v1480
          %v1588 = vsub.f32 %v1108, %v1485
          %v1589 = vsub.f32 %v1109, %v1485
          %v1590 = vsub.f32 %v1110, %v1490
          %v1591 = vsub.f32 %v1111, %v1490
          %v1592 = vsub.f32 %v1112, %v1495
          %v1593 = vsub.f32 %v1113, %v1495
          %v1594 = vsub.f32 %v1114, %v1500
          %v1595 = vsub.f32 %v1115, %v1500
          %v1596 = vsub.f32 %v1116, %v1505
          %v1597 = vsub.f32 %v1117, %v1505
          %v1598 = vsub.f32 %v1118, %v1510
          %v1599 = vsub.f32 %v1119, %v1510
          %v1600 = vsub.f32 %v1120, %v1515
          %v1601 = vsub.f32 %v1121, %v1515
          %v1602 = vsub.f32 %v1122, %v1520
          %v1603 = vsub.f32 %v1123, %v1520
          %v1604 = vsub.f32 %v1124, %v1525
          %v1605 = vsub.f32 %v1125, %v1525
          %v1606 = vsub.f32 %v1126, %v1530
          %v1607 = vsub.f32 %v1127, %v1530
          %v1608 = vsub.f32 %v1128, %v1535
          %v1609 = vsub.f32 %v1129, %v1535
          %v1610 = vsub.f32 %v1130, %v1540
          %v1611 = vsub.f32 %v1131, %v1540
          %v1612 = vsub.f32 %v1132, %v1545
          %v1613 = vsub.f32 %v1133, %v1545
          %v1614 = vsub.f32 %v1134, %v1550
          %v1615 = vsub.f32 %v1135, %v1550
          %v1616 = vmul.f32 %v1552, 1.442695
          %v1617 = vpow.pop %v1616
          %v1618 = vmul.f32 %v1553, 1.442695
          %v1619 = vpow.pop %v1618
          %v1620 = vmul.f32 %v1554, 1.442695
          %v1621 = vpow.pop %v1620
          %v1622 = vmul.f32 %v1555, 1.442695
          %v1623 = vpow.pop %v1622
          %v1624 = vmul.f32 %v1556, 1.442695
          %v1625 = vpow.pop %v1624
          %v1626 = vmul.f32 %v1557, 1.442695
          %v1627 = vpow.pop %v1626
          %v1628 = vmul.f32 %v1558, 1.442695
          %v1629 = vpow.pop %v1628
          %v1630 = vmul.f32 %v1559, 1.442695
          %v1631 = vpow.pop %v1630
          %v1632 = vmul.f32 %v1560, 1.442695
          %v1633 = vpow.pop %v1632
          %v1634 = vmul.f32 %v1561, 1.442695
          %v1635 = vpow.pop %v1634
          %v1636 = vmul.f32 %v1562, 1.442695
          %v1637 = vpow.pop %v1636
          %v1638 = vmul.f32 %v1563, 1.442695
          %v1639 = vpow.pop %v1638
          %v1640 = vmul.f32 %v1564, 1.442695
          %v1641 = vpow.pop %v1640
          %v1642 = vmul.f32 %v1565, 1.442695
          %v1643 = vpow.pop %v1642
          %v1644 = vmul.f32 %v1566, 1.442695
          %v1645 = vpow.pop %v1644
          %v1646 = vmul.f32 %v1567, 1.442695
          %v1647 = vpow.pop %v1646
          %v1648 = vmul.f32 %v1568, 1.442695
          %v1649 = vpow.pop %v1648
          %v1650 = vmul.f32 %v1569, 1.442695
          %v1651 = vpow.pop %v1650
          %v1652 = vmul.f32 %v1570, 1.442695
          %v1653 = vpow.pop %v1652
          %v1654 = vmul.f32 %v1571, 1.442695
          %v1655 = vpow.pop %v1654
          %v1656 = vmul.f32 %v1572, 1.442695
          %v1657 = vpow.pop %v1656
          %v1658 = vmul.f32 %v1573, 1.442695
          %v1659 = vpow.pop %v1658
          %v1660 = vmul.f32 %v1574, 1.442695
          %v1661 = vpow.pop %v1660
          %v1662 = vmul.f32 %v1575, 1.442695
          %v1663 = vpow.pop %v1662
          %v1664 = vmul.f32 %v1576, 1.442695
          %v1665 = vpow.pop %v1664
          %v1666 = vmul.f32 %v1577, 1.442695
          %v1667 = vpow.pop %v1666
          %v1668 = vmul.f32 %v1578, 1.442695
          %v1669 = vpow.pop %v1668
          %v1670 = vmul.f32 %v1579, 1.442695
          %v1671 = vpow.pop %v1670
          %v1672 = vmul.f32 %v1580, 1.442695
          %v1673 = vpow.pop %v1672
          %v1674 = vmul.f32 %v1581, 1.442695
          %v1675 = vpow.pop %v1674
          %v1676 = vmul.f32 %v1582, 1.442695
          %v1677 = vpow.pop %v1676
          %v1678 = vmul.f32 %v1583, 1.442695
          %v1679 = vpow.pop %v1678
          %v1680 = vmul.f32 %v1584, 1.442695
          %v1681 = vpow.pop %v1680
          %v1682 = vmul.f32 %v1585, 1.442695
          %v1683 = vpow.pop %v1682
          %v1684 = vmul.f32 %v1586, 1.442695
          %v1685 = vpow.pop %v1684
          %v1686 = vmul.f32 %v1587, 1.442695
          %v1687 = vpow.pop %v1686
          %v1688 = vmul.f32 %v1588, 1.442695
          %v1689 = vpow.pop %v1688
          %v1690 = vmul.f32 %v1589, 1.442695
          %v1691 = vpow.pop %v1690
          %v1692 = vmul.f32 %v1590, 1.442695
          %v1693 = vpow.pop %v1692
          %v1694 = vmul.f32 %v1591, 1.442695
          %v1695 = vpow.pop %v1694
          %v1696 = vmul.f32 %v1592, 1.442695
          %v1697 = vpow.pop %v1696
          %v1698 = vmul.f32 %v1593, 1.442695
          %v1699 = vpow.pop %v1698
          %v1700 = vmul.f32 %v1594, 1.442695
          %v1701 = vpow.pop %v1700
          %v1702 = vmul.f32 %v1595, 1.442695
          %v1703 = vpow.pop %v1702
          %v1704 = vmul.f32 %v1596, 1.442695
          %v1705 = vpow.pop %v1704
          %v1706 = vmul.f32 %v1597, 1.442695
          %v1707 = vpow.pop %v1706
          %v1708 = vmul.f32 %v1598, 1.442695
          %v1709 = vpow.pop %v1708
          %v1710 = vmul.f32 %v1599, 1.442695
          %v1711 = vpow.pop %v1710
          %v1712 = vmul.f32 %v1600, 1.442695
          %v1713 = vpow.pop %v1712
          %v1714 = vmul.f32 %v1601, 1.442695
          %v1715 = vpow.pop %v1714
          %v1716 = vmul.f32 %v1602, 1.442695
          %v1717 = vpow.pop %v1716
          %v1718 = vmul.f32 %v1603, 1.442695
          %v1719 = vpow.pop %v1718
          %v1720 = vmul.f32 %v1604, 1.442695
          %v1721 = vpow.pop %v1720
          %v1722 = vmul.f32 %v1605, 1.442695
          %v1723 = vpow.pop %v1722
          %v1724 = vmul.f32 %v1606, 1.442695
          %v1725 = vpow.pop %v1724
          %v1726 = vmul.f32 %v1607, 1.442695
          %v1727 = vpow.pop %v1726
          %v1728 = vmul.f32 %v1608, 1.442695
          %v1729 = vpow.pop %v1728
          %v1730 = vmul.f32 %v1609, 1.442695
          %v1731 = vpow.pop %v1730
          %v1732 = vmul.f32 %v1610, 1.442695
          %v1733 = vpow.pop %v1732
          %v1734 = vmul.f32 %v1611, 1.442695
          %v1735 = vpow.pop %v1734
          %v1736 = vmul.f32 %v1612, 1.442695
          %v1737 = vpow.pop %v1736
          %v1738 = vmul.f32 %v1613, 1.442695
          %v1739 = vpow.pop %v1738
          %v1740 = vmul.f32 %v1614, 1.442695
          %v1741 = vpow.pop %v1740
          %v1742 = vmul.f32 %v1615, 1.442695
          %v1743 = vpow.pop %v1742
          %v1744 = vld [vmem:[#allocation3] sm:$0xff]
          %v1745 = vld [vmem:[#allocation3 + $0x8] sm:$0xff]
          %v1746 = vld [vmem:[#allocation3 + $0x10] sm:$0xff]
          %v1747 = vld [vmem:[#allocation3 + $0x18] sm:$0xff]
          %v1748 = vld [vmem:[#allocation3 + $0x20] sm:$0xff]
          %v1749 = vld [vmem:[#allocation3 + $0x28] sm:$0xff]
          %v1750 = vld [vmem:[#allocation3 + $0x30] sm:$0xff]
          %v1751 = vld [vmem:[#allocation3 + $0x38] sm:$0xff]
          %v1752 = vld [vmem:[#allocation3 + $0x40] sm:$0xff]
          %v1753 = vld [vmem:[#allocation3 + $0x48] sm:$0xff]
          %v1754 = vld [vmem:[#allocation3 + $0x50] sm:$0xff]
          %v1755 = vld [vmem:[#allocation3 + $0x58] sm:$0xff]
          %v1756 = vld [vmem:[#allocation3 + $0x60] sm:$0xff]
          %v1757 = vld [vmem:[#allocation3 + $0x68] sm:$0xff]
          %v1758 = vld [vmem:[#allocation3 + $0x70] sm:$0xff]
          %v1759 = vld [vmem:[#allocation3 + $0x78] sm:$0xff]
          %v1760 = vld [vmem:[#allocation3 + $0x80] sm:$0xff]
          %v1761 = vld [vmem:[#allocation3 + $0x88] sm:$0xff]
          %v1762 = vld [vmem:[#allocation3 + $0x90] sm:$0xff]
          %v1763 = vld [vmem:[#allocation3 + $0x98] sm:$0xff]
          %v1764 = vld [vmem:[#allocation3 + $0xa0] sm:$0xff]
          %v1765 = vld [vmem:[#allocation3 + $0xa8] sm:$0xff]
          %v1766 = vld [vmem:[#allocation3 + $0xb0] sm:$0xff]
          %v1767 = vld [vmem:[#allocation3 + $0xb8] sm:$0xff]
          %v1768 = vld [vmem:[#allocation3 + $0xc0] sm:$0xff]
          %v1769 = vld [vmem:[#allocation3 + $0xc8] sm:$0xff]
          %v1770 = vld [vmem:[#allocation3 + $0xd0] sm:$0xff]
          %v1771 = vld [vmem:[#allocation3 + $0xd8] sm:$0xff]
          %v1772 = vld [vmem:[#allocation3 + $0xe0] sm:$0xff]
          %v1773 = vld [vmem:[#allocation3 + $0xe8] sm:$0xff]
          %v1774 = vld [vmem:[#allocation3 + $0xf0] sm:$0xff]
          %v1775 = vld [vmem:[#allocation3 + $0xf8] sm:$0xff]
          %v1776 = vmul.f32 %v1329, %v1744
          %v1777 = vmul.f32 %v1331, %v1745
          %v1778 = vmul.f32 %v1333, %v1746
          %v1779 = vmul.f32 %v1335, %v1747
          %v1780 = vmul.f32 %v1337, %v1748
          %v1781 = vmul.f32 %v1339, %v1749
          %v1782 = vmul.f32 %v1341, %v1750
          %v1783 = vmul.f32 %v1343, %v1751
          %v1784 = vmul.f32 %v1345, %v1752
          %v1785 = vmul.f32 %v1347, %v1753
          %v1786 = vmul.f32 %v1349, %v1754
          %v1787 = vmul.f32 %v1351, %v1755
          %v1788 = vmul.f32 %v1353, %v1756
          %v1789 = vmul.f32 %v1355, %v1757
          %v1790 = vmul.f32 %v1357, %v1758
          %v1791 = vmul.f32 %v1359, %v1759
          %v1792 = vmul.f32 %v1361, %v1760
          %v1793 = vmul.f32 %v1363, %v1761
          %v1794 = vmul.f32 %v1365, %v1762
          %v1795 = vmul.f32 %v1367, %v1763
          %v1796 = vmul.f32 %v1369, %v1764
          %v1797 = vmul.f32 %v1371, %v1765
          %v1798 = vmul.f32 %v1373, %v1766
          %v1799 = vmul.f32 %v1375, %v1767
          %v1800 = vmul.f32 %v1377, %v1768
          %v1801 = vmul.f32 %v1379, %v1769
          %v1802 = vmul.f32 %v1381, %v1770
          %v1803 = vmul.f32 %v1383, %v1771
          %v1804 = vmul.f32 %v1385, %v1772
          %v1805 = vmul.f32 %v1387, %v1773
          %v1806 = vmul.f32 %v1389, %v1774
          %v1807 = vmul.f32 %v1391, %v1775
          %v1808 = vadd.f32 %v1617, %v1619
          %1809 = vadd.xlane.f32.xlu0 %v1808
          %v1810 = vpop.xlane.xlu0 %1809
          %v1811 = vadd.f32 %v1621, %v1623
          %1812 = vadd.xlane.f32.xlu0 %v1811
          %v1813 = vpop.xlane.xlu0 %1812
          %v1814 = vadd.f32 %v1625, %v1627
          %1815 = vadd.xlane.f32.xlu0 %v1814
          %v1816 = vpop.xlane.xlu0 %1815
          %v1817 = vadd.f32 %v1629, %v1631
          %1818 = vadd.xlane.f32.xlu0 %v1817
          %v1819 = vpop.xlane.xlu0 %1818
          %v1820 = vadd.f32 %v1633, %v1635
          %1821 = vadd.xlane.f32.xlu0 %v1820
          %v1822 = vpop.xlane.xlu0 %1821
          %v1823 = vadd.f32 %v1637, %v1639
          %1824 = vadd.xlane.f32.xlu0 %v1823
          %v1825 = vpop.xlane.xlu0 %1824
          %v1826 = vadd.f32 %v1641, %v1643
          %1827 = vadd.xlane.f32.xlu0 %v1826
          %v1828 = vpop.xlane.xlu0 %1827
          %v1829 = vadd.f32 %v1645, %v1647
          %1830 = vadd.xlane.f32.xlu0 %v1829
          %v1831 = vpop.xlane.xlu0 %1830
          %v1832 = vadd.f32 %v1649, %v1651
          %1833 = vadd.xlane.f32.xlu0 %v1832
          %v1834 = vpop.xlane.xlu0 %1833
          %v1835 = vadd.f32 %v1653, %v1655
          %1836 = vadd.xlane.f32.xlu0 %v1835
          %v1837 = vpop.xlane.xlu0 %1836
          %v1838 = vadd.f32 %v1657, %v1659
          %1839 = vadd.xlane.f32.xlu0 %v1838
          %v1840 = vpop.xlane.xlu0 %1839
          %v1841 = vadd.f32 %v1661, %v1663
          %1842 = vadd.xlane.f32.xlu0 %v1841
          %v1843 = vpop.xlane.xlu0 %1842
          %v1844 = vadd.f32 %v1665, %v1667
          %1845 = vadd.xlane.f32.xlu0 %v1844
          %v1846 = vpop.xlane.xlu0 %1845
          %v1847 = vadd.f32 %v1669, %v1671
          %1848 = vadd.xlane.f32.xlu0 %v1847
          %v1849 = vpop.xlane.xlu0 %1848
          %v1850 = vadd.f32 %v1673, %v1675
          %1851 = vadd.xlane.f32.xlu0 %v1850
          %v1852 = vpop.xlane.xlu0 %1851
          %v1853 = vadd.f32 %v1677, %v1679
          %1854 = vadd.xlane.f32.xlu0 %v1853
          %v1855 = vpop.xlane.xlu0 %1854
          %v1856 = vadd.f32 %v1681, %v1683
          %1857 = vadd.xlane.f32.xlu0 %v1856
          %v1858 = vpop.xlane.xlu0 %1857
          %v1859 = vadd.f32 %v1685, %v1687
          %1860 = vadd.xlane.f32.xlu0 %v1859
          %v1861 = vpop.xlane.xlu0 %1860
          %v1862 = vadd.f32 %v1689, %v1691
          %1863 = vadd.xlane.f32.xlu0 %v1862
          %v1864 = vpop.xlane.xlu0 %1863
          %v1865 = vadd.f32 %v1693, %v1695
          %1866 = vadd.xlane.f32.xlu0 %v1865
          %v1867 = vpop.xlane.xlu0 %1866
          %v1868 = vadd.f32 %v1697, %v1699
          %1869 = vadd.xlane.f32.xlu0 %v1868
          %v1870 = vpop.xlane.xlu0 %1869
          %v1871 = vadd.f32 %v1701, %v1703
          %1872 = vadd.xlane.f32.xlu0 %v1871
          %v1873 = vpop.xlane.xlu0 %1872
          %v1874 = vadd.f32 %v1705, %v1707
          %1875 = vadd.xlane.f32.xlu0 %v1874
          %v1876 = vpop.xlane.xlu0 %1875
          %v1877 = vadd.f32 %v1709, %v1711
          %1878 = vadd.xlane.f32.xlu0 %v1877
          %v1879 = vpop.xlane.xlu0 %1878
          %v1880 = vadd.f32 %v1713, %v1715
          %1881 = vadd.xlane.f32.xlu0 %v1880
          %v1882 = vpop.xlane.xlu0 %1881
          %v1883 = vadd.f32 %v1717, %v1719
          %1884 = vadd.xlane.f32.xlu0 %v1883
          %v1885 = vpop.xlane.xlu0 %1884
          %v1886 = vadd.f32 %v1721, %v1723
          %1887 = vadd.xlane.f32.xlu0 %v1886
          %v1888 = vpop.xlane.xlu0 %1887
          %v1889 = vadd.f32 %v1725, %v1727
          %1890 = vadd.xlane.f32.xlu0 %v1889
          %v1891 = vpop.xlane.xlu0 %1890
          %v1892 = vadd.f32 %v1729, %v1731
          %1893 = vadd.xlane.f32.xlu0 %v1892
          %v1894 = vpop.xlane.xlu0 %1893
          %v1895 = vadd.f32 %v1733, %v1735
          %1896 = vadd.xlane.f32.xlu0 %v1895
          %v1897 = vpop.xlane.xlu0 %1896
          %v1898 = vadd.f32 %v1737, %v1739
          %1899 = vadd.xlane.f32.xlu0 %v1898
          %v1900 = vpop.xlane.xlu0 %1899
          %v1901 = vadd.f32 %v1741, %v1743
          %1902 = vadd.xlane.f32.xlu0 %v1901
          %v1903 = vpop.xlane.xlu0 %1902
          %v1904 = vadd.f32 %v1776, %v1810
          %v1905 = vadd.f32 %v1777, %v1813
          %v1906 = vadd.f32 %v1778, %v1816
          %v1907 = vadd.f32 %v1779, %v1819
          %v1908 = vadd.f32 %v1780, %v1822
          %v1909 = vadd.f32 %v1781, %v1825
          %v1910 = vadd.f32 %v1782, %v1828
          %v1911 = vadd.f32 %v1783, %v1831
          %v1912 = vadd.f32 %v1784, %v1834
          %v1913 = vadd.f32 %v1785, %v1837
          %v1914 = vadd.f32 %v1786, %v1840
          %v1915 = vadd.f32 %v1787, %v1843
          %v1916 = vadd.f32 %v1788, %v1846
          %v1917 = vadd.f32 %v1789, %v1849
          %v1918 = vadd.f32 %v1790, %v1852
          %v1919 = vadd.f32 %v1791, %v1855
          %v1920 = vadd.f32 %v1792, %v1858
          %v1921 = vadd.f32 %v1793, %v1861
          %v1922 = vadd.f32 %v1794, %v1864
          %v1923 = vadd.f32 %v1795, %v1867
          %v1924 = vadd.f32 %v1796, %v1870
          %v1925 = vadd.f32 %v1797, %v1873
          %v1926 = vadd.f32 %v1798, %v1876
          %v1927 = vadd.f32 %v1799, %v1879
          %v1928 = vadd.f32 %v1800, %v1882
          %v1929 = vadd.f32 %v1801, %v1885
          %v1930 = vadd.f32 %v1802, %v1888
          %v1931 = vadd.f32 %v1803, %v1891
          %v1932 = vadd.f32 %v1804, %v1894
          %v1933 = vadd.f32 %v1805, %v1897
          %v1934 = vadd.f32 %v1806, %v1900
          %v1935 = vadd.f32 %v1807, %v1903
          %vm1936 = vcmask 7168
          %1937 = vst.msk [vmem:[#allocation3] sm:$0xff] %vm1936, %v1904
          %1938 = vst.msk [vmem:[#allocation3 + $0x8] sm:$0xff] %vm1936, %v1905
          %1939 = vst.msk [vmem:[#allocation3 + $0x10] sm:$0xff] %vm1936, %v1906
          %1940 = vst.msk [vmem:[#allocation3 + $0x18] sm:$0xff] %vm1936, %v1907
          %1941 = vst.msk [vmem:[#allocation3 + $0x20] sm:$0xff] %vm1936, %v1908
          %1942 = vst.msk [vmem:[#allocation3 + $0x28] sm:$0xff] %vm1936, %v1909
          %1943 = vst.msk [vmem:[#allocation3 + $0x30] sm:$0xff] %vm1936, %v1910
          %1944 = vst.msk [vmem:[#allocation3 + $0x38] sm:$0xff] %vm1936, %v1911
          %1945 = vst.msk [vmem:[#allocation3 + $0x40] sm:$0xff] %vm1936, %v1912
          %1946 = vst.msk [vmem:[#allocation3 + $0x48] sm:$0xff] %vm1936, %v1913
          %1947 = vst.msk [vmem:[#allocation3 + $0x50] sm:$0xff] %vm1936, %v1914
          %1948 = vst.msk [vmem:[#allocation3 + $0x58] sm:$0xff] %vm1936, %v1915
          %1949 = vst.msk [vmem:[#allocation3 + $0x60] sm:$0xff] %vm1936, %v1916
          %1950 = vst.msk [vmem:[#allocation3 + $0x68] sm:$0xff] %vm1936, %v1917
          %1951 = vst.msk [vmem:[#allocation3 + $0x70] sm:$0xff] %vm1936, %v1918
          %1952 = vst.msk [vmem:[#allocation3 + $0x78] sm:$0xff] %vm1936, %v1919
          %1953 = vst.msk [vmem:[#allocation3 + $0x80] sm:$0xff] %vm1936, %v1920
          %1954 = vst.msk [vmem:[#allocation3 + $0x88] sm:$0xff] %vm1936, %v1921
          %1955 = vst.msk [vmem:[#allocation3 + $0x90] sm:$0xff] %vm1936, %v1922
          %1956 = vst.msk [vmem:[#allocation3 + $0x98] sm:$0xff] %vm1936, %v1923
          %1957 = vst.msk [vmem:[#allocation3 + $0xa0] sm:$0xff] %vm1936, %v1924
          %1958 = vst.msk [vmem:[#allocation3 + $0xa8] sm:$0xff] %vm1936, %v1925
          %1959 = vst.msk [vmem:[#allocation3 + $0xb0] sm:$0xff] %vm1936, %v1926
          %1960 = vst.msk [vmem:[#allocation3 + $0xb8] sm:$0xff] %vm1936, %v1927
          %1961 = vst.msk [vmem:[#allocation3 + $0xc0] sm:$0xff] %vm1936, %v1928
          %1962 = vst.msk [vmem:[#allocation3 + $0xc8] sm:$0xff] %vm1936, %v1929
          %1963 = vst.msk [vmem:[#allocation3 + $0xd0] sm:$0xff] %vm1936, %v1930
          %1964 = vst.msk [vmem:[#allocation3 + $0xd8] sm:$0xff] %vm1936, %v1931
          %1965 = vst.msk [vmem:[#allocation3 + $0xe0] sm:$0xff] %vm1936, %v1932
          %1966 = vst.msk [vmem:[#allocation3 + $0xe8] sm:$0xff] %vm1936, %v1933
          %1967 = vst.msk [vmem:[#allocation3 + $0xf0] sm:$0xff] %vm1936, %v1934
          %1968 = vst.msk [vmem:[#allocation3 + $0xf8] sm:$0xff] %vm1936, %v1935
          %v1969 = vld [vmem:[#allocation4] sm:$0xff]
          %v1970 = vld [vmem:[#allocation4 + $0x8] sm:$0xff]
          %v1971 = vld [vmem:[#allocation4 + $0x10] sm:$0xff]
          %v1972 = vld [vmem:[#allocation4 + $0x18] sm:$0xff]
          %v1973 = vld [vmem:[#allocation4 + $0x20] sm:$0xff]
          %v1974 = vld [vmem:[#allocation4 + $0x28] sm:$0xff]
          %v1975 = vld [vmem:[#allocation4 + $0x30] sm:$0xff]
          %v1976 = vld [vmem:[#allocation4 + $0x38] sm:$0xff]
          %v1977 = vld [vmem:[#allocation4 + $0x40] sm:$0xff]
          %v1978 = vld [vmem:[#allocation4 + $0x48] sm:$0xff]
          %v1979 = vld [vmem:[#allocation4 + $0x50] sm:$0xff]
          %v1980 = vld [vmem:[#allocation4 + $0x58] sm:$0xff]
          %v1981 = vld [vmem:[#allocation4 + $0x60] sm:$0xff]
          %v1982 = vld [vmem:[#allocation4 + $0x68] sm:$0xff]
          %v1983 = vld [vmem:[#allocation4 + $0x70] sm:$0xff]
          %v1984 = vld [vmem:[#allocation4 + $0x78] sm:$0xff]
          %v1985 = vld [vmem:[#allocation4 + $0x80] sm:$0xff]
          %v1986 = vld [vmem:[#allocation4 + $0x88] sm:$0xff]
          %v1987 = vld [vmem:[#allocation4 + $0x90] sm:$0xff]
          %v1988 = vld [vmem:[#allocation4 + $0x98] sm:$0xff]
          %v1989 = vld [vmem:[#allocation4 + $0xa0] sm:$0xff]
          %v1990 = vld [vmem:[#allocation4 + $0xa8] sm:$0xff]
          %v1991 = vld [vmem:[#allocation4 + $0xb0] sm:$0xff]
          %v1992 = vld [vmem:[#allocation4 + $0xb8] sm:$0xff]
          %v1993 = vld [vmem:[#allocation4 + $0xc0] sm:$0xff]
          %v1994 = vld [vmem:[#allocation4 + $0xc8] sm:$0xff]
          %v1995 = vld [vmem:[#allocation4 + $0xd0] sm:$0xff]
          %v1996 = vld [vmem:[#allocation4 + $0xd8] sm:$0xff]
          %v1997 = vld [vmem:[#allocation4 + $0xe0] sm:$0xff]
          %v1998 = vld [vmem:[#allocation4 + $0xe8] sm:$0xff]
          %v1999 = vld [vmem:[#allocation4 + $0xf0] sm:$0xff]
          %v2000 = vld [vmem:[#allocation4 + $0xf8] sm:$0xff]
          %2002 = vset.pattern.permute.xlu0 0
          %2003 = vperm.xlu0 %2002, %v1329
          %v2004 = vpop.permute.xlu0 %2003
          %2007 = vset.pattern.permute.xlu0 0
          %2008 = vperm.xlu0 %2007, %v1331
          %v2009 = vpop.permute.xlu0 %2008
          %2012 = vset.pattern.permute.xlu0 0
          %2013 = vperm.xlu0 %2012, %v1333
          %v2014 = vpop.permute.xlu0 %2013
          %2017 = vset.pattern.permute.xlu0 0
          %2018 = vperm.xlu0 %2017, %v1335
          %v2019 = vpop.permute.xlu0 %2018
          %2022 = vset.pattern.permute.xlu0 0
          %2023 = vperm.xlu0 %2022, %v1337
          %v2024 = vpop.permute.xlu0 %2023
          %2027 = vset.pattern.permute.xlu0 0
          %2028 = vperm.xlu0 %2027, %v1339
          %v2029 = vpop.permute.xlu0 %2028
          %2032 = vset.pattern.permute.xlu0 0
          %2033 = vperm.xlu0 %2032, %v1341
          %v2034 = vpop.permute.xlu0 %2033
          %2037 = vset.pattern.permute.xlu0 0
          %2038 = vperm.xlu0 %2037, %v1343
          %v2039 = vpop.permute.xlu0 %2038
          %2042 = vset.pattern.permute.xlu0 0
          %2043 = vperm.xlu0 %2042, %v1345
          %v2044 = vpop.permute.xlu0 %2043
          %2047 = vset.pattern.permute.xlu0 0
          %2048 = vperm.xlu0 %2047, %v1347
          %v2049 = vpop.permute.xlu0 %2048
          %2052 = vset.pattern.permute.xlu0 0
          %2053 = vperm.xlu0 %2052, %v1349
          %v2054 = vpop.permute.xlu0 %2053
          %2057 = vset.pattern.permute.xlu0 0
          %2058 = vperm.xlu0 %2057, %v1351
          %v2059 = vpop.permute.xlu0 %2058
          %2062 = vset.pattern.permute.xlu0 0
          %2063 = vperm.xlu0 %2062, %v1353
          %v2064 = vpop.permute.xlu0 %2063
          %2067 = vset.pattern.permute.xlu0 0
          %2068 = vperm.xlu0 %2067, %v1355
          %v2069 = vpop.permute.xlu0 %2068
          %2072 = vset.pattern.permute.xlu0 0
          %2073 = vperm.xlu0 %2072, %v1357
          %v2074 = vpop.permute.xlu0 %2073
          %2077 = vset.pattern.permute.xlu0 0
          %2078 = vperm.xlu0 %2077, %v1359
          %v2079 = vpop.permute.xlu0 %2078
          %2082 = vset.pattern.permute.xlu0 0
          %2083 = vperm.xlu0 %2082, %v1361
          %v2084 = vpop.permute.xlu0 %2083
          %2087 = vset.pattern.permute.xlu0 0
          %2088 = vperm.xlu0 %2087, %v1363
          %v2089 = vpop.permute.xlu0 %2088
          %2092 = vset.pattern.permute.xlu0 0
          %2093 = vperm.xlu0 %2092, %v1365
          %v2094 = vpop.permute.xlu0 %2093
          %2097 = vset.pattern.permute.xlu0 0
          %2098 = vperm.xlu0 %2097, %v1367
          %v2099 = vpop.permute.xlu0 %2098
          %2102 = vset.pattern.permute.xlu0 0
          %2103 = vperm.xlu0 %2102, %v1369
          %v2104 = vpop.permute.xlu0 %2103
          %2107 = vset.pattern.permute.xlu0 0
          %2108 = vperm.xlu0 %2107, %v1371
          %v2109 = vpop.permute.xlu0 %2108
          %2112 = vset.pattern.permute.xlu0 0
          %2113 = vperm.xlu0 %2112, %v1373
          %v2114 = vpop.permute.xlu0 %2113
          %2117 = vset.pattern.permute.xlu0 0
          %2118 = vperm.xlu0 %2117, %v1375
          %v2119 = vpop.permute.xlu0 %2118
          %2122 = vset.pattern.permute.xlu0 0
          %2123 = vperm.xlu0 %2122, %v1377
          %v2124 = vpop.permute.xlu0 %2123
          %2127 = vset.pattern.permute.xlu0 0
          %2128 = vperm.xlu0 %2127, %v1379
          %v2129 = vpop.permute.xlu0 %2128
          %2132 = vset.pattern.permute.xlu0 0
          %2133 = vperm.xlu0 %2132, %v1381
          %v2134 = vpop.permute.xlu0 %2133
          %2137 = vset.pattern.permute.xlu0 0
          %2138 = vperm.xlu0 %2137, %v1383
          %v2139 = vpop.permute.xlu0 %2138
          %2142 = vset.pattern.permute.xlu0 0
          %2143 = vperm.xlu0 %2142, %v1385
          %v2144 = vpop.permute.xlu0 %2143
          %2147 = vset.pattern.permute.xlu0 0
          %2148 = vperm.xlu0 %2147, %v1387
          %v2149 = vpop.permute.xlu0 %2148
          %2152 = vset.pattern.permute.xlu0 0
          %2153 = vperm.xlu0 %2152, %v1389
          %v2154 = vpop.permute.xlu0 %2153
          %2157 = vset.pattern.permute.xlu0 0
          %2158 = vperm.xlu0 %2157, %v1391
          %v2159 = vpop.permute.xlu0 %2158
          %v2161 = vmul.f32 %v2004, %v1969
          %v2162 = vmul.f32 %v2009, %v1970
          %v2163 = vmul.f32 %v2014, %v1971
          %v2164 = vmul.f32 %v2019, %v1972
          %v2165 = vmul.f32 %v2024, %v1973
          %v2166 = vmul.f32 %v2029, %v1974
          %v2167 = vmul.f32 %v2034, %v1975
          %v2168 = vmul.f32 %v2039, %v1976
          %v2169 = vmul.f32 %v2044, %v1977
          %v2170 = vmul.f32 %v2049, %v1978
          %v2171 = vmul.f32 %v2054, %v1979
          %v2172 = vmul.f32 %v2059, %v1980
          %v2173 = vmul.f32 %v2064, %v1981
          %v2174 = vmul.f32 %v2069, %v1982
          %v2175 = vmul.f32 %v2074, %v1983
          %v2176 = vmul.f32 %v2079, %v1984
          %v2177 = vmul.f32 %v2084, %v1985
          %v2178 = vmul.f32 %v2089, %v1986
          %v2179 = vmul.f32 %v2094, %v1987
          %v2180 = vmul.f32 %v2099, %v1988
          %v2181 = vmul.f32 %v2104, %v1989
          %v2182 = vmul.f32 %v2109, %v1990
          %v2183 = vmul.f32 %v2114, %v1991
          %v2184 = vmul.f32 %v2119, %v1992
          %v2185 = vmul.f32 %v2124, %v1993
          %v2186 = vmul.f32 %v2129, %v1994
          %v2187 = vmul.f32 %v2134, %v1995
          %v2188 = vmul.f32 %v2139, %v1996
          %v2189 = vmul.f32 %v2144, %v1997
          %v2190 = vmul.f32 %v2149, %v1998
          %v2191 = vmul.f32 %v2154, %v1999
          %v2192 = vmul.f32 %v2159, %v2000
          %v2193 = vpack.c.bf16 %v1621, %v1617
          %v2194 = vpack.c.bf16 %v1623, %v1619
          %v2195 = vpack.c.bf16 %v1629, %v1625
          %v2196 = vpack.c.bf16 %v1631, %v1627
          %v2197 = vpack.c.bf16 %v1637, %v1633
          %v2198 = vpack.c.bf16 %v1639, %v1635
          %v2199 = vpack.c.bf16 %v1645, %v1641
          %v2200 = vpack.c.bf16 %v1647, %v1643
          %v2201 = vpack.c.bf16 %v1653, %v1649
          %v2202 = vpack.c.bf16 %v1655, %v1651
          %v2203 = vpack.c.bf16 %v1661, %v1657
          %v2204 = vpack.c.bf16 %v1663, %v1659
          %v2205 = vpack.c.bf16 %v1669, %v1665
          %v2206 = vpack.c.bf16 %v1671, %v1667
          %v2207 = vpack.c.bf16 %v1677, %v1673
          %v2208 = vpack.c.bf16 %v1679, %v1675
          %v2209 = vpack.c.bf16 %v1685, %v1681
          %v2210 = vpack.c.bf16 %v1687, %v1683
          %v2211 = vpack.c.bf16 %v1693, %v1689
          %v2212 = vpack.c.bf16 %v1695, %v1691
          %v2213 = vpack.c.bf16 %v1701, %v1697
          %v2214 = vpack.c.bf16 %v1703, %v1699
          %v2215 = vpack.c.bf16 %v1709, %v1705
          %v2216 = vpack.c.bf16 %v1711, %v1707
          %v2217 = vpack.c.bf16 %v1717, %v1713
          %v2218 = vpack.c.bf16 %v1719, %v1715
          %v2219 = vpack.c.bf16 %v1725, %v1721
          %v2220 = vpack.c.bf16 %v1727, %v1723
          %v2221 = vpack.c.bf16 %v1733, %v1729
          %v2222 = vpack.c.bf16 %v1735, %v1731
          %v2223 = vpack.c.bf16 %v1741, %v1737
          %v2224 = vpack.c.bf16 %v1743, %v1739
          %v2225 = vld [vmem:[%s308] sm:$0xf]
          %v2226 = vld [vmem:[%s308 + $0x4] sm:$0xf]
          %v2227 = vld [vmem:[%s308 + $0x8] sm:$0xf]
          %v2228 = vld [vmem:[%s308 + $0xc] sm:$0xf]
          %v2229 = vld [vmem:[%s308 + $0x10] sm:$0xf]
          %v2230 = vld [vmem:[%s308 + $0x14] sm:$0xf]
          %v2231 = vld [vmem:[%s308 + $0x18] sm:$0xf]
          %v2232 = vld [vmem:[%s308 + $0x1c] sm:$0xf]
          %v2233 = vld [vmem:[%s308 + $0x20] sm:$0xf]
          %v2234 = vld [vmem:[%s308 + $0x24] sm:$0xf]
          %v2235 = vld [vmem:[%s308 + $0x28] sm:$0xf]
          %v2236 = vld [vmem:[%s308 + $0x2c] sm:$0xf]
          %v2237 = vld [vmem:[%s308 + $0x30] sm:$0xf]
          %v2238 = vld [vmem:[%s308 + $0x34] sm:$0xf]
          %v2239 = vld [vmem:[%s308 + $0x38] sm:$0xf]
          %v2240 = vld [vmem:[%s308 + $0x3c] sm:$0xf]
          %v2241 = vld [vmem:[%s308 + $0x40] sm:$0xf]
          %v2242 = vld [vmem:[%s308 + $0x44] sm:$0xf]
          %v2243 = vld [vmem:[%s308 + $0x48] sm:$0xf]
          %v2244 = vld [vmem:[%s308 + $0x4c] sm:$0xf]
          %v2245 = vld [vmem:[%s308 + $0x50] sm:$0xf]
          %v2246 = vld [vmem:[%s308 + $0x54] sm:$0xf]
          %v2247 = vld [vmem:[%s308 + $0x58] sm:$0xf]
          %v2248 = vld [vmem:[%s308 + $0x5c] sm:$0xf]
          %v2249 = vld [vmem:[%s308 + $0x60] sm:$0xf]
          %v2250 = vld [vmem:[%s308 + $0x64] sm:$0xf]
          %v2251 = vld [vmem:[%s308 + $0x68] sm:$0xf]
          %v2252 = vld [vmem:[%s308 + $0x6c] sm:$0xf]
          %v2253 = vld [vmem:[%s308 + $0x70] sm:$0xf]
          %v2254 = vld [vmem:[%s308 + $0x74] sm:$0xf]
          %v2255 = vld [vmem:[%s308 + $0x78] sm:$0xf]
          %v2256 = vld [vmem:[%s308 + $0x7c] sm:$0xf]
          %v2289 = vunpack.c.l.b16 %v2225
          %v2290 = vunpack.c.l.b16 %v2226
          %v2291 = vunpack.c.l.b16 %v2227
          %v2292 = vunpack.c.l.b16 %v2228
          %v2293 = vunpack.c.l.b16 %v2229
          %v2294 = vunpack.c.l.b16 %v2230
          %v2295 = vunpack.c.l.b16 %v2231
          %v2296 = vunpack.c.l.b16 %v2232
          %v2297 = vunpack.c.l.b16 %v2233
          %v2298 = vunpack.c.l.b16 %v2234
          %v2299 = vunpack.c.l.b16 %v2235
          %v2300 = vunpack.c.l.b16 %v2236
          %v2301 = vunpack.c.l.b16 %v2237
          %v2302 = vunpack.c.l.b16 %v2238
          %v2303 = vunpack.c.l.b16 %v2239
          %v2304 = vunpack.c.l.b16 %v2240
          %v2305 = vunpack.c.l.b16 %v2241
          %v2306 = vunpack.c.l.b16 %v2242
          %v2307 = vunpack.c.l.b16 %v2243
          %v2308 = vunpack.c.l.b16 %v2244
          %v2309 = vunpack.c.l.b16 %v2245
          %v2310 = vunpack.c.l.b16 %v2246
          %v2311 = vunpack.c.l.b16 %v2247
          %v2312 = vunpack.c.l.b16 %v2248
          %v2313 = vunpack.c.l.b16 %v2249
          %v2314 = vunpack.c.l.b16 %v2250
          %v2315 = vunpack.c.l.b16 %v2251
          %v2316 = vunpack.c.l.b16 %v2252
          %v2317 = vunpack.c.l.b16 %v2253
          %v2318 = vunpack.c.l.b16 %v2254
          %v2319 = vunpack.c.l.b16 %v2255
          %v2320 = vunpack.c.l.b16 %v2256
          %v2321 = vpack.c.b16 %v2290, %v2289
          %v2322 = vpack.c.b16 %v2292, %v2291
          %v2323 = vpack.c.b16 %v2294, %v2293
          %v2324 = vpack.c.b16 %v2296, %v2295
          %v2325 = vpack.c.b16 %v2298, %v2297
          %v2326 = vpack.c.b16 %v2300, %v2299
          %v2327 = vpack.c.b16 %v2302, %v2301
          %v2328 = vpack.c.b16 %v2304, %v2303
          %v2329 = vpack.c.b16 %v2306, %v2305
          %v2330 = vpack.c.b16 %v2308, %v2307
          %v2331 = vpack.c.b16 %v2310, %v2309
          %v2332 = vpack.c.b16 %v2312, %v2311
          %v2333 = vpack.c.b16 %v2314, %v2313
          %v2334 = vpack.c.b16 %v2316, %v2315
          %v2335 = vpack.c.b16 %v2318, %v2317
          %v2336 = vpack.c.b16 %v2320, %v2319
          %2353 = vmatprep.subr.bf16.mxu0 0
          %2354 = vmatpush1.bf16.msra.mxu0 %v2321
          %2355 = vmatprep.subr.bf16.mxu0 0
          %2356 = vmatpush1.bf16.msra.mxu0 %v2322
          %2357 = vmatprep.subr.bf16.mxu0 0
          %2358 = vmatpush1.bf16.msra.mxu0 %v2323
          %2359 = vmatprep.subr.bf16.mxu0 0
          %2360 = vmatpush1.bf16.msra.mxu0 %v2324
          %2361 = vmatprep.subr.bf16.mxu0 0
          %2362 = vmatpush1.bf16.msra.mxu0 %v2325
          %2363 = vmatprep.subr.bf16.mxu0 0
          %2364 = vmatpush1.bf16.msra.mxu0 %v2326
          %2365 = vmatprep.subr.bf16.mxu0 0
          %2366 = vmatpush1.bf16.msra.mxu0 %v2327
          %2367 = vmatprep.subr.bf16.mxu0 0
          %2368 = vmatpush1.bf16.msra.mxu0 %v2328
          %2369 = vmatprep.subr.bf16.mxu0 0
          %2370 = vmatpush1.bf16.msra.mxu0 %v2329
          %2371 = vmatprep.subr.bf16.mxu0 0
          %2372 = vmatpush1.bf16.msra.mxu0 %v2330
          %2373 = vmatprep.subr.bf16.mxu0 0
          %2374 = vmatpush1.bf16.msra.mxu0 %v2331
          %2375 = vmatprep.subr.bf16.mxu0 0
          %2376 = vmatpush1.bf16.msra.mxu0 %v2332
          %2377 = vmatprep.subr.bf16.mxu0 0
          %2378 = vmatpush1.bf16.msra.mxu0 %v2333
          %2379 = vmatprep.subr.bf16.mxu0 0
          %2380 = vmatpush1.bf16.msra.mxu0 %v2334
          %2381 = vmatprep.subr.bf16.mxu0 0
          %2382 = vmatpush1.bf16.msra.mxu0 %v2335
          %2383 = vmatprep.subr.bf16.mxu0 0
          %2384 = vmatpush1.bf16.msra.mxu0 %v2336
          %2385 = vmatprep.mubr.bf16.mxu0 %v2194
          %2386 = vmatmul.mubr.bf16.gmra.mrb[0].mxu0 %v2193
          %v2387 = vpop.f32.mrb[0].mxu0
          %v2388 = vadd.f32 0.0, %v2387
          %v2389 = vpop.f32.mrb[0].mxu0
          %v2390 = vpop.f32.mrb[0].mxu0
          %v2391 = vadd.f32 0.0, %v2390
          %v2392 = vpop.f32.mrb[0].mxu0
          %2393 = vmatprep.mubr.bf16.mxu0 %v2196
          %2394 = vmatmul.mubr.bf16.gmra.mrb[0].mxu0 %v2195
          %v2395 = vpop.f32.mrb[0].mxu0
          %v2396 = vadd.f32 0.0, %v2395
          %v2397 = vpop.f32.mrb[0].mxu0
          %v2398 = vpop.f32.mrb[0].mxu0
          %v2399 = vadd.f32 0.0, %v2398
          %v2400 = vpop.f32.mrb[0].mxu0
          %2401 = vmatprep.mubr.bf16.mxu0 %v2198
          %2402 = vmatmul.mubr.bf16.gmra.mrb[0].mxu0 %v2197
          %v2403 = vpop.f32.mrb[0].mxu0
          %v2404 = vadd.f32 0.0, %v2403
          %v2405 = vpop.f32.mrb[0].mxu0
          %v2406 = vpop.f32.mrb[0].mxu0
          %v2407 = vadd.f32 0.0, %v2406
          %v2408 = vpop.f32.mrb[0].mxu0
          %2409 = vmatprep.mubr.bf16.mxu0 %v2200
          %2410 = vmatmul.mubr.bf16.gmra.mrb[0].mxu0 %v2199
          %v2411 = vpop.f32.mrb[0].mxu0
          %v2412 = vadd.f32 0.0, %v2411
          %v2413 = vpop.f32.mrb[0].mxu0
          %v2414 = vpop.f32.mrb[0].mxu0
          %v2415 = vadd.f32 0.0, %v2414
          %v2416 = vpop.f32.mrb[0].mxu0
          %2417 = vmatprep.mubr.bf16.mxu0 %v2202
          %2418 = vmatmul.mubr.bf16.gmra.mrb[0].mxu0 %v2201
          %v2419 = vpop.f32.mrb[0].mxu0
          %v2420 = vadd.f32 0.0, %v2419
          %v2421 = vpop.f32.mrb[0].mxu0
          %v2422 = vpop.f32.mrb[0].mxu0
          %v2423 = vadd.f32 0.0, %v2422
          %v2424 = vpop.f32.mrb[0].mxu0
          %2425 = vmatprep.mubr.bf16.mxu0 %v2204
          %2426 = vmatmul.mubr.bf16.gmra.mrb[0].mxu0 %v2203
          %v2427 = vpop.f32.mrb[0].mxu0
          %v2428 = vadd.f32 0.0, %v2427
          %v2429 = vpop.f32.mrb[0].mxu0
          %v2430 = vpop.f32.mrb[0].mxu0
          %v2431 = vadd.f32 0.0, %v2430
          %v2432 = vpop.f32.mrb[0].mxu0
          %2433 = vmatprep.mubr.bf16.mxu0 %v2206
          %2434 = vmatmul.mubr.bf16.gmra.mrb[0].mxu0 %v2205
          %v2435 = vpop.f32.mrb[0].mxu0
          %v2436 = vadd.f32 0.0, %v2435
          %v2437 = vpop.f32.mrb[0].mxu0
          %v2438 = vpop.f32.mrb[0].mxu0
          %v2439 = vadd.f32 0.0, %v2438
          %v2440 = vpop.f32.mrb[0].mxu0
          %2441 = vmatprep.mubr.bf16.mxu0 %v2208
          %2442 = vmatmul.mubr.bf16.gmra.mrb[0].mxu0 %v2207
          %v2443 = vpop.f32.mrb[0].mxu0
          %v2444 = vadd.f32 0.0, %v2443
          %v2445 = vpop.f32.mrb[0].mxu0
          %v2446 = vpop.f32.mrb[0].mxu0
          %v2447 = vadd.f32 0.0, %v2446
          %v2448 = vpop.f32.mrb[0].mxu0
          %2449 = vmatprep.mubr.bf16.mxu0 %v2210
          %2450 = vmatmul.mubr.bf16.gmra.mrb[0].mxu0 %v2209
          %v2451 = vpop.f32.mrb[0].mxu0
          %v2452 = vadd.f32 0.0, %v2451
          %v2453 = vpop.f32.mrb[0].mxu0
          %v2454 = vpop.f32.mrb[0].mxu0
          %v2455 = vadd.f32 0.0, %v2454
          %v2456 = vpop.f32.mrb[0].mxu0
          %2457 = vmatprep.mubr.bf16.mxu0 %v2212
          %2458 = vmatmul.mubr.bf16.gmra.mrb[0].mxu0 %v2211
          %v2459 = vpop.f32.mrb[0].mxu0
          %v2460 = vadd.f32 0.0, %v2459
          %v2461 = vpop.f32.mrb[0].mxu0
          %v2462 = vpop.f32.mrb[0].mxu0
          %v2463 = vadd.f32 0.0, %v2462
          %v2464 = vpop.f32.mrb[0].mxu0
          %2465 = vmatprep.mubr.bf16.mxu0 %v2214
          %2466 = vmatmul.mubr.bf16.gmra.mrb[0].mxu0 %v2213
          %v2467 = vpop.f32.mrb[0].mxu0
          %v2468 = vadd.f32 0.0, %v2467
          %v2469 = vpop.f32.mrb[0].mxu0
          %v2470 = vpop.f32.mrb[0].mxu0
          %v2471 = vadd.f32 0.0, %v2470
          %v2472 = vpop.f32.mrb[0].mxu0
          %2473 = vmatprep.mubr.bf16.mxu0 %v2216
          %2474 = vmatmul.mubr.bf16.gmra.mrb[0].mxu0 %v2215
          %v2475 = vpop.f32.mrb[0].mxu0
          %v2476 = vadd.f32 0.0, %v2475
          %v2477 = vpop.f32.mrb[0].mxu0
          %v2478 = vpop.f32.mrb[0].mxu0
          %v2479 = vadd.f32 0.0, %v2478
          %v2480 = vpop.f32.mrb[0].mxu0
          %2481 = vmatprep.mubr.bf16.mxu0 %v2218
          %2482 = vmatmul.mubr.bf16.gmra.mrb[0].mxu0 %v2217
          %v2483 = vpop.f32.mrb[0].mxu0
          %v2484 = vadd.f32 0.0, %v2483
          %v2485 = vpop.f32.mrb[0].mxu0
          %v2486 = vpop.f32.mrb[0].mxu0
          %v2487 = vadd.f32 0.0, %v2486
          %v2488 = vpop.f32.mrb[0].mxu0
          %2489 = vmatprep.mubr.bf16.mxu0 %v2220
          %2490 = vmatmul.mubr.bf16.gmra.mrb[0].mxu0 %v2219
          %v2491 = vpop.f32.mrb[0].mxu0
          %v2492 = vadd.f32 0.0, %v2491
          %v2493 = vpop.f32.mrb[0].mxu0
          %v2494 = vpop.f32.mrb[0].mxu0
          %v2495 = vadd.f32 0.0, %v2494
          %v2496 = vpop.f32.mrb[0].mxu0
          %2497 = vmatprep.mubr.bf16.mxu0 %v2222
          %2498 = vmatmul.mubr.bf16.gmra.mrb[0].mxu0 %v2221
          %v2499 = vpop.f32.mrb[0].mxu0
          %v2500 = vadd.f32 0.0, %v2499
          %v2501 = vpop.f32.mrb[0].mxu0
          %v2502 = vpop.f32.mrb[0].mxu0
          %v2503 = vadd.f32 0.0, %v2502
          %v2504 = vpop.f32.mrb[0].mxu0
          %2505 = vmatprep.mubr.bf16.mxu0 %v2224
          %2506 = vmatmul.mubr.bf16.gmra.mrb[0].mxu0 %v2223
          %v2507 = vpop.f32.mrb[0].mxu0
          %v2508 = vadd.f32 0.0, %v2507
          %v2509 = vpop.f32.mrb[0].mxu0
          %v2510 = vpop.f32.mrb[0].mxu0
          %v2511 = vadd.f32 0.0, %v2510
          %v2512 = vpop.f32.mrb[0].mxu0
          %2513 = vdwg.mxu0
          %v2514 = vadd.f32 %v2161, %v2388
          %v2515 = vadd.f32 %v2162, %v2391
          %v2516 = vadd.f32 %v2163, %v2396
          %v2517 = vadd.f32 %v2164, %v2399
          %v2518 = vadd.f32 %v2165, %v2404
          %v2519 = vadd.f32 %v2166, %v2407
          %v2520 = vadd.f32 %v2167, %v2412
          %v2521 = vadd.f32 %v2168, %v2415
          %v2522 = vadd.f32 %v2169, %v2420
          %v2523 = vadd.f32 %v2170, %v2423
          %v2524 = vadd.f32 %v2171, %v2428
          %v2525 = vadd.f32 %v2172, %v2431
          %v2526 = vadd.f32 %v2173, %v2436
          %v2527 = vadd.f32 %v2174, %v2439
          %v2528 = vadd.f32 %v2175, %v2444
          %v2529 = vadd.f32 %v2176, %v2447
          %v2530 = vadd.f32 %v2177, %v2452
          %v2531 = vadd.f32 %v2178, %v2455
          %v2532 = vadd.f32 %v2179, %v2460
          %v2533 = vadd.f32 %v2180, %v2463
          %v2534 = vadd.f32 %v2181, %v2468
          %v2535 = vadd.f32 %v2182, %v2471
          %v2536 = vadd.f32 %v2183, %v2476
          %v2537 = vadd.f32 %v2184, %v2479
          %v2538 = vadd.f32 %v2185, %v2484
          %v2539 = vadd.f32 %v2186, %v2487
          %v2540 = vadd.f32 %v2187, %v2492
          %v2541 = vadd.f32 %v2188, %v2495
          %v2542 = vadd.f32 %v2189, %v2500
          %v2543 = vadd.f32 %v2190, %v2503
          %v2544 = vadd.f32 %v2191, %v2508
          %v2545 = vadd.f32 %v2192, %v2511
          %2546 = vst [vmem:[#allocation4] sm:$0xff] %v2514
          %2547 = vst [vmem:[#allocation4 + $0x8] sm:$0xff] %v2515
          %2548 = vst [vmem:[#allocation4 + $0x10] sm:$0xff] %v2516
          %2549 = vst [vmem:[#allocation4 + $0x18] sm:$0xff] %v2517
          %2550 = vst [vmem:[#allocation4 + $0x20] sm:$0xff] %v2518
          %2551 = vst [vmem:[#allocation4 + $0x28] sm:$0xff] %v2519
          %2552 = vst [vmem:[#allocation4 + $0x30] sm:$0xff] %v2520
          %2553 = vst [vmem:[#allocation4 + $0x38] sm:$0xff] %v2521
          %2554 = vst [vmem:[#allocation4 + $0x40] sm:$0xff] %v2522
          %2555 = vst [vmem:[#allocation4 + $0x48] sm:$0xff] %v2523
          %2556 = vst [vmem:[#allocation4 + $0x50] sm:$0xff] %v2524
          %2557 = vst [vmem:[#allocation4 + $0x58] sm:$0xff] %v2525
          %2558 = vst [vmem:[#allocation4 + $0x60] sm:$0xff] %v2526
          %2559 = vst [vmem:[#allocation4 + $0x68] sm:$0xff] %v2527
          %2560 = vst [vmem:[#allocation4 + $0x70] sm:$0xff] %v2528
          %2561 = vst [vmem:[#allocation4 + $0x78] sm:$0xff] %v2529
          %2562 = vst [vmem:[#allocation4 + $0x80] sm:$0xff] %v2530
          %2563 = vst [vmem:[#allocation4 + $0x88] sm:$0xff] %v2531
          %2564 = vst [vmem:[#allocation4 + $0x90] sm:$0xff] %v2532
          %2565 = vst [vmem:[#allocation4 + $0x98] sm:$0xff] %v2533
          %2566 = vst [vmem:[#allocation4 + $0xa0] sm:$0xff] %v2534
          %2567 = vst [vmem:[#allocation4 + $0xa8] sm:$0xff] %v2535
          %2568 = vst [vmem:[#allocation4 + $0xb0] sm:$0xff] %v2536
          %2569 = vst [vmem:[#allocation4 + $0xb8] sm:$0xff] %v2537
          %2570 = vst [vmem:[#allocation4 + $0xc0] sm:$0xff] %v2538
          %2571 = vst [vmem:[#allocation4 + $0xc8] sm:$0xff] %v2539
          %2572 = vst [vmem:[#allocation4 + $0xd0] sm:$0xff] %v2540
          %2573 = vst [vmem:[#allocation4 + $0xd8] sm:$0xff] %v2541
          %2574 = vst [vmem:[#allocation4 + $0xe0] sm:$0xff] %v2542
          %2575 = vst [vmem:[#allocation4 + $0xe8] sm:$0xff] %v2543
          %2576 = vst [vmem:[#allocation4 + $0xf0] sm:$0xff] %v2544
          %2577 = vst [vmem:[#allocation4 + $0xf8] sm:$0xff] %v2545
          %2578 = vst.msk [vmem:[#allocation2] sm:$0xff] %vm1936, %v1264
          %2579 = vst.msk [vmem:[#allocation2 + $0x8] sm:$0xff] %vm1936, %v1265
          %2580 = vst.msk [vmem:[#allocation2 + $0x10] sm:$0xff] %vm1936, %v1266
          %2581 = vst.msk [vmem:[#allocation2 + $0x18] sm:$0xff] %vm1936, %v1267
          %2582 = vst.msk [vmem:[#allocation2 + $0x20] sm:$0xff] %vm1936, %v1268
          %2583 = vst.msk [vmem:[#allocation2 + $0x28] sm:$0xff] %vm1936, %v1269
          %2584 = vst.msk [vmem:[#allocation2 + $0x30] sm:$0xff] %vm1936, %v1270
          %2585 = vst.msk [vmem:[#allocation2 + $0x38] sm:$0xff] %vm1936, %v1271
          %2586 = vst.msk [vmem:[#allocation2 + $0x40] sm:$0xff] %vm1936, %v1272
          %2587 = vst.msk [vmem:[#allocation2 + $0x48] sm:$0xff] %vm1936, %v1273
          %2588 = vst.msk [vmem:[#allocation2 + $0x50] sm:$0xff] %vm1936, %v1274
          %2589 = vst.msk [vmem:[#allocation2 + $0x58] sm:$0xff] %vm1936, %v1275
          %2590 = vst.msk [vmem:[#allocation2 + $0x60] sm:$0xff] %vm1936, %v1276
          %2591 = vst.msk [vmem:[#allocation2 + $0x68] sm:$0xff] %vm1936, %v1277
          %2592 = vst.msk [vmem:[#allocation2 + $0x70] sm:$0xff] %vm1936, %v1278
          %2593 = vst.msk [vmem:[#allocation2 + $0x78] sm:$0xff] %vm1936, %v1279
          %2594 = vst.msk [vmem:[#allocation2 + $0x80] sm:$0xff] %vm1936, %v1280
          %2595 = vst.msk [vmem:[#allocation2 + $0x88] sm:$0xff] %vm1936, %v1281
          %2596 = vst.msk [vmem:[#allocation2 + $0x90] sm:$0xff] %vm1936, %v1282
          %2597 = vst.msk [vmem:[#allocation2 + $0x98] sm:$0xff] %vm1936, %v1283
          %2598 = vst.msk [vmem:[#allocation2 + $0xa0] sm:$0xff] %vm1936, %v1284
          %2599 = vst.msk [vmem:[#allocation2 + $0xa8] sm:$0xff] %vm1936, %v1285
          %2600 = vst.msk [vmem:[#allocation2 + $0xb0] sm:$0xff] %vm1936, %v1286
          %2601 = vst.msk [vmem:[#allocation2 + $0xb8] sm:$0xff] %vm1936, %v1287
          %2602 = vst.msk [vmem:[#allocation2 + $0xc0] sm:$0xff] %vm1936, %v1288
          %2603 = vst.msk [vmem:[#allocation2 + $0xc8] sm:$0xff] %vm1936, %v1289
          %2604 = vst.msk [vmem:[#allocation2 + $0xd0] sm:$0xff] %vm1936, %v1290
          %2605 = vst.msk [vmem:[#allocation2 + $0xd8] sm:$0xff] %vm1936, %v1291
          %2606 = vst.msk [vmem:[#allocation2 + $0xe0] sm:$0xff] %vm1936, %v1292
          %2607 = vst.msk [vmem:[#allocation2 + $0xe8] sm:$0xff] %vm1936, %v1293
          %2608 = vst.msk [vmem:[#allocation2 + $0xf0] sm:$0xff] %vm1936, %v1294
          %2609 = vst.msk [vmem:[#allocation2 + $0xf8] sm:$0xff] %vm1936, %v1295
        $region52: #{tpu_custom_call.1} parent=31 // pred_fallthru
          _
        // Predicated region
        $region53: #{tpu_custom_call.1} parent=31 // pred_check
          %p2610 = pneg %p347
        $region54: #{tpu_custom_call.1} parent=31 // pred_check_branch
          %2612 = sbr.rel (%p2610) target = $region56
        $region55: #{tpu_custom_call.1} parent=31 // pred_region
          %v2613 = vld [vmem:[#allocation3] sm:$0xff]
          %v2614 = vld [vmem:[#allocation3 + $0x8] sm:$0xff]
          %v2615 = vld [vmem:[#allocation3 + $0x10] sm:$0xff]
          %v2616 = vld [vmem:[#allocation3 + $0x18] sm:$0xff]
          %v2617 = vld [vmem:[#allocation3 + $0x20] sm:$0xff]
          %v2618 = vld [vmem:[#allocation3 + $0x28] sm:$0xff]
          %v2619 = vld [vmem:[#allocation3 + $0x30] sm:$0xff]
          %v2620 = vld [vmem:[#allocation3 + $0x38] sm:$0xff]
          %v2621 = vld [vmem:[#allocation3 + $0x40] sm:$0xff]
          %v2622 = vld [vmem:[#allocation3 + $0x48] sm:$0xff]
          %v2623 = vld [vmem:[#allocation3 + $0x50] sm:$0xff]
          %v2624 = vld [vmem:[#allocation3 + $0x58] sm:$0xff]
          %v2625 = vld [vmem:[#allocation3 + $0x60] sm:$0xff]
          %v2626 = vld [vmem:[#allocation3 + $0x68] sm:$0xff]
          %v2627 = vld [vmem:[#allocation3 + $0x70] sm:$0xff]
          %v2628 = vld [vmem:[#allocation3 + $0x78] sm:$0xff]
          %v2629 = vld [vmem:[#allocation3 + $0x80] sm:$0xff]
          %v2630 = vld [vmem:[#allocation3 + $0x88] sm:$0xff]
          %v2631 = vld [vmem:[#allocation3 + $0x90] sm:$0xff]
          %v2632 = vld [vmem:[#allocation3 + $0x98] sm:$0xff]
          %v2633 = vld [vmem:[#allocation3 + $0xa0] sm:$0xff]
          %v2634 = vld [vmem:[#allocation3 + $0xa8] sm:$0xff]
          %v2635 = vld [vmem:[#allocation3 + $0xb0] sm:$0xff]
          %v2636 = vld [vmem:[#allocation3 + $0xb8] sm:$0xff]
          %v2637 = vld [vmem:[#allocation3 + $0xc0] sm:$0xff]
          %v2638 = vld [vmem:[#allocation3 + $0xc8] sm:$0xff]
          %v2639 = vld [vmem:[#allocation3 + $0xd0] sm:$0xff]
          %v2640 = vld [vmem:[#allocation3 + $0xd8] sm:$0xff]
          %v2641 = vld [vmem:[#allocation3 + $0xe0] sm:$0xff]
          %v2642 = vld [vmem:[#allocation3 + $0xe8] sm:$0xff]
          %v2643 = vld [vmem:[#allocation3 + $0xf0] sm:$0xff]
          %v2644 = vld [vmem:[#allocation3 + $0xf8] sm:$0xff]
          %vm2645 = vcmp.eq.f32.partialorder %v2613, 0.0
          %vm2646 = vcmp.eq.f32.partialorder %v2614, 0.0
          %vm2647 = vcmp.eq.f32.partialorder %v2615, 0.0
          %vm2648 = vcmp.eq.f32.partialorder %v2616, 0.0
          %vm2649 = vcmp.eq.f32.partialorder %v2617, 0.0
          %vm2650 = vcmp.eq.f32.partialorder %v2618, 0.0
          %vm2651 = vcmp.eq.f32.partialorder %v2619, 0.0
          %vm2652 = vcmp.eq.f32.partialorder %v2620, 0.0
          %vm2653 = vcmp.eq.f32.partialorder %v2621, 0.0
          %vm2654 = vcmp.eq.f32.partialorder %v2622, 0.0
          %vm2655 = vcmp.eq.f32.partialorder %v2623, 0.0
          %vm2656 = vcmp.eq.f32.partialorder %v2624, 0.0
          %vm2657 = vcmp.eq.f32.partialorder %v2625, 0.0
          %vm2658 = vcmp.eq.f32.partialorder %v2626, 0.0
          %vm2659 = vcmp.eq.f32.partialorder %v2627, 0.0
          %vm2660 = vcmp.eq.f32.partialorder %v2628, 0.0
          %vm2661 = vcmp.eq.f32.partialorder %v2629, 0.0
          %vm2662 = vcmp.eq.f32.partialorder %v2630, 0.0
          %vm2663 = vcmp.eq.f32.partialorder %v2631, 0.0
          %vm2664 = vcmp.eq.f32.partialorder %v2632, 0.0
          %vm2665 = vcmp.eq.f32.partialorder %v2633, 0.0
          %vm2666 = vcmp.eq.f32.partialorder %v2634, 0.0
          %vm2667 = vcmp.eq.f32.partialorder %v2635, 0.0
          %vm2668 = vcmp.eq.f32.partialorder %v2636, 0.0
          %vm2669 = vcmp.eq.f32.partialorder %v2637, 0.0
          %vm2670 = vcmp.eq.f32.partialorder %v2638, 0.0
          %vm2671 = vcmp.eq.f32.partialorder %v2639, 0.0
          %vm2672 = vcmp.eq.f32.partialorder %v2640, 0.0
          %vm2673 = vcmp.eq.f32.partialorder %v2641, 0.0
          %vm2674 = vcmp.eq.f32.partialorder %v2642, 0.0
          %vm2675 = vcmp.eq.f32.partialorder %v2643, 0.0
          %vm2676 = vcmp.eq.f32.partialorder %v2644, 0.0
          %v2677 = vsel %vm2645, 1.0, %v2613
          %v2678 = vsel %vm2646, 1.0, %v2614
          %v2679 = vsel %vm2647, 1.0, %v2615
          %v2680 = vsel %vm2648, 1.0, %v2616
          %v2681 = vsel %vm2649, 1.0, %v2617
          %v2682 = vsel %vm2650, 1.0, %v2618
          %v2683 = vsel %vm2651, 1.0, %v2619
          %v2684 = vsel %vm2652, 1.0, %v2620
          %v2685 = vsel %vm2653, 1.0, %v2621
          %v2686 = vsel %vm2654, 1.0, %v2622
          %v2687 = vsel %vm2655, 1.0, %v2623
          %v2688 = vsel %vm2656, 1.0, %v2624
          %v2689 = vsel %vm2657, 1.0, %v2625
          %v2690 = vsel %vm2658, 1.0, %v2626
          %v2691 = vsel %vm2659, 1.0, %v2627
          %v2692 = vsel %vm2660, 1.0, %v2628
          %v2693 = vsel %vm2661, 1.0, %v2629
          %v2694 = vsel %vm2662, 1.0, %v2630
          %v2695 = vsel %vm2663, 1.0, %v2631
          %v2696 = vsel %vm2664, 1.0, %v2632
          %v2697 = vsel %vm2665, 1.0, %v2633
          %v2698 = vsel %vm2666, 1.0, %v2634
          %v2699 = vsel %vm2667, 1.0, %v2635
          %v2700 = vsel %vm2668, 1.0, %v2636
          %v2701 = vsel %vm2669, 1.0, %v2637
          %v2702 = vsel %vm2670, 1.0, %v2638
          %v2703 = vsel %vm2671, 1.0, %v2639
          %v2704 = vsel %vm2672, 1.0, %v2640
          %v2705 = vsel %vm2673, 1.0, %v2641
          %v2706 = vsel %vm2674, 1.0, %v2642
          %v2707 = vsel %vm2675, 1.0, %v2643
          %v2708 = vsel %vm2676, 1.0, %v2644
          %v2709 = vld [vmem:[#allocation4] sm:$0xff]
          %v2710 = vld [vmem:[#allocation4 + $0x8] sm:$0xff]
          %v2711 = vld [vmem:[#allocation4 + $0x10] sm:$0xff]
          %v2712 = vld [vmem:[#allocation4 + $0x18] sm:$0xff]
          %v2713 = vld [vmem:[#allocation4 + $0x20] sm:$0xff]
          %v2714 = vld [vmem:[#allocation4 + $0x28] sm:$0xff]
          %v2715 = vld [vmem:[#allocation4 + $0x30] sm:$0xff]
          %v2716 = vld [vmem:[#allocation4 + $0x38] sm:$0xff]
          %v2717 = vld [vmem:[#allocation4 + $0x40] sm:$0xff]
          %v2718 = vld [vmem:[#allocation4 + $0x48] sm:$0xff]
          %v2719 = vld [vmem:[#allocation4 + $0x50] sm:$0xff]
          %v2720 = vld [vmem:[#allocation4 + $0x58] sm:$0xff]
          %v2721 = vld [vmem:[#allocation4 + $0x60] sm:$0xff]
          %v2722 = vld [vmem:[#allocation4 + $0x68] sm:$0xff]
          %v2723 = vld [vmem:[#allocation4 + $0x70] sm:$0xff]
          %v2724 = vld [vmem:[#allocation4 + $0x78] sm:$0xff]
          %v2725 = vld [vmem:[#allocation4 + $0x80] sm:$0xff]
          %v2726 = vld [vmem:[#allocation4 + $0x88] sm:$0xff]
          %v2727 = vld [vmem:[#allocation4 + $0x90] sm:$0xff]
          %v2728 = vld [vmem:[#allocation4 + $0x98] sm:$0xff]
          %v2729 = vld [vmem:[#allocation4 + $0xa0] sm:$0xff]
          %v2730 = vld [vmem:[#allocation4 + $0xa8] sm:$0xff]
          %v2731 = vld [vmem:[#allocation4 + $0xb0] sm:$0xff]
          %v2732 = vld [vmem:[#allocation4 + $0xb8] sm:$0xff]
          %v2733 = vld [vmem:[#allocation4 + $0xc0] sm:$0xff]
          %v2734 = vld [vmem:[#allocation4 + $0xc8] sm:$0xff]
          %v2735 = vld [vmem:[#allocation4 + $0xd0] sm:$0xff]
          %v2736 = vld [vmem:[#allocation4 + $0xd8] sm:$0xff]
          %v2737 = vld [vmem:[#allocation4 + $0xe0] sm:$0xff]
          %v2738 = vld [vmem:[#allocation4 + $0xe8] sm:$0xff]
          %v2739 = vld [vmem:[#allocation4 + $0xf0] sm:$0xff]
          %v2740 = vld [vmem:[#allocation4 + $0xf8] sm:$0xff]
          %v2741 = vrcp.pop %v2677
          %v2742 = vrcp.pop %v2678
          %v2743 = vrcp.pop %v2679
          %v2744 = vrcp.pop %v2680
          %v2745 = vrcp.pop %v2681
          %v2746 = vrcp.pop %v2682
          %v2747 = vrcp.pop %v2683
          %v2748 = vrcp.pop %v2684
          %v2749 = vrcp.pop %v2685
          %v2750 = vrcp.pop %v2686
          %v2751 = vrcp.pop %v2687
          %v2752 = vrcp.pop %v2688
          %v2753 = vrcp.pop %v2689
          %v2754 = vrcp.pop %v2690
          %v2755 = vrcp.pop %v2691
          %v2756 = vrcp.pop %v2692
          %v2757 = vrcp.pop %v2693
          %v2758 = vrcp.pop %v2694
          %v2759 = vrcp.pop %v2695
          %v2760 = vrcp.pop %v2696
          %v2761 = vrcp.pop %v2697
          %v2762 = vrcp.pop %v2698
          %v2763 = vrcp.pop %v2699
          %v2764 = vrcp.pop %v2700
          %v2765 = vrcp.pop %v2701
          %v2766 = vrcp.pop %v2702
          %v2767 = vrcp.pop %v2703
          %v2768 = vrcp.pop %v2704
          %v2769 = vrcp.pop %v2705
          %v2770 = vrcp.pop %v2706
          %v2771 = vrcp.pop %v2707
          %v2772 = vrcp.pop %v2708
          %2774 = vset.pattern.permute.xlu0 0
          %2775 = vperm.xlu0 %2774, %v2741
          %v2776 = vpop.permute.xlu0 %2775
          %2779 = vset.pattern.permute.xlu0 0
          %2780 = vperm.xlu0 %2779, %v2742
          %v2781 = vpop.permute.xlu0 %2780
          %2784 = vset.pattern.permute.xlu0 0
          %2785 = vperm.xlu0 %2784, %v2743
          %v2786 = vpop.permute.xlu0 %2785
          %2789 = vset.pattern.permute.xlu0 0
          %2790 = vperm.xlu0 %2789, %v2744
          %v2791 = vpop.permute.xlu0 %2790
          %2794 = vset.pattern.permute.xlu0 0
          %2795 = vperm.xlu0 %2794, %v2745
          %v2796 = vpop.permute.xlu0 %2795
          %2799 = vset.pattern.permute.xlu0 0
          %2800 = vperm.xlu0 %2799, %v2746
          %v2801 = vpop.permute.xlu0 %2800
          %2804 = vset.pattern.permute.xlu0 0
          %2805 = vperm.xlu0 %2804, %v2747
          %v2806 = vpop.permute.xlu0 %2805
          %2809 = vset.pattern.permute.xlu0 0
          %2810 = vperm.xlu0 %2809, %v2748
          %v2811 = vpop.permute.xlu0 %2810
          %2814 = vset.pattern.permute.xlu0 0
          %2815 = vperm.xlu0 %2814, %v2749
          %v2816 = vpop.permute.xlu0 %2815
          %2819 = vset.pattern.permute.xlu0 0
          %2820 = vperm.xlu0 %2819, %v2750
          %v2821 = vpop.permute.xlu0 %2820
          %2824 = vset.pattern.permute.xlu0 0
          %2825 = vperm.xlu0 %2824, %v2751
          %v2826 = vpop.permute.xlu0 %2825
          %2829 = vset.pattern.permute.xlu0 0
          %2830 = vperm.xlu0 %2829, %v2752
          %v2831 = vpop.permute.xlu0 %2830
          %2834 = vset.pattern.permute.xlu0 0
          %2835 = vperm.xlu0 %2834, %v2753
          %v2836 = vpop.permute.xlu0 %2835
          %2839 = vset.pattern.permute.xlu0 0
          %2840 = vperm.xlu0 %2839, %v2754
          %v2841 = vpop.permute.xlu0 %2840
          %2844 = vset.pattern.permute.xlu0 0
          %2845 = vperm.xlu0 %2844, %v2755
          %v2846 = vpop.permute.xlu0 %2845
          %2849 = vset.pattern.permute.xlu0 0
          %2850 = vperm.xlu0 %2849, %v2756
          %v2851 = vpop.permute.xlu0 %2850
          %2854 = vset.pattern.permute.xlu0 0
          %2855 = vperm.xlu0 %2854, %v2757
          %v2856 = vpop.permute.xlu0 %2855
          %2859 = vset.pattern.permute.xlu0 0
          %2860 = vperm.xlu0 %2859, %v2758
          %v2861 = vpop.permute.xlu0 %2860
          %2864 = vset.pattern.permute.xlu0 0
          %2865 = vperm.xlu0 %2864, %v2759
          %v2866 = vpop.permute.xlu0 %2865
          %2869 = vset.pattern.permute.xlu0 0
          %2870 = vperm.xlu0 %2869, %v2760
          %v2871 = vpop.permute.xlu0 %2870
          %2874 = vset.pattern.permute.xlu0 0
          %2875 = vperm.xlu0 %2874, %v2761
          %v2876 = vpop.permute.xlu0 %2875
          %2879 = vset.pattern.permute.xlu0 0
          %2880 = vperm.xlu0 %2879, %v2762
          %v2881 = vpop.permute.xlu0 %2880
          %2884 = vset.pattern.permute.xlu0 0
          %2885 = vperm.xlu0 %2884, %v2763
          %v2886 = vpop.permute.xlu0 %2885
          %2889 = vset.pattern.permute.xlu0 0
          %2890 = vperm.xlu0 %2889, %v2764
          %v2891 = vpop.permute.xlu0 %2890
          %2894 = vset.pattern.permute.xlu0 0
          %2895 = vperm.xlu0 %2894, %v2765
          %v2896 = vpop.permute.xlu0 %2895
          %2899 = vset.pattern.permute.xlu0 0
          %2900 = vperm.xlu0 %2899, %v2766
          %v2901 = vpop.permute.xlu0 %2900
          %2904 = vset.pattern.permute.xlu0 0
          %2905 = vperm.xlu0 %2904, %v2767
          %v2906 = vpop.permute.xlu0 %2905
          %2909 = vset.pattern.permute.xlu0 0
          %2910 = vperm.xlu0 %2909, %v2768
          %v2911 = vpop.permute.xlu0 %2910
          %2914 = vset.pattern.permute.xlu0 0
          %2915 = vperm.xlu0 %2914, %v2769
          %v2916 = vpop.permute.xlu0 %2915
          %2919 = vset.pattern.permute.xlu0 0
          %2920 = vperm.xlu0 %2919, %v2770
          %v2921 = vpop.permute.xlu0 %2920
          %2924 = vset.pattern.permute.xlu0 0
          %2925 = vperm.xlu0 %2924, %v2771
          %v2926 = vpop.permute.xlu0 %2925
          %2929 = vset.pattern.permute.xlu0 0
          %2930 = vperm.xlu0 %2929, %v2772
          %v2931 = vpop.permute.xlu0 %2930
          %v2933 = vmul.f32 %v2709, %v2776
          %v2934 = vmul.f32 %v2710, %v2781
          %v2935 = vmul.f32 %v2711, %v2786
          %v2936 = vmul.f32 %v2712, %v2791
          %v2937 = vmul.f32 %v2713, %v2796
          %v2938 = vmul.f32 %v2714, %v2801
          %v2939 = vmul.f32 %v2715, %v2806
          %v2940 = vmul.f32 %v2716, %v2811
          %v2941 = vmul.f32 %v2717, %v2816
          %v2942 = vmul.f32 %v2718, %v2821
          %v2943 = vmul.f32 %v2719, %v2826
          %v2944 = vmul.f32 %v2720, %v2831
          %v2945 = vmul.f32 %v2721, %v2836
          %v2946 = vmul.f32 %v2722, %v2841
          %v2947 = vmul.f32 %v2723, %v2846
          %v2948 = vmul.f32 %v2724, %v2851
          %v2949 = vmul.f32 %v2725, %v2856
          %v2950 = vmul.f32 %v2726, %v2861
          %v2951 = vmul.f32 %v2727, %v2866
          %v2952 = vmul.f32 %v2728, %v2871
          %v2953 = vmul.f32 %v2729, %v2876
          %v2954 = vmul.f32 %v2730, %v2881
          %v2955 = vmul.f32 %v2731, %v2886
          %v2956 = vmul.f32 %v2732, %v2891
          %v2957 = vmul.f32 %v2733, %v2896
          %v2958 = vmul.f32 %v2734, %v2901
          %v2959 = vmul.f32 %v2735, %v2906
          %v2960 = vmul.f32 %v2736, %v2911
          %v2961 = vmul.f32 %v2737, %v2916
          %v2962 = vmul.f32 %v2738, %v2921
          %v2963 = vmul.f32 %v2739, %v2926
          %v2964 = vmul.f32 %v2740, %v2931
          %v2965 = vpack.c.bf16 %v2934, %v2933
          %v2966 = vpack.c.bf16 %v2936, %v2935
          %v2967 = vpack.c.bf16 %v2938, %v2937
          %v2968 = vpack.c.bf16 %v2940, %v2939
          %v2969 = vpack.c.bf16 %v2942, %v2941
          %v2970 = vpack.c.bf16 %v2944, %v2943
          %v2971 = vpack.c.bf16 %v2946, %v2945
          %v2972 = vpack.c.bf16 %v2948, %v2947
          %v2973 = vpack.c.bf16 %v2950, %v2949
          %v2974 = vpack.c.bf16 %v2952, %v2951
          %v2975 = vpack.c.bf16 %v2954, %v2953
          %v2976 = vpack.c.bf16 %v2956, %v2955
          %v2977 = vpack.c.bf16 %v2958, %v2957
          %v2978 = vpack.c.bf16 %v2960, %v2959
          %v2979 = vpack.c.bf16 %v2962, %v2961
          %v2980 = vpack.c.bf16 %v2964, %v2963
          %v2997 = vunpack.c.l.b16 %v2965
          %v2998 = vunpack.c.h.b16 %v2965
          %v2999 = vunpack.c.l.b16 %v2966
          %v3000 = vunpack.c.h.b16 %v2966
          %v3001 = vunpack.c.l.b16 %v2967
          %v3002 = vunpack.c.h.b16 %v2967
          %v3003 = vunpack.c.l.b16 %v2968
          %v3004 = vunpack.c.h.b16 %v2968
          %v3005 = vunpack.c.l.b16 %v2969
          %v3006 = vunpack.c.h.b16 %v2969
          %v3007 = vunpack.c.l.b16 %v2970
          %v3008 = vunpack.c.h.b16 %v2970
          %v3009 = vunpack.c.l.b16 %v2971
          %v3010 = vunpack.c.h.b16 %v2971
          %v3011 = vunpack.c.l.b16 %v2972
          %v3012 = vunpack.c.h.b16 %v2972
          %v3013 = vunpack.c.l.b16 %v2973
          %v3014 = vunpack.c.h.b16 %v2973
          %v3015 = vunpack.c.l.b16 %v2974
          %v3016 = vunpack.c.h.b16 %v2974
          %v3017 = vunpack.c.l.b16 %v2975
          %v3018 = vunpack.c.h.b16 %v2975
          %v3019 = vunpack.c.l.b16 %v2976
          %v3020 = vunpack.c.h.b16 %v2976
          %v3021 = vunpack.c.l.b16 %v2977
          %v3022 = vunpack.c.h.b16 %v2977
          %v3023 = vunpack.c.l.b16 %v2978
          %v3024 = vunpack.c.h.b16 %v2978
          %v3025 = vunpack.c.l.b16 %v2979
          %v3026 = vunpack.c.h.b16 %v2979
          %v3027 = vunpack.c.l.b16 %v2980
          %v3028 = vunpack.c.h.b16 %v2980
          %v3029 = vpack.c.b16 %v2997, %v2997
          %v3030 = vpack.c.b16 %v2998, %v2998
          %v3031 = vpack.c.b16 %v2999, %v2999
          %v3032 = vpack.c.b16 %v3000, %v3000
          %v3033 = vpack.c.b16 %v3001, %v3001
          %v3034 = vpack.c.b16 %v3002, %v3002
          %v3035 = vpack.c.b16 %v3003, %v3003
          %v3036 = vpack.c.b16 %v3004, %v3004
          %v3037 = vpack.c.b16 %v3005, %v3005
          %v3038 = vpack.c.b16 %v3006, %v3006
          %v3039 = vpack.c.b16 %v3007, %v3007
          %v3040 = vpack.c.b16 %v3008, %v3008
          %v3041 = vpack.c.b16 %v3009, %v3009
          %v3042 = vpack.c.b16 %v3010, %v3010
          %v3043 = vpack.c.b16 %v3011, %v3011
          %v3044 = vpack.c.b16 %v3012, %v3012
          %v3045 = vpack.c.b16 %v3013, %v3013
          %v3046 = vpack.c.b16 %v3014, %v3014
          %v3047 = vpack.c.b16 %v3015, %v3015
          %v3048 = vpack.c.b16 %v3016, %v3016
          %v3049 = vpack.c.b16 %v3017, %v3017
          %v3050 = vpack.c.b16 %v3018, %v3018
          %v3051 = vpack.c.b16 %v3019, %v3019
          %v3052 = vpack.c.b16 %v3020, %v3020
          %v3053 = vpack.c.b16 %v3021, %v3021
          %v3054 = vpack.c.b16 %v3022, %v3022
          %v3055 = vpack.c.b16 %v3023, %v3023
          %v3056 = vpack.c.b16 %v3024, %v3024
          %v3057 = vpack.c.b16 %v3025, %v3025
          %v3058 = vpack.c.b16 %v3026, %v3026
          %v3059 = vpack.c.b16 %v3027, %v3027
          %v3060 = vpack.c.b16 %v3028, %v3028
          %3093 = vst [vmem:[%s340] sm:$0xf] %v3029
          %3094 = vst [vmem:[%s340 + $0x4] sm:$0xf] %v3030
          %3095 = vst [vmem:[%s340 + $0x8] sm:$0xf] %v3031
          %3096 = vst [vmem:[%s340 + $0xc] sm:$0xf] %v3032
          %3097 = vst [vmem:[%s340 + $0x10] sm:$0xf] %v3033
          %3098 = vst [vmem:[%s340 + $0x14] sm:$0xf] %v3034
          %3099 = vst [vmem:[%s340 + $0x18] sm:$0xf] %v3035
          %3100 = vst [vmem:[%s340 + $0x1c] sm:$0xf] %v3036
          %3101 = vst [vmem:[%s340 + $0x20] sm:$0xf] %v3037
          %3102 = vst [vmem:[%s340 + $0x24] sm:$0xf] %v3038
          %3103 = vst [vmem:[%s340 + $0x28] sm:$0xf] %v3039
          %3104 = vst [vmem:[%s340 + $0x2c] sm:$0xf] %v3040
          %3105 = vst [vmem:[%s340 + $0x30] sm:$0xf] %v3041
          %3106 = vst [vmem:[%s340 + $0x34] sm:$0xf] %v3042
          %3107 = vst [vmem:[%s340 + $0x38] sm:$0xf] %v3043
          %3108 = vst [vmem:[%s340 + $0x3c] sm:$0xf] %v3044
          %3109 = vst [vmem:[%s340 + $0x40] sm:$0xf] %v3045
          %3110 = vst [vmem:[%s340 + $0x44] sm:$0xf] %v3046
          %3111 = vst [vmem:[%s340 + $0x48] sm:$0xf] %v3047
          %3112 = vst [vmem:[%s340 + $0x4c] sm:$0xf] %v3048
          %3113 = vst [vmem:[%s340 + $0x50] sm:$0xf] %v3049
          %3114 = vst [vmem:[%s340 + $0x54] sm:$0xf] %v3050
          %3115 = vst [vmem:[%s340 + $0x58] sm:$0xf] %v3051
          %3116 = vst [vmem:[%s340 + $0x5c] sm:$0xf] %v3052
          %3117 = vst [vmem:[%s340 + $0x60] sm:$0xf] %v3053
          %3118 = vst [vmem:[%s340 + $0x64] sm:$0xf] %v3054
          %3119 = vst [vmem:[%s340 + $0x68] sm:$0xf] %v3055
          %3120 = vst [vmem:[%s340 + $0x6c] sm:$0xf] %v3056
          %3121 = vst [vmem:[%s340 + $0x70] sm:$0xf] %v3057
          %3122 = vst [vmem:[%s340 + $0x74] sm:$0xf] %v3058
          %3123 = vst [vmem:[%s340 + $0x78] sm:$0xf] %v3059
          %3124 = vst [vmem:[%s340 + $0x7c] sm:$0xf] %v3060
        $region56: #{tpu_custom_call.1} parent=31 // pred_fallthru
          _
        %s3125 = sand.u32 %s166, 1
        %s3126 = scalar_lea.sflag [#allocation7], %s3125
        %s3127 = sand.u32 %s166, 1
        %s3128 = smul.addr %s3127, 128
        %s3129 = scalar_lea.vmem [#allocation11], %s3128
        // Predicated region
        $region57: #{tpu_custom_call.1} parent=31 // pred_check
          %p3130 = pneg %p176
        $region58: #{tpu_custom_call.1} parent=31 // pred_check_branch
          %3132 = sbr.rel (%p3130) target = $region60
        $region59: #{tpu_custom_call.1} parent=31 // pred_region
          %s3133 = smul.u32 32, %s33
          %s3135 = ssub.s32 2048, 2048
          %3136 = vsyncadd %s3126, %s3135
          %s3137 = smul.addr %s3133, 2
          %s3138 = sadd.s32 %s32, %s3137
          %s3139 = smul.addr %s31, 64
          %s3140 = sadd.s32 %s3138, %s3139
          %s3141 = smul.addr %s30, 128
          %s3142 = sadd.s32 %s3140, %s3141
          %s3143 = smul.addr %s3142, 64
          %s3144 = scalar_lea.hbm %s3, %s3143
          %s3145 = sshll.u32 %s3129, 4
          %s3146 = int_to_ptr.vmem [resolvable:$true] %s3145
          %3151 = dma.vmem_to_hbm [thread:$0]  %s3146, 2048, %s3144, %s3126, 64, 128, 4
        $region60: #{tpu_custom_call.1} parent=31 // pred_fallthru
          _
      $region32: #{tpu_custom_call.1} parent=5 // pred_fallthru
        _
      %p3152 = scmp.le.s32.totalorder 2, %s18
      // Predicated region
      $region61: #{tpu_custom_call.1} parent=5 // pred_check
        %p3153 = pneg %p3152
      $region62: #{tpu_custom_call.1} parent=5 // pred_check_branch
        %3155 = sbr.rel (%p3153) target = $region64
      $region63: #{tpu_custom_call.1} parent=5 // pred_region
        %s3156 = ssub.s32 %s18, 2
        // Predicated region
        $region65: #{tpu_custom_call.1} parent=63 // pred_check
          %p3157 = pneg %p182
        $region66: #{tpu_custom_call.1} parent=63 // pred_check_branch
          %3159 = sbr.rel (%p3157) target = $region68
        $region67: #{tpu_custom_call.1} parent=63 // pred_region
          %s3160 = sand.u32 %s167, 1
          %s3161 = scalar_lea.sflag [#allocation7], %s3160
          %s3162 = sand.u32 %s167, 1
          %s3163 = smul.addr %s3162, 128
          %s3164 = scalar_lea.vmem [#allocation11], %s3163
          %3165 = dma.done %s3161, 2048
        $region68: #{tpu_custom_call.1} parent=63 // pred_fallthru
          _
      $region64: #{tpu_custom_call.1} parent=5 // pred_fallthru
        _
    $region6: #{tpu_custom_call.1} parent=1 // loop_footer
      %s22 = sadd.s32 1, %s18
    $region7: #{tpu_custom_call.1} parent=1 // loop_footer_branch
      %17 = sbr.rel target = $region3
    $region8: #{tpu_custom_call.1} parent=1 // loop_exit
      _
    %3166 = vsyncpa [#allocation6], 1
    %s3167 = scalar_lea.sflag [#allocation6], 1
    %3168 = vsyncpa %s3167, 1
    %3169 = vsyncpa [#allocation9], 1
    %s3170 = scalar_lea.sflag [#allocation9], 1
    %3171 = vsyncpa %s3170, 1
    %3172 = vsyncpa [#allocation7], 1
    %s3173 = scalar_lea.sflag [#allocation7], 1
    %3174 = vsyncpa %s3173, 1

</llo_original>
